<compile_context>
chip_gen: v7x
topology: tpu7x:2x2x1
jax: 0.10.0
libtpu: 0.0.40
codegen_flags: <defaults>
</compile_context>

<pallas_src>
import jax
import jax.numpy as jnp
from jax.experimental import pallas as pl
from jax.experimental.pallas import tpu as pltpu


# ---------------------------------------------------------------------------
# Small math helpers (usable both inside the Pallas kernel and in pure JAX).
# ---------------------------------------------------------------------------
def _layernorm(x, g, b, eps=1e-5):
    mu = jnp.mean(x, axis=-1, keepdims=True)
    var = jnp.mean(jnp.square(x - mu), axis=-1, keepdims=True)
    return (x - mu) * jax.lax.rsqrt(var + eps) * g + b


def _softmax_last(x):
    m = jnp.max(x, axis=-1, keepdims=True)
    e = jnp.exp(x - m)
    return e / jnp.sum(e, axis=-1, keepdims=True)


def _dot(a, b):
    return jnp.dot(a, b, preferred_element_type=jnp.float32)


def _dot_nt(a, b):  # a:(M,C) b:(N,C) -> (M,N), contract last dims
    return jax.lax.dot_general(a, b, (((1,), (1,)), ((), ())),
                               preferred_element_type=jnp.float32)


def _dot_tn(a, b):  # a:(C,M) b:(C,N) -> (M,N), contract first dims
    return jax.lax.dot_general(a, b, (((0,), (0,)), ((), ())),
                               preferred_element_type=jnp.float32)


# ---------------------------------------------------------------------------
# Pure-JAX per-sample reference (straightforward, unfused; mirrors the PyTorch
# Corrector.forward math).  Used only for the correctness self-check.
# ---------------------------------------------------------------------------
def _forward_single(x, slots, p, *, use_mha, num_iterations, num_heads,
                    epsilon, slot_size):
    (ni_g, ni_b, ns_g, ns_b, nm_g, nm_b,
     wk, wv, wq,
     mha_in_w, mha_in_b, mha_out_w, mha_out_b,
     ma_w1, ma_b1, ma_w2, ma_b2,
     g_wih, g_whh, g_bih, g_bhh,
     m_w1, m_b1, m_w2, m_b2) = p

    S = slot_size

    xin = _layernorm(x, ni_g, ni_b)
    k1 = _dot(xin, wk)                      # (N, S)
    v1 = _dot(xin, wv)                      # (N, S)

    slots = _layernorm(slots, ns_g, ns_b)   # (K, S)

    if use_mha:                             # corresponds to `if i != 1`
        prev = slots
        qkv = _dot(slots, mha_in_w) + mha_in_b          # (K, 3S)
        q = qkv[:, :S]
        k = qkv[:, S:2 * S]
        v = qkv[:, 2 * S:]
        hd = S // num_heads
        scale = hd ** -0.5
        heads = []
        for h in range(num_heads):
            qh = q[:, h * hd:(h + 1) * hd] * scale
            kh = k[:, h * hd:(h + 1) * hd]
            vh = v[:, h * hd:(h + 1) * hd]
            a = _softmax_last(_dot_nt(qh, kh))          # (K, K)
            heads.append(_dot(a, vh))                   # (K, hd)
        attn_out = jnp.concatenate(heads, axis=-1)      # (K, S)
        attn_out = _dot(attn_out, mha_out_w) + mha_out_b
        slots = prev + attn_out
        slots = _layernorm(slots, ns_g, ns_b)
        hid = jnp.maximum(_dot(slots, ma_w1) + ma_b1, 0.0)
        slots = (_dot(hid, ma_w2) + ma_b2) + slots

    attn_scale = S ** -0.5
    for _ in range(num_iterations):
        prev = slots
        slots_n = _layernorm(slots, ns_g, ns_b)
        q = _dot(slots_n, wq)                           # (K, S)
        logits = attn_scale * _dot_nt(k1, q)            # (N, K)
        attn = _softmax_last(logits) + epsilon          # softmax over slots
        attn = attn / jnp.sum(attn, axis=0, keepdims=True)   # normalize over inputs
        updates = _dot_tn(attn, v1)                     # (K, S)

        # GRUCell(updates, prev) -- PyTorch gate order: r, z, n
        gi = _dot(updates, g_wih) + g_bih               # (K, 3S)
        gh = _dot(prev, g_whh) + g_bhh                  # (K, 3S)
        r = jax.nn.sigmoid(gi[:, :S] + gh[:, :S])
        z = jax.nn.sigmoid(gi[:, S:2 * S] + gh[:, S:2 * S])
        n = jnp.tanh(gi[:, 2 * S:] + r * gh[:, 2 * S:])
        slots = (1.0 - z) * n + z * prev

        sn = _layernorm(slots, nm_g, nm_b)
        hid = jnp.maximum(_dot(sn, m_w1) + m_b1, 0.0)
        slots = slots + _dot(hid, m_w2) + m_b2
    return slots


# ---------------------------------------------------------------------------
# Fused, batch-folded block math (runs INSIDE the Pallas kernel).
# Processes a block of `bb` batch elements per grid step.
# ---------------------------------------------------------------------------
def _forward_block(x, slots, p, *, use_mha, num_iterations, num_heads, epsilon):
    (ni_g, ni_b, ns_g, ns_b, nm_g, nm_b,
     w_kv, wq,
     mha_in_w, mha_in_b, mha_out_w, mha_out_b,
     ma_w1, ma_b1, ma_w2, ma_b2,
     g_w, g_b,
     m_w1, m_b1, m_w2, m_b2) = p

    bb, N, Din = x.shape
    _, K, S = slots.shape
    R = bb * K
    H = m_w1.shape[-1]

    # Hoisted broadcasts (JAX does not CSE broadcast_in_dim across the unrolled loop).
    ns_gf = jnp.broadcast_to(ns_g, (R, S))
    ns_bf = jnp.broadcast_to(ns_b, (R, S))
    nm_gf = jnp.broadcast_to(nm_g, (R, S))
    nm_bf = jnp.broadcast_to(nm_b, (R, S))
    g_bf = jnp.broadcast_to(g_b, (R, 6 * S))
    m_b1f = jnp.broadcast_to(m_b1, (R, H))
    m_b2f = jnp.broadcast_to(m_b2, (R, S))

    # ---- inputs: layernorm + fused k/v projection (one (Din, 2S) matmul) ----
    xin = _layernorm(x.reshape(bb * N, Din), ni_g, ni_b)       # (bb*N, Din)
    kv = _dot(xin, w_kv).reshape(bb, N, 2 * S)                 # (bb, N, 2S)
    k1 = kv[..., :S]                                           # (bb, N, S)
    v1 = kv[..., S:]                                           # (bb, N, S)

    # ---- slot norm ----
    slots = _layernorm(slots.reshape(R, S), ns_gf, ns_bf)      # (R, S)

    if use_mha:                                                # `if i != 1`
        hd = S // num_heads
        scale = hd ** -0.5
        prev = slots
        qkv = (_dot(slots, mha_in_w) + mha_in_b).reshape(bb, K, 3 * S)
        q = qkv[..., :S] * scale                               # scale folded once
        k = qkv[..., S:2 * S]
        v = qkv[..., 2 * S:]
        heads = []
        for h in range(num_heads):                             # nh=4, static unroll
            sl = slice(h * hd, (h + 1) * hd)
            logits = jnp.einsum('bqd,bkd->bqk', q[..., sl], k[..., sl],
                                preferred_element_type=jnp.float32)   # (bb, K, K)
            a = _softmax_last(logits)
            heads.append(jnp.einsum('bqk,bkd->bqd', a, v[..., sl],
                                    preferred_element_type=jnp.float32))
        ctx = jnp.concatenate(heads, axis=-1).reshape(R, S)
        attn_out = _dot(ctx, mha_out_w) + mha_out_b
        slots = prev + attn_out
        slots = _layernorm(slots, ns_gf, ns_bf)
        hid = jnp.maximum(_dot(slots, ma_w1) + ma_b1, 0.0)
        slots = (_dot(hid, ma_w2) + ma_b2) + slots

    attn_scale = S ** -0.5
    for _ in range(num_iterations):
        prev = slots                                           # (R, S), un-normalized
        slots_n = _layernorm(slots, ns_gf, ns_bf)
        q = _dot(slots_n, wq).reshape(bb, K, S)                # (bb, K, S)

        # (K, N)-layout logits: wide N axis stays on lanes.
        logits = attn_scale * jnp.einsum('bks,bns->bkn', q, k1,
                                         preferred_element_type=jnp.float32)
        m = jnp.max(logits, axis=1, keepdims=True)             # softmax over slots
        e = jnp.exp(logits - m)
        attn = e / jnp.sum(e, axis=1, keepdims=True) + epsilon
        attn = attn / jnp.sum(attn, axis=-1, keepdims=True)    # normalize over inputs
        updates = jnp.einsum('bkn,bns->bks', attn, v1,
                             preferred_element_type=jnp.float32).reshape(R, S)

        # GRUCell: single block-diagonal fused matmul -> [gi | gh]  (exact semantics)
        uh = jnp.concatenate([updates, prev], axis=-1)         # (R, 2S)
        g = _dot(uh, g_w) + g_bf                               # (R, 6S)
        gi = g[:, :3 * S]
        gh = g[:, 3 * S:]
        r = jax.nn.sigmoid(gi[:, :S] + gh[:, :S])
        z = jax.nn.sigmoid(gi[:, S:2 * S] + gh[:, S:2 * S])
        n = jnp.tanh(gi[:, 2 * S:] + r * gh[:, 2 * S:])
        slots = (1.0 - z) * n + z * prev

        # residual MLP
        sn = _layernorm(slots, nm_gf, nm_bf)
        hid = jnp.maximum(_dot(sn, m_w1) + m_b1f, 0.0)
        slots = slots + _dot(hid, m_w2) + m_b2f

    return slots.reshape(bb, K, S)


# ---------------------------------------------------------------------------
# Pallas kernel + wrapper
# ---------------------------------------------------------------------------
def _make_kernel(cfg):
    def kernel(*refs):
        x_ref, s_ref = refs[0], refs[1]
        out_ref = refs[-1]
        params = [r[...] for r in refs[2:-1]]
        out_ref[...] = _forward_block(x_ref[...], s_ref[...], params, **cfg)
    return kernel


def corrector_pallas(inputs, slots0, fused_params, *, i, num_iterations,
                     num_heads, epsilon, batch_block=1):
    B, N, Din = inputs.shape
    _, K, S = slots0.shape
    bb = batch_block
    assert B % bb == 0, "batch_block must divide batch size"

    cfg = dict(use_mha=(i != 1), num_iterations=num_iterations,
               num_heads=num_heads, epsilon=epsilon)

    in_specs = [
        pl.BlockSpec((bb, N, Din), lambda g: (g, 0, 0)),
        pl.BlockSpec((bb, K, S), lambda g: (g, 0, 0)),
    ]
    for p in fused_params:
        assert p.ndim == 2
        in_specs.append(pl.BlockSpec(p.shape, lambda g: (0, 0)))

    out_spec = pl.BlockSpec((bb, K, S), lambda g: (g, 0, 0))
    # TODO(synk): output kept as (B, K, S) (64-lane masked stores) — folding K*S into
    # a single lane-dense dim needs a sublane->lane relayout that is not worth the
    # risk for a 4 KB output.

    return pl.pallas_call(
        _make_kernel(cfg),
        out_shape=jax.ShapeDtypeStruct((B, K, S), jnp.float32),
        grid_spec=pltpu.PrefetchScalarGridSpec(
            num_scalar_prefetch=0,
            grid=(B // bb,),
            in_specs=in_specs,
            out_specs=out_spec,
        ),
        compiler_params=pltpu.CompilerParams(
            dimension_semantics=("parallel",),
        ),
    )(inputs, slots0, *fused_params)


def _pick_batch_block(B):
    """grid=(1,) (batch folded into M) on single-TC v5e/v6e; per-batch parallel otherwise."""
    try:
        kind = jax.devices()[0].device_kind.lower()
    except Exception:
        return 1
    single_tc = any(t in kind for t in
                    ("v5e", "v5 lite", "v5lite", "v6e", "v6 lite", "v6lite"))
    return B if single_tc else 1


# ---------------------------------------------------------------------------
# Deterministic parameter construction (shapes from Corrector.__init__).
# All Linear weights stored as (in, out); biases as (1, out).
# ---------------------------------------------------------------------------
def _init_params(key, Din, S, H):
    keys = jax.random.split(key, 32)
    ki = iter(range(32))

    def nrm(shape, scale):
        return (scale * jax.random.normal(keys[next(ki)], shape)).astype(jnp.float32)

    params = [
        1.0 + 0.05 * nrm((1, Din), 1.0),          # norm_inputs gamma
        nrm((1, Din), 0.05),                      # norm_inputs beta
        1.0 + 0.05 * nrm((1, S), 1.0),            # norm_slots gamma
        nrm((1, S), 0.05),                        # norm_slots beta
        1.0 + 0.05 * nrm((1, S), 1.0),            # norm_mlp gamma
        nrm((1, S), 0.05),                        # norm_mlp beta
        nrm((Din, S), Din ** -0.5),               # project_k1 (no bias)
        nrm((Din, S), Din ** -0.5),               # project_v1 (no bias)
        nrm((S, S), S ** -0.5),                   # project_q (no bias)
        nrm((S, 3 * S), S ** -0.5),               # mha in_proj weight
        nrm((1, 3 * S), 0.02),                    # mha in_proj bias
        nrm((S, S), S ** -0.5),                   # mha out_proj weight
        nrm((1, S), 0.02),                        # mha out_proj bias
        nrm((S, H), S ** -0.5),                   # mlp_attn fc1 w
        nrm((1, H), 0.02),                        # mlp_attn fc1 b
        nrm((H, S), H ** -0.5),                   # mlp_attn fc2 w
        nrm((1, S), 0.02),                        # mlp_attn fc2 b
        nrm((S, 3 * S), S ** -0.5),               # gru weight_ih^T
        nrm((S, 3 * S), S ** -0.5),               # gru weight_hh^T
        nrm((1, 3 * S), 0.02),                    # gru bias_ih
        nrm((1, 3 * S), 0.02),                    # gru bias_hh
        nrm((S, H), S ** -0.5),                   # mlp fc1 w
        nrm((1, H), 0.02),                        # mlp fc1 b
        nrm((H, S), H ** -0.5),                   # mlp fc2 w
        nrm((1, S), 0.02),                        # mlp fc2 b
    ]
    # TODO(synk): slots_mu / slots_log_sigma / norm_slots_after_cat buffers are
    # unused in Corrector.forward, so they are intentionally not materialized.
    return params


def _fuse_params(p, S):
    """Build the fused weight set consumed by the Pallas kernel."""
    (ni_g, ni_b, ns_g, ns_b, nm_g, nm_b,
     wk, wv, wq,
     mha_in_w, mha_in_b, mha_out_w, mha_out_b,
     ma_w1, ma_b1, ma_w2, ma_b2,
     g_wih, g_whh, g_bih, g_bhh,
     m_w1, m_b1, m_w2, m_b2) = p

    w_kv = jnp.concatenate([wk, wv], axis=1)                  # (Din, 2S)

    # Block-diagonal GRU weight: [u, h] @ [[Wih, 0], [0, Whh]] = [gi, gh]
    g_w = jnp.zeros((2 * S, 6 * S), jnp.float32)
    g_w = g_w.at[:S, :3 * S].set(g_wih)
    g_w = g_w.at[S:, 3 * S:].set(g_whh)
    g_b = jnp.concatenate([g_bih, g_bhh], axis=-1)            # (1, 6S)

    return [ni_g, ni_b, ns_g, ns_b, nm_g, nm_b,
            w_kv, wq,
            mha_in_w, mha_in_b, mha_out_w, mha_out_b,
            ma_w1, ma_b1, ma_w2, ma_b2,
            g_w, g_b,
            m_w1, m_b1, m_w2, m_b2]


if __name__ == "__main__":
    # Small shapes consistent with the module:
    B, N, Din = 2, 64, 32          # batch, num_inputs (flattened spatial), in_features
    K, S, H = 8, 64, 128           # num_slots, slot_size, mlp_hidden_size
    num_iterations, num_heads = 2, 4
    epsilon = 1e-8
    i_flag = 2                     # i != 1 -> the multihead-attention branch runs

    root = jax.random.PRNGKey(0)
    k_in, k_sl, k_par = jax.random.split(root, 3)
    inputs = jax.random.normal(k_in, (B, N, Din), dtype=jnp.float32)
    slots0 = jax.random.normal(k_sl, (B, K, S), dtype=jnp.float32)
    raw_params = _init_params(k_par, Din, S, H)
    fused_params = _fuse_params(raw_params, S)

    bb = _pick_batch_block(B)

    out = corrector_pallas(inputs, slots0, fused_params, i=i_flag,
                           num_iterations=num_iterations,
                           num_heads=num_heads, epsilon=epsilon,
                           batch_block=bb)
    out = jax.block_until_ready(out)
    assert out.shape == (B, K, S)

    # Pure-JAX, unfused reference (independent of the kernel's fused math).
    cfg = dict(use_mha=(i_flag != 1), num_iterations=num_iterations,
               num_heads=num_heads, epsilon=epsilon, slot_size=S)
    ref_fn = jax.vmap(lambda x, s: _forward_single(x, s, raw_params, **cfg))
    ref = jax.block_until_ready(ref_fn(inputs, slots0))
    max_err = float(jnp.max(jnp.abs(out - ref)))
    assert jnp.allclose(out, ref, rtol=2e-3, atol=2e-3), max_err

    print("KERNEL_OK")
</pallas_src>

<mosaic_0001>
module attributes {stable_mosaic.version = 11 : i64} {
  func.func @kernel(%arg0: i32, %arg1: memref<1x64x32xf32, #tpu.memory_space<vmem>>, %arg2: memref<1x8x64xf32, #tpu.memory_space<vmem>>, %arg3: memref<1x32xf32, #tpu.memory_space<vmem>>, %arg4: memref<1x32xf32, #tpu.memory_space<vmem>>, %arg5: memref<1x64xf32, #tpu.memory_space<vmem>>, %arg6: memref<1x64xf32, #tpu.memory_space<vmem>>, %arg7: memref<1x64xf32, #tpu.memory_space<vmem>>, %arg8: memref<1x64xf32, #tpu.memory_space<vmem>>, %arg9: memref<32x128xf32, #tpu.memory_space<vmem>>, %arg10: memref<64x64xf32, #tpu.memory_space<vmem>>, %arg11: memref<64x192xf32, #tpu.memory_space<vmem>>, %arg12: memref<1x192xf32, #tpu.memory_space<vmem>>, %arg13: memref<64x64xf32, #tpu.memory_space<vmem>>, %arg14: memref<1x64xf32, #tpu.memory_space<vmem>>, %arg15: memref<64x128xf32, #tpu.memory_space<vmem>>, %arg16: memref<1x128xf32, #tpu.memory_space<vmem>>, %arg17: memref<128x64xf32, #tpu.memory_space<vmem>>, %arg18: memref<1x64xf32, #tpu.memory_space<vmem>>, %arg19: memref<128x384xf32, #tpu.memory_space<vmem>>, %arg20: memref<1x384xf32, #tpu.memory_space<vmem>>, %arg21: memref<64x128xf32, #tpu.memory_space<vmem>>, %arg22: memref<1x128xf32, #tpu.memory_space<vmem>>, %arg23: memref<128x64xf32, #tpu.memory_space<vmem>>, %arg24: memref<1x64xf32, #tpu.memory_space<vmem>>, %arg25: memref<1x8x64xf32, #tpu.memory_space<vmem>>) attributes {dimension_semantics = [#tpu.dimension_semantics<parallel>], iteration_bounds = array<i64: 2>, scalar_prefetch = 0 : i64, scratch_operands = 0 : i64, tpu.core_type = #tpu.core_type<tc>, window_params = [{transform_indices = @transform_0, window_bounds = array<i64: 1, 64, 32>}, {transform_indices = @transform_1, window_bounds = array<i64: 1, 8, 64>}, {pipeline_mode = #tpu.pipeline_mode<synchronous>, transform_indices = @transform_2, window_bounds = array<i64: 1, 32>}, {pipeline_mode = #tpu.pipeline_mode<synchronous>, transform_indices = @transform_3, window_bounds = array<i64: 1, 32>}, {pipeline_mode = #tpu.pipeline_mode<synchronous>, transform_indices = @transform_4, window_bounds = array<i64: 1, 64>}, {pipeline_mode = #tpu.pipeline_mode<synchronous>, transform_indices = @transform_5, window_bounds = array<i64: 1, 64>}, {pipeline_mode = #tpu.pipeline_mode<synchronous>, transform_indices = @transform_6, window_bounds = array<i64: 1, 64>}, {pipeline_mode = #tpu.pipeline_mode<synchronous>, transform_indices = @transform_7, window_bounds = array<i64: 1, 64>}, {pipeline_mode = #tpu.pipeline_mode<synchronous>, transform_indices = @transform_8, window_bounds = array<i64: 32, 128>}, {pipeline_mode = #tpu.pipeline_mode<synchronous>, transform_indices = @transform_9, window_bounds = array<i64: 64, 64>}, {pipeline_mode = #tpu.pipeline_mode<synchronous>, transform_indices = @transform_10, window_bounds = array<i64: 64, 192>}, {pipeline_mode = #tpu.pipeline_mode<synchronous>, transform_indices = @transform_11, window_bounds = array<i64: 1, 192>}, {pipeline_mode = #tpu.pipeline_mode<synchronous>, transform_indices = @transform_12, window_bounds = array<i64: 64, 64>}, {pipeline_mode = #tpu.pipeline_mode<synchronous>, transform_indices = @transform_13, window_bounds = array<i64: 1, 64>}, {pipeline_mode = #tpu.pipeline_mode<synchronous>, transform_indices = @transform_14, window_bounds = array<i64: 64, 128>}, {pipeline_mode = #tpu.pipeline_mode<synchronous>, transform_indices = @transform_15, window_bounds = array<i64: 1, 128>}, {pipeline_mode = #tpu.pipeline_mode<synchronous>, transform_indices = @transform_16, window_bounds = array<i64: 128, 64>}, {pipeline_mode = #tpu.pipeline_mode<synchronous>, transform_indices = @transform_17, window_bounds = array<i64: 1, 64>}, {pipeline_mode = #tpu.pipeline_mode<synchronous>, transform_indices = @transform_18, window_bounds = array<i64: 128, 384>}, {pipeline_mode = #tpu.pipeline_mode<synchronous>, transform_indices = @transform_19, window_bounds = array<i64: 1, 384>}, {pipeline_mode = #tpu.pipeline_mode<synchronous>, transform_indices = @transform_20, window_bounds = array<i64: 64, 128>}, {pipeline_mode = #tpu.pipeline_mode<synchronous>, transform_indices = @transform_21, window_bounds = array<i64: 1, 128>}, {pipeline_mode = #tpu.pipeline_mode<synchronous>, transform_indices = @transform_22, window_bounds = array<i64: 128, 64>}, {pipeline_mode = #tpu.pipeline_mode<synchronous>, transform_indices = @transform_23, window_bounds = array<i64: 1, 64>}, {transform_indices = @transform_24, window_bounds = array<i64: 1, 8, 64>}]} {
    %c0 = arith.constant 0 : index
    %c0_0 = arith.constant 0 : index
    %0 = vector.load %arg3[%c0, %c0_0] : memref<1x32xf32, #tpu.memory_space<vmem>>, vector<1x32xf32>
    %c0_1 = arith.constant 0 : index
    %c0_2 = arith.constant 0 : index
    %1 = vector.load %arg4[%c0_1, %c0_2] : memref<1x32xf32, #tpu.memory_space<vmem>>, vector<1x32xf32>
    %c0_3 = arith.constant 0 : index
    %c0_4 = arith.constant 0 : index
    %2 = vector.load %arg5[%c0_3, %c0_4] : memref<1x64xf32, #tpu.memory_space<vmem>>, vector<1x64xf32>
    %c0_5 = arith.constant 0 : index
    %c0_6 = arith.constant 0 : index
    %3 = vector.load %arg6[%c0_5, %c0_6] : memref<1x64xf32, #tpu.memory_space<vmem>>, vector<1x64xf32>
    %c0_7 = arith.constant 0 : index
    %c0_8 = arith.constant 0 : index
    %4 = vector.load %arg7[%c0_7, %c0_8] : memref<1x64xf32, #tpu.memory_space<vmem>>, vector<1x64xf32>
    %c0_9 = arith.constant 0 : index
    %c0_10 = arith.constant 0 : index
    %5 = vector.load %arg8[%c0_9, %c0_10] : memref<1x64xf32, #tpu.memory_space<vmem>>, vector<1x64xf32>
    %c0_11 = arith.constant 0 : index
    %c0_12 = arith.constant 0 : index
    %6 = vector.load %arg9[%c0_11, %c0_12] : memref<32x128xf32, #tpu.memory_space<vmem>>, vector<32x128xf32>
    %c0_13 = arith.constant 0 : index
    %c0_14 = arith.constant 0 : index
    %7 = vector.load %arg10[%c0_13, %c0_14] : memref<64x64xf32, #tpu.memory_space<vmem>>, vector<64x64xf32>
    %c0_15 = arith.constant 0 : index
    %c0_16 = arith.constant 0 : index
    %8 = vector.load %arg11[%c0_15, %c0_16] : memref<64x192xf32, #tpu.memory_space<vmem>>, vector<64x192xf32>
    %c0_17 = arith.constant 0 : index
    %c0_18 = arith.constant 0 : index
    %9 = vector.load %arg12[%c0_17, %c0_18] : memref<1x192xf32, #tpu.memory_space<vmem>>, vector<1x192xf32>
    %c0_19 = arith.constant 0 : index
    %c0_20 = arith.constant 0 : index
    %10 = vector.load %arg13[%c0_19, %c0_20] : memref<64x64xf32, #tpu.memory_space<vmem>>, vector<64x64xf32>
    %c0_21 = arith.constant 0 : index
    %c0_22 = arith.constant 0 : index
    %11 = vector.load %arg14[%c0_21, %c0_22] : memref<1x64xf32, #tpu.memory_space<vmem>>, vector<1x64xf32>
    %c0_23 = arith.constant 0 : index
    %c0_24 = arith.constant 0 : index
    %12 = vector.load %arg15[%c0_23, %c0_24] : memref<64x128xf32, #tpu.memory_space<vmem>>, vector<64x128xf32>
    %c0_25 = arith.constant 0 : index
    %c0_26 = arith.constant 0 : index
    %13 = vector.load %arg16[%c0_25, %c0_26] : memref<1x128xf32, #tpu.memory_space<vmem>>, vector<1x128xf32>
    %c0_27 = arith.constant 0 : index
    %c0_28 = arith.constant 0 : index
    %14 = vector.load %arg17[%c0_27, %c0_28] : memref<128x64xf32, #tpu.memory_space<vmem>>, vector<128x64xf32>
    %c0_29 = arith.constant 0 : index
    %c0_30 = arith.constant 0 : index
    %15 = vector.load %arg18[%c0_29, %c0_30] : memref<1x64xf32, #tpu.memory_space<vmem>>, vector<1x64xf32>
    %c0_31 = arith.constant 0 : index
    %c0_32 = arith.constant 0 : index
    %16 = vector.load %arg19[%c0_31, %c0_32] : memref<128x384xf32, #tpu.memory_space<vmem>>, vector<128x384xf32>
    %c0_33 = arith.constant 0 : index
    %c0_34 = arith.constant 0 : index
    %17 = vector.load %arg20[%c0_33, %c0_34] : memref<1x384xf32, #tpu.memory_space<vmem>>, vector<1x384xf32>
    %c0_35 = arith.constant 0 : index
    %c0_36 = arith.constant 0 : index
    %18 = vector.load %arg21[%c0_35, %c0_36] : memref<64x128xf32, #tpu.memory_space<vmem>>, vector<64x128xf32>
    %c0_37 = arith.constant 0 : index
    %c0_38 = arith.constant 0 : index
    %19 = vector.load %arg22[%c0_37, %c0_38] : memref<1x128xf32, #tpu.memory_space<vmem>>, vector<1x128xf32>
    %c0_39 = arith.constant 0 : index
    %c0_40 = arith.constant 0 : index
    %20 = vector.load %arg23[%c0_39, %c0_40] : memref<128x64xf32, #tpu.memory_space<vmem>>, vector<128x64xf32>
    %c0_41 = arith.constant 0 : index
    %c0_42 = arith.constant 0 : index
    %21 = vector.load %arg24[%c0_41, %c0_42] : memref<1x64xf32, #tpu.memory_space<vmem>>, vector<1x64xf32>
    %c0_43 = arith.constant 0 : index
    %c0_44 = arith.constant 0 : index
    %c0_45 = arith.constant 0 : index
    %22 = vector.load %arg1[%c0_43, %c0_44, %c0_45] : memref<1x64x32xf32, #tpu.memory_space<vmem>>, vector<1x64x32xf32>
    %c0_46 = arith.constant 0 : index
    %c0_47 = arith.constant 0 : index
    %c0_48 = arith.constant 0 : index
    %23 = vector.load %arg2[%c0_46, %c0_47, %c0_48] : memref<1x8x64xf32, #tpu.memory_space<vmem>>, vector<1x8x64xf32>
    %24 = vector.shape_cast %2 : vector<1x64xf32> to vector<1x64xf32>
    %25 = vector.broadcast %24 : vector<1x64xf32> to vector<8x64xf32>
    %26 = vector.shape_cast %3 : vector<1x64xf32> to vector<1x64xf32>
    %27 = vector.broadcast %26 : vector<1x64xf32> to vector<8x64xf32>
    %28 = vector.shape_cast %4 : vector<1x64xf32> to vector<1x64xf32>
    %29 = vector.broadcast %28 : vector<1x64xf32> to vector<8x64xf32>
    %30 = vector.shape_cast %5 : vector<1x64xf32> to vector<1x64xf32>
    %31 = vector.broadcast %30 : vector<1x64xf32> to vector<8x64xf32>
    %32 = vector.shape_cast %17 : vector<1x384xf32> to vector<1x384xf32>
    %33 = vector.broadcast %32 : vector<1x384xf32> to vector<8x384xf32>
    %34 = vector.shape_cast %19 : vector<1x128xf32> to vector<1x128xf32>
    %35 = vector.broadcast %34 : vector<1x128xf32> to vector<8x128xf32>
    %36 = vector.shape_cast %21 : vector<1x64xf32> to vector<1x64xf32>
    %37 = vector.broadcast %36 : vector<1x64xf32> to vector<8x64xf32>
    %38 = vector.shape_cast %22 : vector<1x64x32xf32> to vector<64x32xf32>
    %cst = arith.constant dense<0.000000e+00> : vector<64xf32>
    %39 = vector.multi_reduction <add>, %38, %cst [1] : vector<64x32xf32> to vector<64xf32>
    %40 = vector.shape_cast %39 : vector<64xf32> to vector<64x1xf32>
    %cst_49 = arith.constant 3.200000e+01 : f32
    %41 = vector.broadcast %cst_49 : f32 to vector<64x1xf32>
    %42 = arith.divf %40, %41 : vector<64x1xf32>
    %43 = vector.broadcast %42 : vector<64x1xf32> to vector<64x32xf32>
    %44 = arith.subf %38, %43 : vector<64x32xf32>
    %45 = arith.mulf %44, %44 : vector<64x32xf32>
    %cst_50 = arith.constant dense<0.000000e+00> : vector<64xf32>
    %46 = vector.multi_reduction <add>, %45, %cst_50 [1] : vector<64x32xf32> to vector<64xf32>
    %47 = vector.shape_cast %46 : vector<64xf32> to vector<64x1xf32>
    %cst_51 = arith.constant 3.200000e+01 : f32
    %48 = vector.broadcast %cst_51 : f32 to vector<64x1xf32>
    %49 = arith.divf %47, %48 : vector<64x1xf32>
    %50 = vector.broadcast %42 : vector<64x1xf32> to vector<64x32xf32>
    %51 = arith.subf %38, %50 : vector<64x32xf32>
    %cst_52 = arith.constant 9.99999974E-6 : f32
    %52 = vector.broadcast %cst_52 : f32 to vector<64x1xf32>
    %53 = arith.addf %49, %52 : vector<64x1xf32>
    %54 = math.rsqrt %53 : vector<64x1xf32>
    %55 = vector.broadcast %54 : vector<64x1xf32> to vector<64x32xf32>
    %56 = arith.mulf %51, %55 : vector<64x32xf32>
    %57 = vector.broadcast %0 : vector<1x32xf32> to vector<64x32xf32>
    %58 = arith.mulf %56, %57 : vector<64x32xf32>
    %59 = vector.broadcast %1 : vector<1x32xf32> to vector<64x32xf32>
    %60 = arith.addf %58, %59 : vector<64x32xf32>
    %cst_53 = arith.constant dense<0.000000e+00> : vector<64x128xf32>
    %61 = tpu.matmul %60, %6, %cst_53 {dimension_numbers = #tpu.dot_dimension_numbers<[1], [0], [0], [1], [0, 0, 1, 1], [], []>} : vector<64x32xf32>, vector<32x128xf32>, vector<64x128xf32> -> vector<64x128xf32>
    %62 = vector.shape_cast %61 : vector<64x128xf32> to vector<1x64x128xf32>
    %63 = vector.extract_strided_slice %62 {offsets = [0, 0, 0], sizes = [1, 64, 64], strides = [1, 1, 1]} : vector<1x64x128xf32> to vector<1x64x64xf32>
    %64 = vector.extract_strided_slice %62 {offsets = [0, 0, 64], sizes = [1, 64, 64], strides = [1, 1, 1]} : vector<1x64x128xf32> to vector<1x64x64xf32>
    %65 = vector.shape_cast %23 : vector<1x8x64xf32> to vector<8x64xf32>
    %cst_54 = arith.constant dense<0.000000e+00> : vector<8xf32>
    %66 = vector.multi_reduction <add>, %65, %cst_54 [1] : vector<8x64xf32> to vector<8xf32>
    %67 = vector.shape_cast %66 : vector<8xf32> to vector<8x1xf32>
    %cst_55 = arith.constant 6.400000e+01 : f32
    %68 = vector.broadcast %cst_55 : f32 to vector<8x1xf32>
    %69 = arith.divf %67, %68 : vector<8x1xf32>
    %70 = vector.broadcast %69 : vector<8x1xf32> to vector<8x64xf32>
    %71 = arith.subf %65, %70 : vector<8x64xf32>
    %72 = arith.mulf %71, %71 : vector<8x64xf32>
    %cst_56 = arith.constant dense<0.000000e+00> : vector<8xf32>
    %73 = vector.multi_reduction <add>, %72, %cst_56 [1] : vector<8x64xf32> to vector<8xf32>
    %74 = vector.shape_cast %73 : vector<8xf32> to vector<8x1xf32>
    %cst_57 = arith.constant 6.400000e+01 : f32
    %75 = vector.broadcast %cst_57 : f32 to vector<8x1xf32>
    %76 = arith.divf %74, %75 : vector<8x1xf32>
    %77 = vector.broadcast %69 : vector<8x1xf32> to vector<8x64xf32>
    %78 = arith.subf %65, %77 : vector<8x64xf32>
    %cst_58 = arith.constant 9.99999974E-6 : f32
    %79 = vector.broadcast %cst_58 : f32 to vector<8x1xf32>
    %80 = arith.addf %76, %79 : vector<8x1xf32>
    %81 = math.rsqrt %80 : vector<8x1xf32>
    %82 = vector.broadcast %81 : vector<8x1xf32> to vector<8x64xf32>
    %83 = arith.mulf %78, %82 : vector<8x64xf32>
    %84 = arith.mulf %83, %25 : vector<8x64xf32>
    %85 = arith.addf %84, %27 : vector<8x64xf32>
    %cst_59 = arith.constant dense<0.000000e+00> : vector<8x192xf32>
    %86 = tpu.matmul %85, %8, %cst_59 {dimension_numbers = #tpu.dot_dimension_numbers<[1], [0], [0], [1], [0, 0, 1, 1], [], []>} : vector<8x64xf32>, vector<64x192xf32>, vector<8x192xf32> -> vector<8x192xf32>
    %87 = vector.broadcast %9 : vector<1x192xf32> to vector<8x192xf32>
    %88 = arith.addf %86, %87 : vector<8x192xf32>
    %89 = vector.shape_cast %88 : vector<8x192xf32> to vector<1x8x192xf32>
    %90 = vector.extract_strided_slice %89 {offsets = [0, 0, 0], sizes = [1, 8, 64], strides = [1, 1, 1]} : vector<1x8x192xf32> to vector<1x8x64xf32>
    %cst_60 = arith.constant 2.500000e-01 : f32
    %91 = vector.broadcast %cst_60 : f32 to vector<1x8x64xf32>
    %92 = arith.mulf %90, %91 : vector<1x8x64xf32>
    %93 = vector.extract_strided_slice %89 {offsets = [0, 0, 64], sizes = [1, 8, 64], strides = [1, 1, 1]} : vector<1x8x192xf32> to vector<1x8x64xf32>
    %94 = vector.extract_strided_slice %89 {offsets = [0, 0, 128], sizes = [1, 8, 64], strides = [1, 1, 1]} : vector<1x8x192xf32> to vector<1x8x64xf32>
    %95 = vector.extract_strided_slice %92 {offsets = [0, 0, 0], sizes = [1, 8, 16], strides = [1, 1, 1]} : vector<1x8x64xf32> to vector<1x8x16xf32>
    %96 = vector.extract_strided_slice %93 {offsets = [0, 0, 0], sizes = [1, 8, 16], strides = [1, 1, 1]} : vector<1x8x64xf32> to vector<1x8x16xf32>
    "tpu.trace_start"() <{level = 10 : i32, message = "bqd,bkd->bqk"}> : () -> ()
    %cst_61 = arith.constant dense<0.000000e+00> : vector<1x8x8xf32>
    %97 = tpu.matmul %95, %96, %cst_61 {dimension_numbers = #tpu.dot_dimension_numbers<[2], [2], [1], [1], [0, 0, 0, 1, 1, 1], [0], [0]>} : vector<1x8x16xf32>, vector<1x8x16xf32>, vector<1x8x8xf32> -> vector<1x8x8xf32>
    "tpu.trace_stop"() : () -> ()
    %cst_62 = arith.constant dense<0xFF800000> : vector<1x8xf32>
    %98 = vector.multi_reduction <maximumf>, %97, %cst_62 [2] : vector<1x8x8xf32> to vector<1x8xf32>
    %99 = vector.shape_cast %98 : vector<1x8xf32> to vector<1x8x1xf32>
    %100 = vector.broadcast %99 : vector<1x8x1xf32> to vector<1x8x8xf32>
    %101 = arith.subf %97, %100 : vector<1x8x8xf32>
    %102 = math.exp %101 : vector<1x8x8xf32>
    %cst_63 = arith.constant dense<0.000000e+00> : vector<1x8xf32>
    %103 = vector.multi_reduction <add>, %102, %cst_63 [2] : vector<1x8x8xf32> to vector<1x8xf32>
    %104 = vector.shape_cast %103 : vector<1x8xf32> to vector<1x8x1xf32>
    %105 = vector.broadcast %104 : vector<1x8x1xf32> to vector<1x8x8xf32>
    %106 = arith.divf %102, %105 : vector<1x8x8xf32>
    %107 = vector.extract_strided_slice %94 {offsets = [0, 0, 0], sizes = [1, 8, 16], strides = [1, 1, 1]} : vector<1x8x64xf32> to vector<1x8x16xf32>
    "tpu.trace_start"() <{level = 10 : i32, message = "bqk,bkd->bqd"}> : () -> ()
    %cst_64 = arith.constant dense<0.000000e+00> : vector<1x8x16xf32>
    %108 = tpu.matmul %106, %107, %cst_64 {dimension_numbers = #tpu.dot_dimension_numbers<[2], [1], [1], [2], [0, 0, 0, 1, 1, 2], [0], [0]>} : vector<1x8x8xf32>, vector<1x8x16xf32>, vector<1x8x16xf32> -> vector<1x8x16xf32>
    "tpu.trace_stop"() : () -> ()
    %109 = vector.extract_strided_slice %92 {offsets = [0, 0, 16], sizes = [1, 8, 16], strides = [1, 1, 1]} : vector<1x8x64xf32> to vector<1x8x16xf32>
    %110 = vector.extract_strided_slice %93 {offsets = [0, 0, 16], sizes = [1, 8, 16], strides = [1, 1, 1]} : vector<1x8x64xf32> to vector<1x8x16xf32>
    "tpu.trace_start"() <{level = 10 : i32, message = "bqd,bkd->bqk"}> : () -> ()
    %cst_65 = arith.constant dense<0.000000e+00> : vector<1x8x8xf32>
    %111 = tpu.matmul %109, %110, %cst_65 {dimension_numbers = #tpu.dot_dimension_numbers<[2], [2], [1], [1], [0, 0, 0, 1, 1, 1], [0], [0]>} : vector<1x8x16xf32>, vector<1x8x16xf32>, vector<1x8x8xf32> -> vector<1x8x8xf32>
    "tpu.trace_stop"() : () -> ()
    %cst_66 = arith.constant dense<0xFF800000> : vector<1x8xf32>
    %112 = vector.multi_reduction <maximumf>, %111, %cst_66 [2] : vector<1x8x8xf32> to vector<1x8xf32>
    %113 = vector.shape_cast %112 : vector<1x8xf32> to vector<1x8x1xf32>
    %114 = vector.broadcast %113 : vector<1x8x1xf32> to vector<1x8x8xf32>
    %115 = arith.subf %111, %114 : vector<1x8x8xf32>
    %116 = math.exp %115 : vector<1x8x8xf32>
    %cst_67 = arith.constant dense<0.000000e+00> : vector<1x8xf32>
    %117 = vector.multi_reduction <add>, %116, %cst_67 [2] : vector<1x8x8xf32> to vector<1x8xf32>
    %118 = vector.shape_cast %117 : vector<1x8xf32> to vector<1x8x1xf32>
    %119 = vector.broadcast %118 : vector<1x8x1xf32> to vector<1x8x8xf32>
    %120 = arith.divf %116, %119 : vector<1x8x8xf32>
    %121 = vector.extract_strided_slice %94 {offsets = [0, 0, 16], sizes = [1, 8, 16], strides = [1, 1, 1]} : vector<1x8x64xf32> to vector<1x8x16xf32>
    "tpu.trace_start"() <{level = 10 : i32, message = "bqk,bkd->bqd"}> : () -> ()
    %cst_68 = arith.constant dense<0.000000e+00> : vector<1x8x16xf32>
    %122 = tpu.matmul %120, %121, %cst_68 {dimension_numbers = #tpu.dot_dimension_numbers<[2], [1], [1], [2], [0, 0, 0, 1, 1, 2], [0], [0]>} : vector<1x8x8xf32>, vector<1x8x16xf32>, vector<1x8x16xf32> -> vector<1x8x16xf32>
    "tpu.trace_stop"() : () -> ()
    %123 = vector.extract_strided_slice %92 {offsets = [0, 0, 32], sizes = [1, 8, 16], strides = [1, 1, 1]} : vector<1x8x64xf32> to vector<1x8x16xf32>
    %124 = vector.extract_strided_slice %93 {offsets = [0, 0, 32], sizes = [1, 8, 16], strides = [1, 1, 1]} : vector<1x8x64xf32> to vector<1x8x16xf32>
    "tpu.trace_start"() <{level = 10 : i32, message = "bqd,bkd->bqk"}> : () -> ()
    %cst_69 = arith.constant dense<0.000000e+00> : vector<1x8x8xf32>
    %125 = tpu.matmul %123, %124, %cst_69 {dimension_numbers = #tpu.dot_dimension_numbers<[2], [2], [1], [1], [0, 0, 0, 1, 1, 1], [0], [0]>} : vector<1x8x16xf32>, vector<1x8x16xf32>, vector<1x8x8xf32> -> vector<1x8x8xf32>
    "tpu.trace_stop"() : () -> ()
    %cst_70 = arith.constant dense<0xFF800000> : vector<1x8xf32>
    %126 = vector.multi_reduction <maximumf>, %125, %cst_70 [2] : vector<1x8x8xf32> to vector<1x8xf32>
    %127 = vector.shape_cast %126 : vector<1x8xf32> to vector<1x8x1xf32>
    %128 = vector.broadcast %127 : vector<1x8x1xf32> to vector<1x8x8xf32>
    %129 = arith.subf %125, %128 : vector<1x8x8xf32>
    %130 = math.exp %129 : vector<1x8x8xf32>
    %cst_71 = arith.constant dense<0.000000e+00> : vector<1x8xf32>
    %131 = vector.multi_reduction <add>, %130, %cst_71 [2] : vector<1x8x8xf32> to vector<1x8xf32>
    %132 = vector.shape_cast %131 : vector<1x8xf32> to vector<1x8x1xf32>
    %133 = vector.broadcast %132 : vector<1x8x1xf32> to vector<1x8x8xf32>
    %134 = arith.divf %130, %133 : vector<1x8x8xf32>
    %135 = vector.extract_strided_slice %94 {offsets = [0, 0, 32], sizes = [1, 8, 16], strides = [1, 1, 1]} : vector<1x8x64xf32> to vector<1x8x16xf32>
    "tpu.trace_start"() <{level = 10 : i32, message = "bqk,bkd->bqd"}> : () -> ()
    %cst_72 = arith.constant dense<0.000000e+00> : vector<1x8x16xf32>
    %136 = tpu.matmul %134, %135, %cst_72 {dimension_numbers = #tpu.dot_dimension_numbers<[2], [1], [1], [2], [0, 0, 0, 1, 1, 2], [0], [0]>} : vector<1x8x8xf32>, vector<1x8x16xf32>, vector<1x8x16xf32> -> vector<1x8x16xf32>
    "tpu.trace_stop"() : () -> ()
    %137 = vector.extract_strided_slice %92 {offsets = [0, 0, 48], sizes = [1, 8, 16], strides = [1, 1, 1]} : vector<1x8x64xf32> to vector<1x8x16xf32>
    %138 = vector.extract_strided_slice %93 {offsets = [0, 0, 48], sizes = [1, 8, 16], strides = [1, 1, 1]} : vector<1x8x64xf32> to vector<1x8x16xf32>
    "tpu.trace_start"() <{level = 10 : i32, message = "bqd,bkd->bqk"}> : () -> ()
    %cst_73 = arith.constant dense<0.000000e+00> : vector<1x8x8xf32>
    %139 = tpu.matmul %137, %138, %cst_73 {dimension_numbers = #tpu.dot_dimension_numbers<[2], [2], [1], [1], [0, 0, 0, 1, 1, 1], [0], [0]>} : vector<1x8x16xf32>, vector<1x8x16xf32>, vector<1x8x8xf32> -> vector<1x8x8xf32>
    "tpu.trace_stop"() : () -> ()
    %cst_74 = arith.constant dense<0xFF800000> : vector<1x8xf32>
    %140 = vector.multi_reduction <maximumf>, %139, %cst_74 [2] : vector<1x8x8xf32> to vector<1x8xf32>
    %141 = vector.shape_cast %140 : vector<1x8xf32> to vector<1x8x1xf32>
    %142 = vector.broadcast %141 : vector<1x8x1xf32> to vector<1x8x8xf32>
    %143 = arith.subf %139, %142 : vector<1x8x8xf32>
    %144 = math.exp %143 : vector<1x8x8xf32>
    %cst_75 = arith.constant dense<0.000000e+00> : vector<1x8xf32>
    %145 = vector.multi_reduction <add>, %144, %cst_75 [2] : vector<1x8x8xf32> to vector<1x8xf32>
    %146 = vector.shape_cast %145 : vector<1x8xf32> to vector<1x8x1xf32>
    %147 = vector.broadcast %146 : vector<1x8x1xf32> to vector<1x8x8xf32>
    %148 = arith.divf %144, %147 : vector<1x8x8xf32>
    %149 = vector.extract_strided_slice %94 {offsets = [0, 0, 48], sizes = [1, 8, 16], strides = [1, 1, 1]} : vector<1x8x64xf32> to vector<1x8x16xf32>
    "tpu.trace_start"() <{level = 10 : i32, message = "bqk,bkd->bqd"}> : () -> ()
    %cst_76 = arith.constant dense<0.000000e+00> : vector<1x8x16xf32>
    %150 = tpu.matmul %148, %149, %cst_76 {dimension_numbers = #tpu.dot_dimension_numbers<[2], [1], [1], [2], [0, 0, 0, 1, 1, 2], [0], [0]>} : vector<1x8x8xf32>, vector<1x8x16xf32>, vector<1x8x16xf32> -> vector<1x8x16xf32>
    "tpu.trace_stop"() : () -> ()
    %151 = tpu.concatenate %108, %122, %136, %150 in 2 : vector<1x8x16xf32>, vector<1x8x16xf32>, vector<1x8x16xf32>, vector<1x8x16xf32> -> vector<1x8x64xf32>
    %152 = vector.shape_cast %151 : vector<1x8x64xf32> to vector<8x64xf32>
    %cst_77 = arith.constant dense<0.000000e+00> : vector<8x64xf32>
    %153 = tpu.matmul %152, %10, %cst_77 {dimension_numbers = #tpu.dot_dimension_numbers<[1], [0], [0], [1], [0, 0, 1, 1], [], []>} : vector<8x64xf32>, vector<64x64xf32>, vector<8x64xf32> -> vector<8x64xf32>
    %154 = vector.broadcast %11 : vector<1x64xf32> to vector<8x64xf32>
    %155 = arith.addf %153, %154 : vector<8x64xf32>
    %156 = arith.addf %85, %155 : vector<8x64xf32>
    %cst_78 = arith.constant dense<0.000000e+00> : vector<8xf32>
    %157 = vector.multi_reduction <add>, %156, %cst_78 [1] : vector<8x64xf32> to vector<8xf32>
    %158 = vector.shape_cast %157 : vector<8xf32> to vector<8x1xf32>
    %cst_79 = arith.constant 6.400000e+01 : f32
    %159 = vector.broadcast %cst_79 : f32 to vector<8x1xf32>
    %160 = arith.divf %158, %159 : vector<8x1xf32>
    %161 = vector.broadcast %160 : vector<8x1xf32> to vector<8x64xf32>
    %162 = arith.subf %156, %161 : vector<8x64xf32>
    %163 = arith.mulf %162, %162 : vector<8x64xf32>
    %cst_80 = arith.constant dense<0.000000e+00> : vector<8xf32>
    %164 = vector.multi_reduction <add>, %163, %cst_80 [1] : vector<8x64xf32> to vector<8xf32>
    %165 = vector.shape_cast %164 : vector<8xf32> to vector<8x1xf32>
    %cst_81 = arith.constant 6.400000e+01 : f32
    %166 = vector.broadcast %cst_81 : f32 to vector<8x1xf32>
    %167 = arith.divf %165, %166 : vector<8x1xf32>
    %168 = vector.broadcast %160 : vector<8x1xf32> to vector<8x64xf32>
    %169 = arith.subf %156, %168 : vector<8x64xf32>
    %cst_82 = arith.constant 9.99999974E-6 : f32
    %170 = vector.broadcast %cst_82 : f32 to vector<8x1xf32>
    %171 = arith.addf %167, %170 : vector<8x1xf32>
    %172 = math.rsqrt %171 : vector<8x1xf32>
    %173 = vector.broadcast %172 : vector<8x1xf32> to vector<8x64xf32>
    %174 = arith.mulf %169, %173 : vector<8x64xf32>
    %175 = arith.mulf %174, %25 : vector<8x64xf32>
    %176 = arith.addf %175, %27 : vector<8x64xf32>
    %cst_83 = arith.constant dense<0.000000e+00> : vector<8x128xf32>
    %177 = tpu.matmul %176, %12, %cst_83 {dimension_numbers = #tpu.dot_dimension_numbers<[1], [0], [0], [1], [0, 0, 1, 1], [], []>} : vector<8x64xf32>, vector<64x128xf32>, vector<8x128xf32> -> vector<8x128xf32>
    %178 = vector.broadcast %13 : vector<1x128xf32> to vector<8x128xf32>
    %179 = arith.addf %177, %178 : vector<8x128xf32>
    %cst_84 = arith.constant 0.000000e+00 : f32
    %180 = vector.broadcast %cst_84 : f32 to vector<8x128xf32>
    %181 = arith.maximumf %179, %180 : vector<8x128xf32>
    %cst_85 = arith.constant dense<0.000000e+00> : vector<8x64xf32>
    %182 = tpu.matmul %181, %14, %cst_85 {dimension_numbers = #tpu.dot_dimension_numbers<[1], [0], [0], [1], [0, 0, 1, 1], [], []>} : vector<8x128xf32>, vector<128x64xf32>, vector<8x64xf32> -> vector<8x64xf32>
    %183 = vector.broadcast %15 : vector<1x64xf32> to vector<8x64xf32>
    %184 = arith.addf %182, %183 : vector<8x64xf32>
    %185 = arith.addf %184, %176 : vector<8x64xf32>
    %cst_86 = arith.constant dense<0.000000e+00> : vector<8xf32>
    %186 = vector.multi_reduction <add>, %185, %cst_86 [1] : vector<8x64xf32> to vector<8xf32>
    %187 = vector.shape_cast %186 : vector<8xf32> to vector<8x1xf32>
    %cst_87 = arith.constant 6.400000e+01 : f32
    %188 = vector.broadcast %cst_87 : f32 to vector<8x1xf32>
    %189 = arith.divf %187, %188 : vector<8x1xf32>
    %190 = vector.broadcast %189 : vector<8x1xf32> to vector<8x64xf32>
    %191 = arith.subf %185, %190 : vector<8x64xf32>
    %192 = arith.mulf %191, %191 : vector<8x64xf32>
    %cst_88 = arith.constant dense<0.000000e+00> : vector<8xf32>
    %193 = vector.multi_reduction <add>, %192, %cst_88 [1] : vector<8x64xf32> to vector<8xf32>
    %194 = vector.shape_cast %193 : vector<8xf32> to vector<8x1xf32>
    %cst_89 = arith.constant 6.400000e+01 : f32
    %195 = vector.broadcast %cst_89 : f32 to vector<8x1xf32>
    %196 = arith.divf %194, %195 : vector<8x1xf32>
    %197 = vector.broadcast %189 : vector<8x1xf32> to vector<8x64xf32>
    %198 = arith.subf %185, %197 : vector<8x64xf32>
    %cst_90 = arith.constant 9.99999974E-6 : f32
    %199 = vector.broadcast %cst_90 : f32 to vector<8x1xf32>
    %200 = arith.addf %196, %199 : vector<8x1xf32>
    %201 = math.rsqrt %200 : vector<8x1xf32>
    %202 = vector.broadcast %201 : vector<8x1xf32> to vector<8x64xf32>
    %203 = arith.mulf %198, %202 : vector<8x64xf32>
    %204 = arith.mulf %203, %25 : vector<8x64xf32>
    %205 = arith.addf %204, %27 : vector<8x64xf32>
    %cst_91 = arith.constant dense<0.000000e+00> : vector<8x64xf32>
    %206 = tpu.matmul %205, %7, %cst_91 {dimension_numbers = #tpu.dot_dimension_numbers<[1], [0], [0], [1], [0, 0, 1, 1], [], []>} : vector<8x64xf32>, vector<64x64xf32>, vector<8x64xf32> -> vector<8x64xf32>
    %207 = vector.shape_cast %206 : vector<8x64xf32> to vector<1x8x64xf32>
    "tpu.trace_start"() <{level = 10 : i32, message = "bks,bns->bkn"}> : () -> ()
    %cst_92 = arith.constant dense<0.000000e+00> : vector<1x8x64xf32>
    %208 = tpu.matmul %207, %63, %cst_92 {dimension_numbers = #tpu.dot_dimension_numbers<[2], [2], [1], [1], [0, 0, 0, 1, 1, 1], [0], [0]>} : vector<1x8x64xf32>, vector<1x64x64xf32>, vector<1x8x64xf32> -> vector<1x8x64xf32>
    "tpu.trace_stop"() : () -> ()
    %cst_93 = arith.constant 1.250000e-01 : f32
    %209 = vector.broadcast %cst_93 : f32 to vector<1x8x64xf32>
    %210 = arith.mulf %209, %208 : vector<1x8x64xf32>
    %cst_94 = arith.constant dense<0xFF800000> : vector<1x64xf32>
    %211 = vector.multi_reduction <maximumf>, %210, %cst_94 [1] : vector<1x8x64xf32> to vector<1x64xf32>
    %212 = vector.shape_cast %211 : vector<1x64xf32> to vector<1x1x64xf32>
    %213 = vector.broadcast %212 : vector<1x1x64xf32> to vector<1x8x64xf32>
    %214 = arith.subf %210, %213 : vector<1x8x64xf32>
    %215 = math.exp %214 : vector<1x8x64xf32>
    %cst_95 = arith.constant dense<0.000000e+00> : vector<1x64xf32>
    %216 = vector.multi_reduction <add>, %215, %cst_95 [1] : vector<1x8x64xf32> to vector<1x64xf32>
    %217 = vector.shape_cast %216 : vector<1x64xf32> to vector<1x1x64xf32>
    %218 = vector.broadcast %217 : vector<1x1x64xf32> to vector<1x8x64xf32>
    %219 = arith.divf %215, %218 : vector<1x8x64xf32>
    %cst_96 = arith.constant 9.99999993E-9 : f32
    %220 = vector.broadcast %cst_96 : f32 to vector<1x8x64xf32>
    %221 = arith.addf %219, %220 : vector<1x8x64xf32>
    %cst_97 = arith.constant dense<0.000000e+00> : vector<1x8xf32>
    %222 = vector.multi_reduction <add>, %221, %cst_97 [2] : vector<1x8x64xf32> to vector<1x8xf32>
    %223 = vector.shape_cast %222 : vector<1x8xf32> to vector<1x8x1xf32>
    %224 = vector.broadcast %223 : vector<1x8x1xf32> to vector<1x8x64xf32>
    %225 = arith.divf %221, %224 : vector<1x8x64xf32>
    "tpu.trace_start"() <{level = 10 : i32, message = "bkn,bns->bks"}> : () -> ()
    %cst_98 = arith.constant dense<0.000000e+00> : vector<1x8x64xf32>
    %226 = tpu.matmul %225, %64, %cst_98 {dimension_numbers = #tpu.dot_dimension_numbers<[2], [1], [1], [2], [0, 0, 0, 1, 1, 2], [0], [0]>} : vector<1x8x64xf32>, vector<1x64x64xf32>, vector<1x8x64xf32> -> vector<1x8x64xf32>
    "tpu.trace_stop"() : () -> ()
    %227 = vector.shape_cast %226 : vector<1x8x64xf32> to vector<8x64xf32>
    %228 = tpu.concatenate %227, %185 in 1 : vector<8x64xf32>, vector<8x64xf32> -> vector<8x128xf32>
    %cst_99 = arith.constant dense<0.000000e+00> : vector<8x384xf32>
    %229 = tpu.matmul %228, %16, %cst_99 {dimension_numbers = #tpu.dot_dimension_numbers<[1], [0], [0], [1], [0, 0, 1, 1], [], []>} : vector<8x128xf32>, vector<128x384xf32>, vector<8x384xf32> -> vector<8x384xf32>
    %230 = arith.addf %229, %33 : vector<8x384xf32>
    %231 = vector.extract_strided_slice %230 {offsets = [0, 0], sizes = [8, 192], strides = [1, 1]} : vector<8x384xf32> to vector<8x192xf32>
    %232 = vector.extract_strided_slice %230 {offsets = [0, 192], sizes = [8, 192], strides = [1, 1]} : vector<8x384xf32> to vector<8x192xf32>
    %233 = vector.extract_strided_slice %231 {offsets = [0, 0], sizes = [8, 64], strides = [1, 1]} : vector<8x192xf32> to vector<8x64xf32>
    %234 = vector.extract_strided_slice %232 {offsets = [0, 0], sizes = [8, 64], strides = [1, 1]} : vector<8x192xf32> to vector<8x64xf32>
    %235 = arith.addf %233, %234 : vector<8x64xf32>
    %236 = arith.negf %235 : vector<8x64xf32>
    %237 = math.exp %236 : vector<8x64xf32>
    %cst_100 = arith.constant 1.000000e+00 : f32
    %238 = vector.broadcast %cst_100 : f32 to vector<8x64xf32>
    %239 = arith.addf %238, %237 : vector<8x64xf32>
    %240 = arith.divf %238, %239 : vector<8x64xf32>
    %241 = vector.extract_strided_slice %231 {offsets = [0, 64], sizes = [8, 64], strides = [1, 1]} : vector<8x192xf32> to vector<8x64xf32>
    %242 = vector.extract_strided_slice %232 {offsets = [0, 64], sizes = [8, 64], strides = [1, 1]} : vector<8x192xf32> to vector<8x64xf32>
    %243 = arith.addf %241, %242 : vector<8x64xf32>
    %244 = arith.negf %243 : vector<8x64xf32>
    %245 = math.exp %244 : vector<8x64xf32>
    %cst_101 = arith.constant 1.000000e+00 : f32
    %246 = vector.broadcast %cst_101 : f32 to vector<8x64xf32>
    %247 = arith.addf %246, %245 : vector<8x64xf32>
    %248 = arith.divf %246, %247 : vector<8x64xf32>
    %249 = vector.extract_strided_slice %231 {offsets = [0, 128], sizes = [8, 64], strides = [1, 1]} : vector<8x192xf32> to vector<8x64xf32>
    %250 = vector.extract_strided_slice %232 {offsets = [0, 128], sizes = [8, 64], strides = [1, 1]} : vector<8x192xf32> to vector<8x64xf32>
    %251 = arith.mulf %240, %250 : vector<8x64xf32>
    %252 = arith.addf %249, %251 : vector<8x64xf32>
    %253 = math.tanh %252 : vector<8x64xf32>
    %cst_102 = arith.constant 1.000000e+00 : f32
    %254 = vector.broadcast %cst_102 : f32 to vector<8x64xf32>
    %255 = arith.subf %254, %248 : vector<8x64xf32>
    %256 = arith.mulf %255, %253 : vector<8x64xf32>
    %257 = arith.mulf %248, %185 : vector<8x64xf32>
    %258 = arith.addf %256, %257 : vector<8x64xf32>
    %cst_103 = arith.constant dense<0.000000e+00> : vector<8xf32>
    %259 = vector.multi_reduction <add>, %258, %cst_103 [1] : vector<8x64xf32> to vector<8xf32>
    %260 = vector.shape_cast %259 : vector<8xf32> to vector<8x1xf32>
    %cst_104 = arith.constant 6.400000e+01 : f32
    %261 = vector.broadcast %cst_104 : f32 to vector<8x1xf32>
    %262 = arith.divf %260, %261 : vector<8x1xf32>
    %263 = vector.broadcast %262 : vector<8x1xf32> to vector<8x64xf32>
    %264 = arith.subf %258, %263 : vector<8x64xf32>
    %265 = arith.mulf %264, %264 : vector<8x64xf32>
    %cst_105 = arith.constant dense<0.000000e+00> : vector<8xf32>
    %266 = vector.multi_reduction <add>, %265, %cst_105 [1] : vector<8x64xf32> to vector<8xf32>
    %267 = vector.shape_cast %266 : vector<8xf32> to vector<8x1xf32>
    %cst_106 = arith.constant 6.400000e+01 : f32
    %268 = vector.broadcast %cst_106 : f32 to vector<8x1xf32>
    %269 = arith.divf %267, %268 : vector<8x1xf32>
    %270 = vector.broadcast %262 : vector<8x1xf32> to vector<8x64xf32>
    %271 = arith.subf %258, %270 : vector<8x64xf32>
    %cst_107 = arith.constant 9.99999974E-6 : f32
    %272 = vector.broadcast %cst_107 : f32 to vector<8x1xf32>
    %273 = arith.addf %269, %272 : vector<8x1xf32>
    %274 = math.rsqrt %273 : vector<8x1xf32>
    %275 = vector.broadcast %274 : vector<8x1xf32> to vector<8x64xf32>
    %276 = arith.mulf %271, %275 : vector<8x64xf32>
    %277 = arith.mulf %276, %29 : vector<8x64xf32>
    %278 = arith.addf %277, %31 : vector<8x64xf32>
    %cst_108 = arith.constant dense<0.000000e+00> : vector<8x128xf32>
    %279 = tpu.matmul %278, %18, %cst_108 {dimension_numbers = #tpu.dot_dimension_numbers<[1], [0], [0], [1], [0, 0, 1, 1], [], []>} : vector<8x64xf32>, vector<64x128xf32>, vector<8x128xf32> -> vector<8x128xf32>
    %280 = arith.addf %279, %35 : vector<8x128xf32>
    %cst_109 = arith.constant 0.000000e+00 : f32
    %281 = vector.broadcast %cst_109 : f32 to vector<8x128xf32>
    %282 = arith.maximumf %280, %281 : vector<8x128xf32>
    %cst_110 = arith.constant dense<0.000000e+00> : vector<8x64xf32>
    %283 = tpu.matmul %282, %20, %cst_110 {dimension_numbers = #tpu.dot_dimension_numbers<[1], [0], [0], [1], [0, 0, 1, 1], [], []>} : vector<8x128xf32>, vector<128x64xf32>, vector<8x64xf32> -> vector<8x64xf32>
    %284 = arith.addf %258, %283 : vector<8x64xf32>
    %285 = arith.addf %284, %37 : vector<8x64xf32>
    %cst_111 = arith.constant dense<0.000000e+00> : vector<8xf32>
    %286 = vector.multi_reduction <add>, %285, %cst_111 [1] : vector<8x64xf32> to vector<8xf32>
    %287 = vector.shape_cast %286 : vector<8xf32> to vector<8x1xf32>
    %cst_112 = arith.constant 6.400000e+01 : f32
    %288 = vector.broadcast %cst_112 : f32 to vector<8x1xf32>
    %289 = arith.divf %287, %288 : vector<8x1xf32>
    %290 = vector.broadcast %289 : vector<8x1xf32> to vector<8x64xf32>
    %291 = arith.subf %285, %290 : vector<8x64xf32>
    %292 = arith.mulf %291, %291 : vector<8x64xf32>
    %cst_113 = arith.constant dense<0.000000e+00> : vector<8xf32>
    %293 = vector.multi_reduction <add>, %292, %cst_113 [1] : vector<8x64xf32> to vector<8xf32>
    %294 = vector.shape_cast %293 : vector<8xf32> to vector<8x1xf32>
    %cst_114 = arith.constant 6.400000e+01 : f32
    %295 = vector.broadcast %cst_114 : f32 to vector<8x1xf32>
    %296 = arith.divf %294, %295 : vector<8x1xf32>
    %297 = vector.broadcast %289 : vector<8x1xf32> to vector<8x64xf32>
    %298 = arith.subf %285, %297 : vector<8x64xf32>
    %cst_115 = arith.constant 9.99999974E-6 : f32
    %299 = vector.broadcast %cst_115 : f32 to vector<8x1xf32>
    %300 = arith.addf %296, %299 : vector<8x1xf32>
    %301 = math.rsqrt %300 : vector<8x1xf32>
    %302 = vector.broadcast %301 : vector<8x1xf32> to vector<8x64xf32>
    %303 = arith.mulf %298, %302 : vector<8x64xf32>
    %304 = arith.mulf %303, %25 : vector<8x64xf32>
    %305 = arith.addf %304, %27 : vector<8x64xf32>
    %cst_116 = arith.constant dense<0.000000e+00> : vector<8x64xf32>
    %306 = tpu.matmul %305, %7, %cst_116 {dimension_numbers = #tpu.dot_dimension_numbers<[1], [0], [0], [1], [0, 0, 1, 1], [], []>} : vector<8x64xf32>, vector<64x64xf32>, vector<8x64xf32> -> vector<8x64xf32>
    %307 = vector.shape_cast %306 : vector<8x64xf32> to vector<1x8x64xf32>
    "tpu.trace_start"() <{level = 10 : i32, message = "bks,bns->bkn"}> : () -> ()
    %cst_117 = arith.constant dense<0.000000e+00> : vector<1x8x64xf32>
    %308 = tpu.matmul %307, %63, %cst_117 {dimension_numbers = #tpu.dot_dimension_numbers<[2], [2], [1], [1], [0, 0, 0, 1, 1, 1], [0], [0]>} : vector<1x8x64xf32>, vector<1x64x64xf32>, vector<1x8x64xf32> -> vector<1x8x64xf32>
    "tpu.trace_stop"() : () -> ()
    %cst_118 = arith.constant 1.250000e-01 : f32
    %309 = vector.broadcast %cst_118 : f32 to vector<1x8x64xf32>
    %310 = arith.mulf %309, %308 : vector<1x8x64xf32>
    %cst_119 = arith.constant dense<0xFF800000> : vector<1x64xf32>
    %311 = vector.multi_reduction <maximumf>, %310, %cst_119 [1] : vector<1x8x64xf32> to vector<1x64xf32>
    %312 = vector.shape_cast %311 : vector<1x64xf32> to vector<1x1x64xf32>
    %313 = vector.broadcast %312 : vector<1x1x64xf32> to vector<1x8x64xf32>
    %314 = arith.subf %310, %313 : vector<1x8x64xf32>
    %315 = math.exp %314 : vector<1x8x64xf32>
    %cst_120 = arith.constant dense<0.000000e+00> : vector<1x64xf32>
    %316 = vector.multi_reduction <add>, %315, %cst_120 [1] : vector<1x8x64xf32> to vector<1x64xf32>
    %317 = vector.shape_cast %316 : vector<1x64xf32> to vector<1x1x64xf32>
    %318 = vector.broadcast %317 : vector<1x1x64xf32> to vector<1x8x64xf32>
    %319 = arith.divf %315, %318 : vector<1x8x64xf32>
    %cst_121 = arith.constant 9.99999993E-9 : f32
    %320 = vector.broadcast %cst_121 : f32 to vector<1x8x64xf32>
    %321 = arith.addf %319, %320 : vector<1x8x64xf32>
    %cst_122 = arith.constant dense<0.000000e+00> : vector<1x8xf32>
    %322 = vector.multi_reduction <add>, %321, %cst_122 [2] : vector<1x8x64xf32> to vector<1x8xf32>
    %323 = vector.shape_cast %322 : vector<1x8xf32> to vector<1x8x1xf32>
    %324 = vector.broadcast %323 : vector<1x8x1xf32> to vector<1x8x64xf32>
    %325 = arith.divf %321, %324 : vector<1x8x64xf32>
    "tpu.trace_start"() <{level = 10 : i32, message = "bkn,bns->bks"}> : () -> ()
    %cst_123 = arith.constant dense<0.000000e+00> : vector<1x8x64xf32>
    %326 = tpu.matmul %325, %64, %cst_123 {dimension_numbers = #tpu.dot_dimension_numbers<[2], [1], [1], [2], [0, 0, 0, 1, 1, 2], [0], [0]>} : vector<1x8x64xf32>, vector<1x64x64xf32>, vector<1x8x64xf32> -> vector<1x8x64xf32>
    "tpu.trace_stop"() : () -> ()
    %327 = vector.shape_cast %326 : vector<1x8x64xf32> to vector<8x64xf32>
    %328 = tpu.concatenate %327, %285 in 1 : vector<8x64xf32>, vector<8x64xf32> -> vector<8x128xf32>
    %cst_124 = arith.constant dense<0.000000e+00> : vector<8x384xf32>
    %329 = tpu.matmul %328, %16, %cst_124 {dimension_numbers = #tpu.dot_dimension_numbers<[1], [0], [0], [1], [0, 0, 1, 1], [], []>} : vector<8x128xf32>, vector<128x384xf32>, vector<8x384xf32> -> vector<8x384xf32>
    %330 = arith.addf %329, %33 : vector<8x384xf32>
    %331 = vector.extract_strided_slice %330 {offsets = [0, 0], sizes = [8, 192], strides = [1, 1]} : vector<8x384xf32> to vector<8x192xf32>
    %332 = vector.extract_strided_slice %330 {offsets = [0, 192], sizes = [8, 192], strides = [1, 1]} : vector<8x384xf32> to vector<8x192xf32>
    %333 = vector.extract_strided_slice %331 {offsets = [0, 0], sizes = [8, 64], strides = [1, 1]} : vector<8x192xf32> to vector<8x64xf32>
    %334 = vector.extract_strided_slice %332 {offsets = [0, 0], sizes = [8, 64], strides = [1, 1]} : vector<8x192xf32> to vector<8x64xf32>
    %335 = arith.addf %333, %334 : vector<8x64xf32>
    %336 = arith.negf %335 : vector<8x64xf32>
    %337 = math.exp %336 : vector<8x64xf32>
    %cst_125 = arith.constant 1.000000e+00 : f32
    %338 = vector.broadcast %cst_125 : f32 to vector<8x64xf32>
    %339 = arith.addf %338, %337 : vector<8x64xf32>
    %340 = arith.divf %338, %339 : vector<8x64xf32>
    %341 = vector.extract_strided_slice %331 {offsets = [0, 64], sizes = [8, 64], strides = [1, 1]} : vector<8x192xf32> to vector<8x64xf32>
    %342 = vector.extract_strided_slice %332 {offsets = [0, 64], sizes = [8, 64], strides = [1, 1]} : vector<8x192xf32> to vector<8x64xf32>
    %343 = arith.addf %341, %342 : vector<8x64xf32>
    %344 = arith.negf %343 : vector<8x64xf32>
    %345 = math.exp %344 : vector<8x64xf32>
    %cst_126 = arith.constant 1.000000e+00 : f32
    %346 = vector.broadcast %cst_126 : f32 to vector<8x64xf32>
    %347 = arith.addf %346, %345 : vector<8x64xf32>
    %348 = arith.divf %346, %347 : vector<8x64xf32>
    %349 = vector.extract_strided_slice %331 {offsets = [0, 128], sizes = [8, 64], strides = [1, 1]} : vector<8x192xf32> to vector<8x64xf32>
    %350 = vector.extract_strided_slice %332 {offsets = [0, 128], sizes = [8, 64], strides = [1, 1]} : vector<8x192xf32> to vector<8x64xf32>
    %351 = arith.mulf %340, %350 : vector<8x64xf32>
    %352 = arith.addf %349, %351 : vector<8x64xf32>
    %353 = math.tanh %352 : vector<8x64xf32>
    %cst_127 = arith.constant 1.000000e+00 : f32
    %354 = vector.broadcast %cst_127 : f32 to vector<8x64xf32>
    %355 = arith.subf %354, %348 : vector<8x64xf32>
    %356 = arith.mulf %355, %353 : vector<8x64xf32>
    %357 = arith.mulf %348, %285 : vector<8x64xf32>
    %358 = arith.addf %356, %357 : vector<8x64xf32>
    %cst_128 = arith.constant dense<0.000000e+00> : vector<8xf32>
    %359 = vector.multi_reduction <add>, %358, %cst_128 [1] : vector<8x64xf32> to vector<8xf32>
    %360 = vector.shape_cast %359 : vector<8xf32> to vector<8x1xf32>
    %cst_129 = arith.constant 6.400000e+01 : f32
    %361 = vector.broadcast %cst_129 : f32 to vector<8x1xf32>
    %362 = arith.divf %360, %361 : vector<8x1xf32>
    %363 = vector.broadcast %362 : vector<8x1xf32> to vector<8x64xf32>
    %364 = arith.subf %358, %363 : vector<8x64xf32>
    %365 = arith.mulf %364, %364 : vector<8x64xf32>
    %cst_130 = arith.constant dense<0.000000e+00> : vector<8xf32>
    %366 = vector.multi_reduction <add>, %365, %cst_130 [1] : vector<8x64xf32> to vector<8xf32>
    %367 = vector.shape_cast %366 : vector<8xf32> to vector<8x1xf32>
    %cst_131 = arith.constant 6.400000e+01 : f32
    %368 = vector.broadcast %cst_131 : f32 to vector<8x1xf32>
    %369 = arith.divf %367, %368 : vector<8x1xf32>
    %370 = vector.broadcast %362 : vector<8x1xf32> to vector<8x64xf32>
    %371 = arith.subf %358, %370 : vector<8x64xf32>
    %cst_132 = arith.constant 9.99999974E-6 : f32
    %372 = vector.broadcast %cst_132 : f32 to vector<8x1xf32>
    %373 = arith.addf %369, %372 : vector<8x1xf32>
    %374 = math.rsqrt %373 : vector<8x1xf32>
    %375 = vector.broadcast %374 : vector<8x1xf32> to vector<8x64xf32>
    %376 = arith.mulf %371, %375 : vector<8x64xf32>
    %377 = arith.mulf %376, %29 : vector<8x64xf32>
    %378 = arith.addf %377, %31 : vector<8x64xf32>
    %cst_133 = arith.constant dense<0.000000e+00> : vector<8x128xf32>
    %379 = tpu.matmul %378, %18, %cst_133 {dimension_numbers = #tpu.dot_dimension_numbers<[1], [0], [0], [1], [0, 0, 1, 1], [], []>} : vector<8x64xf32>, vector<64x128xf32>, vector<8x128xf32> -> vector<8x128xf32>
    %380 = arith.addf %379, %35 : vector<8x128xf32>
    %cst_134 = arith.constant 0.000000e+00 : f32
    %381 = vector.broadcast %cst_134 : f32 to vector<8x128xf32>
    %382 = arith.maximumf %380, %381 : vector<8x128xf32>
    %cst_135 = arith.constant dense<0.000000e+00> : vector<8x64xf32>
    %383 = tpu.matmul %382, %20, %cst_135 {dimension_numbers = #tpu.dot_dimension_numbers<[1], [0], [0], [1], [0, 0, 1, 1], [], []>} : vector<8x128xf32>, vector<128x64xf32>, vector<8x64xf32> -> vector<8x64xf32>
    %384 = arith.addf %358, %383 : vector<8x64xf32>
    %385 = arith.addf %384, %37 : vector<8x64xf32>
    %386 = vector.shape_cast %385 : vector<8x64xf32> to vector<1x8x64xf32>
    %c0_136 = arith.constant 0 : index
    %c0_137 = arith.constant 0 : index
    %c0_138 = arith.constant 0 : index
    %387 = vector.load %arg25[%c0_136, %c0_137, %c0_138] : memref<1x8x64xf32, #tpu.memory_space<vmem>>, vector<1x8x64xf32>
    tpu.vector_store %arg25[%c0_136, %c0_137, %c0_138], %386 {strides = array<i32>} : memref<1x8x64xf32, #tpu.memory_space<vmem>>, vector<1x8x64xf32>,
    return
  }
  func.func @transform_0(%arg0: i32) -> (i32, i32, i32) {
    %c0_i32 = arith.constant 0 : i32
    %c0_i32_0 = arith.constant 0 : i32
    %c0_i32_1 = arith.constant 0 : i32
    return %arg0, %c0_i32, %c0_i32_0 : i32, i32, i32
  }
  func.func @transform_1(%arg0: i32) -> (i32, i32, i32) {
    %c0_i32 = arith.constant 0 : i32
    %c0_i32_0 = arith.constant 0 : i32
    %c0_i32_1 = arith.constant 0 : i32
    return %arg0, %c0_i32, %c0_i32_0 : i32, i32, i32
  }
  func.func @transform_2(%arg0: i32) -> (i32, i32) {
    %c0_i32 = arith.constant 0 : i32
    %c0_i32_0 = arith.constant 0 : i32
    %c0_i32_1 = arith.constant 0 : i32
    return %c0_i32, %c0_i32_0 : i32, i32
  }
  func.func @transform_3(%arg0: i32) -> (i32, i32) {
    %c0_i32 = arith.constant 0 : i32
    %c0_i32_0 = arith.constant 0 : i32
    %c0_i32_1 = arith.constant 0 : i32
    return %c0_i32, %c0_i32_0 : i32, i32
  }
  func.func @transform_4(%arg0: i32) -> (i32, i32) {
    %c0_i32 = arith.constant 0 : i32
    %c0_i32_0 = arith.constant 0 : i32
    %c0_i32_1 = arith.constant 0 : i32
    return %c0_i32, %c0_i32_0 : i32, i32
  }
  func.func @transform_5(%arg0: i32) -> (i32, i32) {
    %c0_i32 = arith.constant 0 : i32
    %c0_i32_0 = arith.constant 0 : i32
    %c0_i32_1 = arith.constant 0 : i32
    return %c0_i32, %c0_i32_0 : i32, i32
  }
  func.func @transform_6(%arg0: i32) -> (i32, i32) {
    %c0_i32 = arith.constant 0 : i32
    %c0_i32_0 = arith.constant 0 : i32
    %c0_i32_1 = arith.constant 0 : i32
    return %c0_i32, %c0_i32_0 : i32, i32
  }
  func.func @transform_7(%arg0: i32) -> (i32, i32) {
    %c0_i32 = arith.constant 0 : i32
    %c0_i32_0 = arith.constant 0 : i32
    %c0_i32_1 = arith.constant 0 : i32
    return %c0_i32, %c0_i32_0 : i32, i32
  }
  func.func @transform_8(%arg0: i32) -> (i32, i32) {
    %c0_i32 = arith.constant 0 : i32
    %c0_i32_0 = arith.constant 0 : i32
    %c0_i32_1 = arith.constant 0 : i32
    return %c0_i32, %c0_i32_0 : i32, i32
  }
  func.func @transform_9(%arg0: i32) -> (i32, i32) {
    %c0_i32 = arith.constant 0 : i32
    %c0_i32_0 = arith.constant 0 : i32
    %c0_i32_1 = arith.constant 0 : i32
    return %c0_i32, %c0_i32_0 : i32, i32
  }
  func.func @transform_10(%arg0: i32) -> (i32, i32) {
    %c0_i32 = arith.constant 0 : i32
    %c0_i32_0 = arith.constant 0 : i32
    %c0_i32_1 = arith.constant 0 : i32
    return %c0_i32, %c0_i32_0 : i32, i32
  }
  func.func @transform_11(%arg0: i32) -> (i32, i32) {
    %c0_i32 = arith.constant 0 : i32
    %c0_i32_0 = arith.constant 0 : i32
    %c0_i32_1 = arith.constant 0 : i32
    return %c0_i32, %c0_i32_0 : i32, i32
  }
  func.func @transform_12(%arg0: i32) -> (i32, i32) {
    %c0_i32 = arith.constant 0 : i32
    %c0_i32_0 = arith.constant 0 : i32
    %c0_i32_1 = arith.constant 0 : i32
    return %c0_i32, %c0_i32_0 : i32, i32
  }
  func.func @transform_13(%arg0: i32) -> (i32, i32) {
    %c0_i32 = arith.constant 0 : i32
    %c0_i32_0 = arith.constant 0 : i32
    %c0_i32_1 = arith.constant 0 : i32
    return %c0_i32, %c0_i32_0 : i32, i32
  }
  func.func @transform_14(%arg0: i32) -> (i32, i32) {
    %c0_i32 = arith.constant 0 : i32
    %c0_i32_0 = arith.constant 0 : i32
    %c0_i32_1 = arith.constant 0 : i32
    return %c0_i32, %c0_i32_0 : i32, i32
  }
  func.func @transform_15(%arg0: i32) -> (i32, i32) {
    %c0_i32 = arith.constant 0 : i32
    %c0_i32_0 = arith.constant 0 : i32
    %c0_i32_1 = arith.constant 0 : i32
    return %c0_i32, %c0_i32_0 : i32, i32
  }
  func.func @transform_16(%arg0: i32) -> (i32, i32) {
    %c0_i32 = arith.constant 0 : i32
    %c0_i32_0 = arith.constant 0 : i32
    %c0_i32_1 = arith.constant 0 : i32
    return %c0_i32, %c0_i32_0 : i32, i32
  }
  func.func @transform_17(%arg0: i32) -> (i32, i32) {
    %c0_i32 = arith.constant 0 : i32
    %c0_i32_0 = arith.constant 0 : i32
    %c0_i32_1 = arith.constant 0 : i32
    return %c0_i32, %c0_i32_0 : i32, i32
  }
  func.func @transform_18(%arg0: i32) -> (i32, i32) {
    %c0_i32 = arith.constant 0 : i32
    %c0_i32_0 = arith.constant 0 : i32
    %c0_i32_1 = arith.constant 0 : i32
    return %c0_i32, %c0_i32_0 : i32, i32
  }
  func.func @transform_19(%arg0: i32) -> (i32, i32) {
    %c0_i32 = arith.constant 0 : i32
    %c0_i32_0 = arith.constant 0 : i32
    %c0_i32_1 = arith.constant 0 : i32
    return %c0_i32, %c0_i32_0 : i32, i32
  }
  func.func @transform_20(%arg0: i32) -> (i32, i32) {
    %c0_i32 = arith.constant 0 : i32
    %c0_i32_0 = arith.constant 0 : i32
    %c0_i32_1 = arith.constant 0 : i32
    return %c0_i32, %c0_i32_0 : i32, i32
  }
  func.func @transform_21(%arg0: i32) -> (i32, i32) {
    %c0_i32 = arith.constant 0 : i32
    %c0_i32_0 = arith.constant 0 : i32
    %c0_i32_1 = arith.constant 0 : i32
    return %c0_i32, %c0_i32_0 : i32, i32
  }
  func.func @transform_22(%arg0: i32) -> (i32, i32) {
    %c0_i32 = arith.constant 0 : i32
    %c0_i32_0 = arith.constant 0 : i32
    %c0_i32_1 = arith.constant 0 : i32
    return %c0_i32, %c0_i32_0 : i32, i32
  }
  func.func @transform_23(%arg0: i32) -> (i32, i32) {
    %c0_i32 = arith.constant 0 : i32
    %c0_i32_0 = arith.constant 0 : i32
    %c0_i32_1 = arith.constant 0 : i32
    return %c0_i32, %c0_i32_0 : i32, i32
  }
  func.func @transform_24(%arg0: i32) -> (i32, i32, i32) {
    %c0_i32 = arith.constant 0 : i32
    %c0_i32_0 = arith.constant 0 : i32
    %c0_i32_1 = arith.constant 0 : i32
    return %arg0, %c0_i32, %c0_i32_0 : i32, i32, i32
  }
}

</mosaic_0001>

<llo_original>
// kernel: tpu_custom_call.1
$region0: #{tpu_custom_call.1}
  #allocation0 [shape = 'u32[]', space=smem, size = 0x4, offset = 0x4, fixed_abs, tag = 'smem constant byte address 0x4 - core index']
  #allocation1 [shape = 'u32[144,128]{1,0:T(1,128)}', space=vmem, size = 0x12000, scoped, tag = 'internal scratch']
  %s0 = inlined_call_operand.vmem [shape: f32[2,64,32], index: 0, kind: input, shape index: {}]
  %s1 = inlined_call_operand.hbm [shape: f32[2,8,64], index: 1, kind: input, shape index: {}]
  %s2 = inlined_call_operand.vmem [shape: f32[1,32], index: 2, kind: input, shape index: {}]
  %s3 = inlined_call_operand.hbm [shape: f32[1,32], index: 3, kind: input, shape index: {}]
  %s4 = inlined_call_operand.hbm [shape: f32[1,64], index: 4, kind: input, shape index: {}]
  %s5 = inlined_call_operand.hbm [shape: f32[1,64], index: 5, kind: input, shape index: {}]
  %s6 = inlined_call_operand.hbm [shape: f32[1,64], index: 6, kind: input, shape index: {}]
  %s7 = inlined_call_operand.hbm [shape: f32[1,64], index: 7, kind: input, shape index: {}]
  %s8 = inlined_call_operand.hbm [shape: f32[32,128], index: 8, kind: input, shape index: {}]
  %s9 = inlined_call_operand.vmem [shape: f32[64,64], index: 9, kind: input, shape index: {}]
  %s10 = inlined_call_operand.vmem [shape: f32[64,192], index: 10, kind: input, shape index: {}]
  %s11 = inlined_call_operand.hbm [shape: f32[1,192], index: 11, kind: input, shape index: {}]
  %s12 = inlined_call_operand.hbm [shape: f32[64,64], index: 12, kind: input, shape index: {}]
  %s13 = inlined_call_operand.hbm [shape: f32[1,64], index: 13, kind: input, shape index: {}]
  %s14 = inlined_call_operand.hbm [shape: f32[64,128], index: 14, kind: input, shape index: {}]
  %s15 = inlined_call_operand.hbm [shape: f32[1,128], index: 15, kind: input, shape index: {}]
  %s16 = inlined_call_operand.vmem [shape: f32[128,64], index: 16, kind: input, shape index: {}]
  %s17 = inlined_call_operand.hbm [shape: f32[1,64], index: 17, kind: input, shape index: {}]
  %s18 = inlined_call_operand.vmem [shape: f32[128,384], index: 18, kind: input, shape index: {}]
  %s19 = inlined_call_operand.vmem [shape: f32[1,384], index: 19, kind: input, shape index: {}]
  %s20 = inlined_call_operand.hbm [shape: f32[64,128], index: 20, kind: input, shape index: {}]
  %s21 = inlined_call_operand.vmem [shape: f32[1,128], index: 21, kind: input, shape index: {}]
  %s22 = inlined_call_operand.vmem [shape: f32[128,64], index: 22, kind: input, shape index: {}]
  %s23 = inlined_call_operand.vmem [shape: f32[1,64], index: 23, kind: input, shape index: {}]
  %s24 = inlined_call_operand.hbm [shape: f32[2,8,64], index: 24, kind: output, shape index: {}]
  %s25 = sld [smem:[#allocation0]]
  $region185: #{tpu_custom_call.1} parent=0
    _
  %s27 = ssub.s32 1, %s25
  %s28 = scalar_select 0, %s27, %s25
  $region1: #{tpu_custom_call.1} parent=0
    #allocation2 [shape = 'u8[8192]{0}', space=vmem, size = 0x2000, scoped, tag = 'input window, operand 1']
    #allocation3 [shape = 's32[2]{0}', space=sflag, size = 0x8, scoped, tag = 'scoped memory for tpu_custom_call.1']
    #allocation4 [shape = 's32[2]{0}', space=sflag, size = 0x8, scoped, tag = 'scoped memory for tpu_custom_call.1']
    #allocation5 [shape = 'u8[512]{0}', space=vmem, size = 0x400, scoped, tag = 'input window, operand 3, single buffered']
    #allocation6 [shape = 's32[1]{0}', space=sflag, size = 0x4, scoped, tag = 'scoped memory for tpu_custom_call.1']
    #allocation7 [shape = 'u8[512]{0}', space=vmem, size = 0x400, scoped, tag = 'input window, operand 4, single buffered']
    #allocation8 [shape = 'u8[512]{0}', space=vmem, size = 0x400, scoped, tag = 'input window, operand 5, single buffered']
    #allocation9 [shape = 's32[1]{0}', space=sflag, size = 0x4, scoped, tag = 'scoped memory for tpu_custom_call.1']
    #allocation10 [shape = 'u8[512]{0}', space=vmem, size = 0x400, scoped, tag = 'input window, operand 6, single buffered']
    #allocation11 [shape = 'u8[512]{0}', space=vmem, size = 0x400, scoped, tag = 'input window, operand 7, single buffered']
    #allocation12 [shape = 's32[1]{0}', space=sflag, size = 0x4, scoped, tag = 'scoped memory for tpu_custom_call.1']
    #allocation13 [shape = 'u8[16384]{0}', space=vmem, size = 0x4000, scoped, tag = 'input window, operand 8, single buffered']
    #allocation14 [shape = 'u8[1024]{0}', space=vmem, size = 0x400, scoped, tag = 'input window, operand 11, single buffered']
    #allocation15 [shape = 's32[1]{0}', space=sflag, size = 0x4, scoped, tag = 'scoped memory for tpu_custom_call.1']
    #allocation16 [shape = 'u8[32768]{0}', space=vmem, size = 0x8000, scoped, tag = 'input window, operand 12, single buffered']
    #allocation17 [shape = 'u8[512]{0}', space=vmem, size = 0x400, scoped, tag = 'input window, operand 13, single buffered']
    #allocation18 [shape = 's32[1]{0}', space=sflag, size = 0x4, scoped, tag = 'scoped memory for tpu_custom_call.1']
    #allocation19 [shape = 'u8[32768]{0}', space=vmem, size = 0x8000, scoped, tag = 'input window, operand 14, single buffered']
    #allocation20 [shape = 'u8[512]{0}', space=vmem, size = 0x400, scoped, tag = 'input window, operand 15, single buffered']
    #allocation21 [shape = 's32[1]{0}', space=sflag, size = 0x4, scoped, tag = 'scoped memory for tpu_custom_call.1']
    #allocation22 [shape = 'u8[512]{0}', space=vmem, size = 0x400, scoped, tag = 'input window, operand 17, single buffered']
    #allocation23 [shape = 'u8[32768]{0}', space=vmem, size = 0x8000, scoped, tag = 'input window, operand 20, single buffered']
    #allocation24 [shape = 's32[1]{0}', space=sflag, size = 0x4, scoped, tag = 'scoped memory for tpu_custom_call.1']
    #allocation25 [shape = 'u8[8192]{0}', space=vmem, size = 0x2000, scoped, tag = 'output window, operand 0']
    %29 = vsyncpa [#allocation3], 0
    %s30 = scalar_lea.sflag [#allocation3], 1
    %31 = vsyncpa %s30, 0
    %32 = vsyncpa [#allocation6], 0
    %33 = vsyncpa [#allocation9], 0
    %34 = vsyncpa [#allocation12], 0
    %35 = vsyncpa [#allocation15], 0
    %36 = vsyncpa [#allocation18], 0
    %37 = vsyncpa [#allocation21], 0
    %38 = vsyncpa [#allocation24], 0
    %39 = vsyncpa [#allocation4], 0
    %s40 = scalar_lea.sflag [#allocation4], 1
    %41 = vsyncpa %s40, 0
    loop: start=0, step=1, limit=4
    $region2: #{tpu_custom_call.1} parent=1 // loop_pre_header
      _
    $region3: #{tpu_custom_call.1} parent=1 // loop_header
      %s43 = sphi 0, %s47
      %p44 = scmp.ge.s32.totalorder %s43, 4
      %s53 = sphi 0, %s55
      %s56 = sphi 0, %s53
      %s57 = sphi 0, %s56
      %s73 = sphi 0, %s57
      %s79 = sphi 0, %s81
      %s82 = sphi 0, %s79
      %s83 = sphi 0, %s82
      %s99 = sphi 0, %s83
      %s103 = sphi 0, %s103
      %s105 = sphi 0, %s103
      %s106 = sphi 0, %s105
      %s120 = sphi 0, %s106
      %s124 = sphi 0, %s124
      %s126 = sphi 0, %s124
      %s127 = sphi 0, %s126
      %s141 = sphi 0, %s127
      %s145 = sphi 0, %s145
      %s147 = sphi 0, %s145
      %s148 = sphi 0, %s147
      %s162 = sphi 0, %s148
      %s166 = sphi 0, %s166
      %s168 = sphi 0, %s166
      %s169 = sphi 0, %s168
      %s183 = sphi 0, %s169
      %s187 = sphi 0, %s187
      %s189 = sphi 0, %s187
      %s190 = sphi 0, %s189
      %s204 = sphi 0, %s190
      %s208 = sphi 0, %s208
      %s210 = sphi 0, %s208
      %s211 = sphi 0, %s210
      %s225 = sphi 0, %s211
      %s229 = sphi 0, %s229
      %s231 = sphi 0, %s229
      %s232 = sphi 0, %s231
      %s246 = sphi 0, %s232
      %s250 = sphi 0, %s250
      %s252 = sphi 0, %s250
      %s253 = sphi 0, %s252
      %s267 = sphi 0, %s253
      %s271 = sphi 0, %s271
      %s273 = sphi 0, %s271
      %s274 = sphi 0, %s273
      %s288 = sphi 0, %s274
      %s292 = sphi 0, %s292
      %s294 = sphi 0, %s292
      %s295 = sphi 0, %s294
      %s309 = sphi 0, %s295
      %s313 = sphi 0, %s313
      %s315 = sphi 0, %s313
      %s316 = sphi 0, %s315
      %s330 = sphi 0, %s316
      %s334 = sphi 0, %s334
      %s336 = sphi 0, %s334
      %s337 = sphi 0, %s336
      %s351 = sphi 0, %s337
      %s355 = sphi 0, %s355
      %s357 = sphi 0, %s355
      %s358 = sphi 0, %s357
      %s372 = sphi 0, %s358
      %s376 = sphi 0, %s376
      %s378 = sphi 0, %s376
      %s379 = sphi 0, %s378
      %s393 = sphi 0, %s379
      %s397 = sphi 0, %s397
      %s399 = sphi 0, %s397
      %s400 = sphi 0, %s399
      %s414 = sphi 0, %s400
      %s418 = sphi 0, %s418
      %s420 = sphi 0, %s418
      %s421 = sphi 0, %s420
      %s435 = sphi 0, %s421
      %s439 = sphi 0, %s439
      %s441 = sphi 0, %s439
      %s442 = sphi 0, %s441
      %s456 = sphi 0, %s442
      %s460 = sphi 0, %s460
      %s462 = sphi 0, %s460
      %s463 = sphi 0, %s462
      %s477 = sphi 0, %s463
      %s481 = sphi 0, %s481
      %s483 = sphi 0, %s481
      %s484 = sphi 0, %s483
      %s498 = sphi 0, %s484
      %s502 = sphi 0, %s502
      %s504 = sphi 0, %s502
      %s505 = sphi 0, %s504
      %s519 = sphi 0, %s505
      %s523 = sphi 0, %s523
      %s525 = sphi 0, %s523
      %s526 = sphi 0, %s525
      %s540 = sphi 0, %s526
      %s544 = sphi 0, %s544
      %s546 = sphi 0, %s544
      %s547 = sphi 0, %s546
      %s561 = sphi 0, %s547
      %s567 = sphi 0, %s569
      %s570 = sphi 0, %s567
      %s571 = sphi 0, %s570
      %s587 = sphi 0, %s571
    $region4: #{tpu_custom_call.1} parent=1 // loop_header_branch
      %46 = sbr.rel (%p44) target = $region8
    $region5: #{tpu_custom_call.1} parent=1 // loop_body
      %s48 = ssub.s32 %s43, 1
      %s49 = ssub.s32 %s43, 2
      %s50 = sadd.s32 %s43, 1
      %s51 = ssub.s32 %s43, %s50
      %p52 = scmp.eq.s32.totalorder %s51, 0
      %s54 = sadd.s32 %s53, 1
      %s55 = scalar_select %p52, %s53, %s54
      %p58 = pneg %p52
      %p59 = scmp.eq.s32.totalorder %s43, 1
      %p60 = por %p58, %p59
      %p61 = scmp.ne.s32.totalorder %s53, %s56
      %p62 = scmp.eq.s32.totalorder %s43, 0
      %p63 = por %p61, %p62
      %p64 = scmp.ne.s32.totalorder %s53, %s56
      %p65 = scmp.eq.s32.totalorder %s48, 1
      %p66 = por %p64, %p65
      %p67 = scmp.ne.s32.totalorder %s56, %s57
      %p68 = scmp.eq.s32.totalorder %s48, 0
      %p69 = por %p67, %p68
      %p70 = scmp.ne.s32.totalorder %s56, %s57
      %p71 = scmp.eq.s32.totalorder %s49, 1
      %p72 = por %p70, %p71
      %p74 = scmp.ne.s32.totalorder %s57, %s73
      %p75 = scmp.eq.s32.totalorder %s49, 0
      %p76 = por %p74, %p75
      %s77 = ssub.s32 %s43, %s50
      %p78 = scmp.eq.s32.totalorder %s77, 0
      %s80 = sadd.s32 %s79, 1
      %s81 = scalar_select %p78, %s79, %s80
      %p84 = pneg %p78
      %p85 = scmp.eq.s32.totalorder %s43, 1
      %p86 = por %p84, %p85
      %p87 = scmp.ne.s32.totalorder %s79, %s82
      %p88 = scmp.eq.s32.totalorder %s43, 0
      %p89 = por %p87, %p88
      %p90 = scmp.ne.s32.totalorder %s79, %s82
      %p91 = scmp.eq.s32.totalorder %s48, 1
      %p92 = por %p90, %p91
      %p93 = scmp.ne.s32.totalorder %s82, %s83
      %p94 = scmp.eq.s32.totalorder %s48, 0
      %p95 = por %p93, %p94
      %p96 = scmp.ne.s32.totalorder %s82, %s83
      %p97 = scmp.eq.s32.totalorder %s49, 1
      %p98 = por %p96, %p97
      %p100 = scmp.ne.s32.totalorder %s83, %s99
      %p101 = scmp.eq.s32.totalorder %s49, 0
      %p102 = por %p100, %p101
      %s104 = sadd.s32 %s103, 1
      %p107 = scmp.eq.s32.totalorder %s43, 1
      %p108 = scmp.ne.s32.totalorder %s103, %s105
      %p109 = scmp.eq.s32.totalorder %s43, 0
      %p110 = por %p108, %p109
      %p111 = scmp.ne.s32.totalorder %s103, %s105
      %p112 = scmp.eq.s32.totalorder %s48, 1
      %p113 = por %p111, %p112
      %p114 = scmp.ne.s32.totalorder %s105, %s106
      %p115 = scmp.eq.s32.totalorder %s48, 0
      %p116 = por %p114, %p115
      %p117 = scmp.ne.s32.totalorder %s105, %s106
      %p118 = scmp.eq.s32.totalorder %s49, 1
      %p119 = por %p117, %p118
      %p121 = scmp.ne.s32.totalorder %s106, %s120
      %p122 = scmp.eq.s32.totalorder %s49, 0
      %p123 = por %p121, %p122
      %s125 = sadd.s32 %s124, 1
      %p128 = scmp.eq.s32.totalorder %s43, 1
      %p129 = scmp.ne.s32.totalorder %s124, %s126
      %p130 = scmp.eq.s32.totalorder %s43, 0
      %p131 = por %p129, %p130
      %p132 = scmp.ne.s32.totalorder %s124, %s126
      %p133 = scmp.eq.s32.totalorder %s48, 1
      %p134 = por %p132, %p133
      %p135 = scmp.ne.s32.totalorder %s126, %s127
      %p136 = scmp.eq.s32.totalorder %s48, 0
      %p137 = por %p135, %p136
      %p138 = scmp.ne.s32.totalorder %s126, %s127
      %p139 = scmp.eq.s32.totalorder %s49, 1
      %p140 = por %p138, %p139
      %p142 = scmp.ne.s32.totalorder %s127, %s141
      %p143 = scmp.eq.s32.totalorder %s49, 0
      %p144 = por %p142, %p143
      %s146 = sadd.s32 %s145, 1
      %p149 = scmp.eq.s32.totalorder %s43, 1
      %p150 = scmp.ne.s32.totalorder %s145, %s147
      %p151 = scmp.eq.s32.totalorder %s43, 0
      %p152 = por %p150, %p151
      %p153 = scmp.ne.s32.totalorder %s145, %s147
      %p154 = scmp.eq.s32.totalorder %s48, 1
      %p155 = por %p153, %p154
      %p156 = scmp.ne.s32.totalorder %s147, %s148
      %p157 = scmp.eq.s32.totalorder %s48, 0
      %p158 = por %p156, %p157
      %p159 = scmp.ne.s32.totalorder %s147, %s148
      %p160 = scmp.eq.s32.totalorder %s49, 1
      %p161 = por %p159, %p160
      %p163 = scmp.ne.s32.totalorder %s148, %s162
      %p164 = scmp.eq.s32.totalorder %s49, 0
      %p165 = por %p163, %p164
      %s167 = sadd.s32 %s166, 1
      %p170 = scmp.eq.s32.totalorder %s43, 1
      %p171 = scmp.ne.s32.totalorder %s166, %s168
      %p172 = scmp.eq.s32.totalorder %s43, 0
      %p173 = por %p171, %p172
      %p174 = scmp.ne.s32.totalorder %s166, %s168
      %p175 = scmp.eq.s32.totalorder %s48, 1
      %p176 = por %p174, %p175
      %p177 = scmp.ne.s32.totalorder %s168, %s169
      %p178 = scmp.eq.s32.totalorder %s48, 0
      %p179 = por %p177, %p178
      %p180 = scmp.ne.s32.totalorder %s168, %s169
      %p181 = scmp.eq.s32.totalorder %s49, 1
      %p182 = por %p180, %p181
      %p184 = scmp.ne.s32.totalorder %s169, %s183
      %p185 = scmp.eq.s32.totalorder %s49, 0
      %p186 = por %p184, %p185
      %s188 = sadd.s32 %s187, 1
      %p191 = scmp.eq.s32.totalorder %s43, 1
      %p192 = scmp.ne.s32.totalorder %s187, %s189
      %p193 = scmp.eq.s32.totalorder %s43, 0
      %p194 = por %p192, %p193
      %p195 = scmp.ne.s32.totalorder %s187, %s189
      %p196 = scmp.eq.s32.totalorder %s48, 1
      %p197 = por %p195, %p196
      %p198 = scmp.ne.s32.totalorder %s189, %s190
      %p199 = scmp.eq.s32.totalorder %s48, 0
      %p200 = por %p198, %p199
      %p201 = scmp.ne.s32.totalorder %s189, %s190
      %p202 = scmp.eq.s32.totalorder %s49, 1
      %p203 = por %p201, %p202
      %p205 = scmp.ne.s32.totalorder %s190, %s204
      %p206 = scmp.eq.s32.totalorder %s49, 0
      %p207 = por %p205, %p206
      %s209 = sadd.s32 %s208, 1
      %p212 = scmp.eq.s32.totalorder %s43, 1
      %p213 = scmp.ne.s32.totalorder %s208, %s210
      %p214 = scmp.eq.s32.totalorder %s43, 0
      %p215 = por %p213, %p214
      %p216 = scmp.ne.s32.totalorder %s208, %s210
      %p217 = scmp.eq.s32.totalorder %s48, 1
      %p218 = por %p216, %p217
      %p219 = scmp.ne.s32.totalorder %s210, %s211
      %p220 = scmp.eq.s32.totalorder %s48, 0
      %p221 = por %p219, %p220
      %p222 = scmp.ne.s32.totalorder %s210, %s211
      %p223 = scmp.eq.s32.totalorder %s49, 1
      %p224 = por %p222, %p223
      %p226 = scmp.ne.s32.totalorder %s211, %s225
      %p227 = scmp.eq.s32.totalorder %s49, 0
      %p228 = por %p226, %p227
      %s230 = sadd.s32 %s229, 1
      %p233 = scmp.eq.s32.totalorder %s43, 1
      %p234 = scmp.ne.s32.totalorder %s229, %s231
      %p235 = scmp.eq.s32.totalorder %s43, 0
      %p236 = por %p234, %p235
      %p237 = scmp.ne.s32.totalorder %s229, %s231
      %p238 = scmp.eq.s32.totalorder %s48, 1
      %p239 = por %p237, %p238
      %p240 = scmp.ne.s32.totalorder %s231, %s232
      %p241 = scmp.eq.s32.totalorder %s48, 0
      %p242 = por %p240, %p241
      %p243 = scmp.ne.s32.totalorder %s231, %s232
      %p244 = scmp.eq.s32.totalorder %s49, 1
      %p245 = por %p243, %p244
      %p247 = scmp.ne.s32.totalorder %s232, %s246
      %p248 = scmp.eq.s32.totalorder %s49, 0
      %p249 = por %p247, %p248
      %s251 = sadd.s32 %s250, 1
      %p254 = scmp.eq.s32.totalorder %s43, 1
      %p255 = scmp.ne.s32.totalorder %s250, %s252
      %p256 = scmp.eq.s32.totalorder %s43, 0
      %p257 = por %p255, %p256
      %p258 = scmp.ne.s32.totalorder %s250, %s252
      %p259 = scmp.eq.s32.totalorder %s48, 1
      %p260 = por %p258, %p259
      %p261 = scmp.ne.s32.totalorder %s252, %s253
      %p262 = scmp.eq.s32.totalorder %s48, 0
      %p263 = por %p261, %p262
      %p264 = scmp.ne.s32.totalorder %s252, %s253
      %p265 = scmp.eq.s32.totalorder %s49, 1
      %p266 = por %p264, %p265
      %p268 = scmp.ne.s32.totalorder %s253, %s267
      %p269 = scmp.eq.s32.totalorder %s49, 0
      %p270 = por %p268, %p269
      %s272 = sadd.s32 %s271, 1
      %p275 = scmp.eq.s32.totalorder %s43, 1
      %p276 = scmp.ne.s32.totalorder %s271, %s273
      %p277 = scmp.eq.s32.totalorder %s43, 0
      %p278 = por %p276, %p277
      %p279 = scmp.ne.s32.totalorder %s271, %s273
      %p280 = scmp.eq.s32.totalorder %s48, 1
      %p281 = por %p279, %p280
      %p282 = scmp.ne.s32.totalorder %s273, %s274
      %p283 = scmp.eq.s32.totalorder %s48, 0
      %p284 = por %p282, %p283
      %p285 = scmp.ne.s32.totalorder %s273, %s274
      %p286 = scmp.eq.s32.totalorder %s49, 1
      %p287 = por %p285, %p286
      %p289 = scmp.ne.s32.totalorder %s274, %s288
      %p290 = scmp.eq.s32.totalorder %s49, 0
      %p291 = por %p289, %p290
      %s293 = sadd.s32 %s292, 1
      %p296 = scmp.eq.s32.totalorder %s43, 1
      %p297 = scmp.ne.s32.totalorder %s292, %s294
      %p298 = scmp.eq.s32.totalorder %s43, 0
      %p299 = por %p297, %p298
      %p300 = scmp.ne.s32.totalorder %s292, %s294
      %p301 = scmp.eq.s32.totalorder %s48, 1
      %p302 = por %p300, %p301
      %p303 = scmp.ne.s32.totalorder %s294, %s295
      %p304 = scmp.eq.s32.totalorder %s48, 0
      %p305 = por %p303, %p304
      %p306 = scmp.ne.s32.totalorder %s294, %s295
      %p307 = scmp.eq.s32.totalorder %s49, 1
      %p308 = por %p306, %p307
      %p310 = scmp.ne.s32.totalorder %s295, %s309
      %p311 = scmp.eq.s32.totalorder %s49, 0
      %p312 = por %p310, %p311
      %s314 = sadd.s32 %s313, 1
      %p317 = scmp.eq.s32.totalorder %s43, 1
      %p318 = scmp.ne.s32.totalorder %s313, %s315
      %p319 = scmp.eq.s32.totalorder %s43, 0
      %p320 = por %p318, %p319
      %p321 = scmp.ne.s32.totalorder %s313, %s315
      %p322 = scmp.eq.s32.totalorder %s48, 1
      %p323 = por %p321, %p322
      %p324 = scmp.ne.s32.totalorder %s315, %s316
      %p325 = scmp.eq.s32.totalorder %s48, 0
      %p326 = por %p324, %p325
      %p327 = scmp.ne.s32.totalorder %s315, %s316
      %p328 = scmp.eq.s32.totalorder %s49, 1
      %p329 = por %p327, %p328
      %p331 = scmp.ne.s32.totalorder %s316, %s330
      %p332 = scmp.eq.s32.totalorder %s49, 0
      %p333 = por %p331, %p332
      %s335 = sadd.s32 %s334, 1
      %p338 = scmp.eq.s32.totalorder %s43, 1
      %p339 = scmp.ne.s32.totalorder %s334, %s336
      %p340 = scmp.eq.s32.totalorder %s43, 0
      %p341 = por %p339, %p340
      %p342 = scmp.ne.s32.totalorder %s334, %s336
      %p343 = scmp.eq.s32.totalorder %s48, 1
      %p344 = por %p342, %p343
      %p345 = scmp.ne.s32.totalorder %s336, %s337
      %p346 = scmp.eq.s32.totalorder %s48, 0
      %p347 = por %p345, %p346
      %p348 = scmp.ne.s32.totalorder %s336, %s337
      %p349 = scmp.eq.s32.totalorder %s49, 1
      %p350 = por %p348, %p349
      %p352 = scmp.ne.s32.totalorder %s337, %s351
      %p353 = scmp.eq.s32.totalorder %s49, 0
      %p354 = por %p352, %p353
      %s356 = sadd.s32 %s355, 1
      %p359 = scmp.eq.s32.totalorder %s43, 1
      %p360 = scmp.ne.s32.totalorder %s355, %s357
      %p361 = scmp.eq.s32.totalorder %s43, 0
      %p362 = por %p360, %p361
      %p363 = scmp.ne.s32.totalorder %s355, %s357
      %p364 = scmp.eq.s32.totalorder %s48, 1
      %p365 = por %p363, %p364
      %p366 = scmp.ne.s32.totalorder %s357, %s358
      %p367 = scmp.eq.s32.totalorder %s48, 0
      %p368 = por %p366, %p367
      %p369 = scmp.ne.s32.totalorder %s357, %s358
      %p370 = scmp.eq.s32.totalorder %s49, 1
      %p371 = por %p369, %p370
      %p373 = scmp.ne.s32.totalorder %s358, %s372
      %p374 = scmp.eq.s32.totalorder %s49, 0
      %p375 = por %p373, %p374
      %s377 = sadd.s32 %s376, 1
      %p380 = scmp.eq.s32.totalorder %s43, 1
      %p381 = scmp.ne.s32.totalorder %s376, %s378
      %p382 = scmp.eq.s32.totalorder %s43, 0
      %p383 = por %p381, %p382
      %p384 = scmp.ne.s32.totalorder %s376, %s378
      %p385 = scmp.eq.s32.totalorder %s48, 1
      %p386 = por %p384, %p385
      %p387 = scmp.ne.s32.totalorder %s378, %s379
      %p388 = scmp.eq.s32.totalorder %s48, 0
      %p389 = por %p387, %p388
      %p390 = scmp.ne.s32.totalorder %s378, %s379
      %p391 = scmp.eq.s32.totalorder %s49, 1
      %p392 = por %p390, %p391
      %p394 = scmp.ne.s32.totalorder %s379, %s393
      %p395 = scmp.eq.s32.totalorder %s49, 0
      %p396 = por %p394, %p395
      %s398 = sadd.s32 %s397, 1
      %p401 = scmp.eq.s32.totalorder %s43, 1
      %p402 = scmp.ne.s32.totalorder %s397, %s399
      %p403 = scmp.eq.s32.totalorder %s43, 0
      %p404 = por %p402, %p403
      %p405 = scmp.ne.s32.totalorder %s397, %s399
      %p406 = scmp.eq.s32.totalorder %s48, 1
      %p407 = por %p405, %p406
      %p408 = scmp.ne.s32.totalorder %s399, %s400
      %p409 = scmp.eq.s32.totalorder %s48, 0
      %p410 = por %p408, %p409
      %p411 = scmp.ne.s32.totalorder %s399, %s400
      %p412 = scmp.eq.s32.totalorder %s49, 1
      %p413 = por %p411, %p412
      %p415 = scmp.ne.s32.totalorder %s400, %s414
      %p416 = scmp.eq.s32.totalorder %s49, 0
      %p417 = por %p415, %p416
      %s419 = sadd.s32 %s418, 1
      %p422 = scmp.eq.s32.totalorder %s43, 1
      %p423 = scmp.ne.s32.totalorder %s418, %s420
      %p424 = scmp.eq.s32.totalorder %s43, 0
      %p425 = por %p423, %p424
      %p426 = scmp.ne.s32.totalorder %s418, %s420
      %p427 = scmp.eq.s32.totalorder %s48, 1
      %p428 = por %p426, %p427
      %p429 = scmp.ne.s32.totalorder %s420, %s421
      %p430 = scmp.eq.s32.totalorder %s48, 0
      %p431 = por %p429, %p430
      %p432 = scmp.ne.s32.totalorder %s420, %s421
      %p433 = scmp.eq.s32.totalorder %s49, 1
      %p434 = por %p432, %p433
      %p436 = scmp.ne.s32.totalorder %s421, %s435
      %p437 = scmp.eq.s32.totalorder %s49, 0
      %p438 = por %p436, %p437
      %s440 = sadd.s32 %s439, 1
      %p443 = scmp.eq.s32.totalorder %s43, 1
      %p444 = scmp.ne.s32.totalorder %s439, %s441
      %p445 = scmp.eq.s32.totalorder %s43, 0
      %p446 = por %p444, %p445
      %p447 = scmp.ne.s32.totalorder %s439, %s441
      %p448 = scmp.eq.s32.totalorder %s48, 1
      %p449 = por %p447, %p448
      %p450 = scmp.ne.s32.totalorder %s441, %s442
      %p451 = scmp.eq.s32.totalorder %s48, 0
      %p452 = por %p450, %p451
      %p453 = scmp.ne.s32.totalorder %s441, %s442
      %p454 = scmp.eq.s32.totalorder %s49, 1
      %p455 = por %p453, %p454
      %p457 = scmp.ne.s32.totalorder %s442, %s456
      %p458 = scmp.eq.s32.totalorder %s49, 0
      %p459 = por %p457, %p458
      %s461 = sadd.s32 %s460, 1
      %p464 = scmp.eq.s32.totalorder %s43, 1
      %p465 = scmp.ne.s32.totalorder %s460, %s462
      %p466 = scmp.eq.s32.totalorder %s43, 0
      %p467 = por %p465, %p466
      %p468 = scmp.ne.s32.totalorder %s460, %s462
      %p469 = scmp.eq.s32.totalorder %s48, 1
      %p470 = por %p468, %p469
      %p471 = scmp.ne.s32.totalorder %s462, %s463
      %p472 = scmp.eq.s32.totalorder %s48, 0
      %p473 = por %p471, %p472
      %p474 = scmp.ne.s32.totalorder %s462, %s463
      %p475 = scmp.eq.s32.totalorder %s49, 1
      %p476 = por %p474, %p475
      %p478 = scmp.ne.s32.totalorder %s463, %s477
      %p479 = scmp.eq.s32.totalorder %s49, 0
      %p480 = por %p478, %p479
      %s482 = sadd.s32 %s481, 1
      %p485 = scmp.eq.s32.totalorder %s43, 1
      %p486 = scmp.ne.s32.totalorder %s481, %s483
      %p487 = scmp.eq.s32.totalorder %s43, 0
      %p488 = por %p486, %p487
      %p489 = scmp.ne.s32.totalorder %s481, %s483
      %p490 = scmp.eq.s32.totalorder %s48, 1
      %p491 = por %p489, %p490
      %p492 = scmp.ne.s32.totalorder %s483, %s484
      %p493 = scmp.eq.s32.totalorder %s48, 0
      %p494 = por %p492, %p493
      %p495 = scmp.ne.s32.totalorder %s483, %s484
      %p496 = scmp.eq.s32.totalorder %s49, 1
      %p497 = por %p495, %p496
      %p499 = scmp.ne.s32.totalorder %s484, %s498
      %p500 = scmp.eq.s32.totalorder %s49, 0
      %p501 = por %p499, %p500
      %s503 = sadd.s32 %s502, 1
      %p506 = scmp.eq.s32.totalorder %s43, 1
      %p507 = scmp.ne.s32.totalorder %s502, %s504
      %p508 = scmp.eq.s32.totalorder %s43, 0
      %p509 = por %p507, %p508
      %p510 = scmp.ne.s32.totalorder %s502, %s504
      %p511 = scmp.eq.s32.totalorder %s48, 1
      %p512 = por %p510, %p511
      %p513 = scmp.ne.s32.totalorder %s504, %s505
      %p514 = scmp.eq.s32.totalorder %s48, 0
      %p515 = por %p513, %p514
      %p516 = scmp.ne.s32.totalorder %s504, %s505
      %p517 = scmp.eq.s32.totalorder %s49, 1
      %p518 = por %p516, %p517
      %p520 = scmp.ne.s32.totalorder %s505, %s519
      %p521 = scmp.eq.s32.totalorder %s49, 0
      %p522 = por %p520, %p521
      %s524 = sadd.s32 %s523, 1
      %p527 = scmp.eq.s32.totalorder %s43, 1
      %p528 = scmp.ne.s32.totalorder %s523, %s525
      %p529 = scmp.eq.s32.totalorder %s43, 0
      %p530 = por %p528, %p529
      %p531 = scmp.ne.s32.totalorder %s523, %s525
      %p532 = scmp.eq.s32.totalorder %s48, 1
      %p533 = por %p531, %p532
      %p534 = scmp.ne.s32.totalorder %s525, %s526
      %p535 = scmp.eq.s32.totalorder %s48, 0
      %p536 = por %p534, %p535
      %p537 = scmp.ne.s32.totalorder %s525, %s526
      %p538 = scmp.eq.s32.totalorder %s49, 1
      %p539 = por %p537, %p538
      %p541 = scmp.ne.s32.totalorder %s526, %s540
      %p542 = scmp.eq.s32.totalorder %s49, 0
      %p543 = por %p541, %p542
      %s545 = sadd.s32 %s544, 1
      %p548 = scmp.eq.s32.totalorder %s43, 1
      %p549 = scmp.ne.s32.totalorder %s544, %s546
      %p550 = scmp.eq.s32.totalorder %s43, 0
      %p551 = por %p549, %p550
      %p552 = scmp.ne.s32.totalorder %s544, %s546
      %p553 = scmp.eq.s32.totalorder %s48, 1
      %p554 = por %p552, %p553
      %p555 = scmp.ne.s32.totalorder %s546, %s547
      %p556 = scmp.eq.s32.totalorder %s48, 0
      %p557 = por %p555, %p556
      %p558 = scmp.ne.s32.totalorder %s546, %s547
      %p559 = scmp.eq.s32.totalorder %s49, 1
      %p560 = por %p558, %p559
      %p562 = scmp.ne.s32.totalorder %s547, %s561
      %p563 = scmp.eq.s32.totalorder %s49, 0
      %p564 = por %p562, %p563
      %s565 = ssub.s32 %s43, %s50
      %p566 = scmp.eq.s32.totalorder %s565, 0
      %s568 = sadd.s32 %s567, 1
      %s569 = scalar_select %p566, %s567, %s568
      %p572 = pneg %p566
      %p573 = scmp.eq.s32.totalorder %s43, 1
      %p574 = por %p572, %p573
      %p575 = scmp.ne.s32.totalorder %s567, %s570
      %p576 = scmp.eq.s32.totalorder %s43, 0
      %p577 = por %p575, %p576
      %p578 = scmp.ne.s32.totalorder %s567, %s570
      %p579 = scmp.eq.s32.totalorder %s48, 1
      %p580 = por %p578, %p579
      %p581 = scmp.ne.s32.totalorder %s570, %s571
      %p582 = scmp.eq.s32.totalorder %s48, 0
      %p583 = por %p581, %p582
      %p584 = scmp.ne.s32.totalorder %s570, %s571
      %p585 = scmp.eq.s32.totalorder %s49, 1
      %p586 = por %p584, %p585
      %p588 = scmp.ne.s32.totalorder %s571, %s587
      %p589 = scmp.eq.s32.totalorder %s49, 0
      %p590 = por %p588, %p589
      %p591 = scmp.le.s32.totalorder 1, %s43
      %p592 = scmp.lt.s32.totalorder %s43, 3
      %p593 = pnand %p591, %p592
      %p594 = pneg %p593
      // Predicated region
      $region9: #{tpu_custom_call.1} parent=5 // pred_check
        _
      $region10: #{tpu_custom_call.1} parent=5 // pred_check_branch
        %596 = sbr.rel (%p593) target = $region12
      $region11: #{tpu_custom_call.1} parent=5 // pred_region
        %s597 = ssub.s32 %s43, 1
        // Predicated region
        $region13: #{tpu_custom_call.1} parent=11 // pred_check
          %p598 = pneg %p116
        $region14: #{tpu_custom_call.1} parent=11 // pred_check_branch
          %600 = sbr.rel (%p598) target = $region16
        $region15: #{tpu_custom_call.1} parent=11 // pred_region
          _
        $region16: #{tpu_custom_call.1} parent=11 // pred_fallthru
          _
        // Predicated region
        $region17: #{tpu_custom_call.1} parent=11 // pred_check
          %p601 = pneg %p137
        $region18: #{tpu_custom_call.1} parent=11 // pred_check_branch
          %603 = sbr.rel (%p601) target = $region20
        $region19: #{tpu_custom_call.1} parent=11 // pred_region
          %s605 = ssub.s32 16, 16
          %606 = vsyncadd [#allocation6], %s605
          %s608 = sshll.u32 [#allocation5], 4
          %s609 = int_to_ptr.vmem [resolvable:$true] %s608
          %611 = dma.hbm_to_vmem [thread:$0]  %s3, 16, %s609, [#allocation6]
        $region20: #{tpu_custom_call.1} parent=11 // pred_fallthru
          _
        // Predicated region
        $region21: #{tpu_custom_call.1} parent=11 // pred_check
          %p612 = pneg %p158
        $region22: #{tpu_custom_call.1} parent=11 // pred_check_branch
          %614 = sbr.rel (%p612) target = $region24
        $region23: #{tpu_custom_call.1} parent=11 // pred_region
          %s616 = ssub.s32 16, 16
          %617 = vsyncadd [#allocation6], %s616
          %s619 = sshll.u32 [#allocation7], 4
          %s620 = int_to_ptr.vmem [resolvable:$true] %s619
          %622 = dma.hbm_to_vmem [thread:$0]  %s4, 16, %s620, [#allocation6]
        $region24: #{tpu_custom_call.1} parent=11 // pred_fallthru
          _
        // Predicated region
        $region25: #{tpu_custom_call.1} parent=11 // pred_check
          %p623 = pneg %p179
        $region26: #{tpu_custom_call.1} parent=11 // pred_check_branch
          %625 = sbr.rel (%p623) target = $region28
        $region27: #{tpu_custom_call.1} parent=11 // pred_region
          %s627 = ssub.s32 16, 16
          %628 = vsyncadd [#allocation9], %s627
          %s630 = sshll.u32 [#allocation8], 4
          %s631 = int_to_ptr.vmem [resolvable:$true] %s630
          %633 = dma.hbm_to_vmem [thread:$0]  %s5, 16, %s631, [#allocation9]
        $region28: #{tpu_custom_call.1} parent=11 // pred_fallthru
          _
        // Predicated region
        $region29: #{tpu_custom_call.1} parent=11 // pred_check
          %p634 = pneg %p200
        $region30: #{tpu_custom_call.1} parent=11 // pred_check_branch
          %636 = sbr.rel (%p634) target = $region32
        $region31: #{tpu_custom_call.1} parent=11 // pred_region
          %s638 = ssub.s32 16, 16
          %639 = vsyncadd [#allocation9], %s638
          %s641 = sshll.u32 [#allocation10], 4
          %s642 = int_to_ptr.vmem [resolvable:$true] %s641
          %644 = dma.hbm_to_vmem [thread:$0]  %s6, 16, %s642, [#allocation9]
        $region32: #{tpu_custom_call.1} parent=11 // pred_fallthru
          _
        // Predicated region
        $region33: #{tpu_custom_call.1} parent=11 // pred_check
          %p645 = pneg %p221
        $region34: #{tpu_custom_call.1} parent=11 // pred_check_branch
          %647 = sbr.rel (%p645) target = $region36
        $region35: #{tpu_custom_call.1} parent=11 // pred_region
          %s649 = ssub.s32 16, 16
          %650 = vsyncadd [#allocation12], %s649
          %s652 = sshll.u32 [#allocation11], 4
          %s653 = int_to_ptr.vmem [resolvable:$true] %s652
          %655 = dma.hbm_to_vmem [thread:$0]  %s7, 16, %s653, [#allocation12]
        $region36: #{tpu_custom_call.1} parent=11 // pred_fallthru
          _
        // Predicated region
        $region37: #{tpu_custom_call.1} parent=11 // pred_check
          %p656 = pneg %p242
        $region38: #{tpu_custom_call.1} parent=11 // pred_check_branch
          %658 = sbr.rel (%p656) target = $region40
        $region39: #{tpu_custom_call.1} parent=11 // pred_region
          %s660 = ssub.s32 512, 512
          %661 = vsyncadd [#allocation12], %s660
          %s662 = sshll.u32 [#allocation13], 4
          %s663 = int_to_ptr.vmem [resolvable:$true] %s662
          %668 = dma.hbm_to_vmem [thread:$0]  %s8, 512, %s663, [#allocation12], 128, 128, 8
        $region40: #{tpu_custom_call.1} parent=11 // pred_fallthru
          _
        // Predicated region
        $region41: #{tpu_custom_call.1} parent=11 // pred_check
          %p669 = pneg %p263
        $region42: #{tpu_custom_call.1} parent=11 // pred_check_branch
          %671 = sbr.rel (%p669) target = $region44
        $region43: #{tpu_custom_call.1} parent=11 // pred_region
          _
        $region44: #{tpu_custom_call.1} parent=11 // pred_fallthru
          _
        // Predicated region
        $region45: #{tpu_custom_call.1} parent=11 // pred_check
          %p672 = pneg %p284
        $region46: #{tpu_custom_call.1} parent=11 // pred_check_branch
          %674 = sbr.rel (%p672) target = $region48
        $region47: #{tpu_custom_call.1} parent=11 // pred_region
          _
        $region48: #{tpu_custom_call.1} parent=11 // pred_fallthru
          _
        // Predicated region
        $region49: #{tpu_custom_call.1} parent=11 // pred_check
          %p675 = pneg %p305
        $region50: #{tpu_custom_call.1} parent=11 // pred_check_branch
          %677 = sbr.rel (%p675) target = $region52
        $region51: #{tpu_custom_call.1} parent=11 // pred_region
          %s679 = ssub.s32 32, 32
          %680 = vsyncadd [#allocation15], %s679
          %s682 = sshll.u32 [#allocation14], 4
          %s683 = int_to_ptr.vmem [resolvable:$true] %s682
          %685 = dma.hbm_to_vmem [thread:$0]  %s11, 32, %s683, [#allocation15]
        $region52: #{tpu_custom_call.1} parent=11 // pred_fallthru
          _
        // Predicated region
        $region53: #{tpu_custom_call.1} parent=11 // pred_check
          %p686 = pneg %p326
        $region54: #{tpu_custom_call.1} parent=11 // pred_check_branch
          %688 = sbr.rel (%p686) target = $region56
        $region55: #{tpu_custom_call.1} parent=11 // pred_region
          %s690 = ssub.s32 1024, 1024
          %691 = vsyncadd [#allocation15], %s690
          %s692 = sshll.u32 [#allocation16], 4
          %s693 = int_to_ptr.vmem [resolvable:$true] %s692
          %698 = dma.hbm_to_vmem [thread:$0]  %s12, 1024, %s693, [#allocation15], 128, 128, 8
        $region56: #{tpu_custom_call.1} parent=11 // pred_fallthru
          _
        // Predicated region
        $region57: #{tpu_custom_call.1} parent=11 // pred_check
          %p699 = pneg %p347
        $region58: #{tpu_custom_call.1} parent=11 // pred_check_branch
          %701 = sbr.rel (%p699) target = $region60
        $region59: #{tpu_custom_call.1} parent=11 // pred_region
          %s703 = ssub.s32 16, 16
          %704 = vsyncadd [#allocation18], %s703
          %s706 = sshll.u32 [#allocation17], 4
          %s707 = int_to_ptr.vmem [resolvable:$true] %s706
          %709 = dma.hbm_to_vmem [thread:$0]  %s13, 16, %s707, [#allocation18]
        $region60: #{tpu_custom_call.1} parent=11 // pred_fallthru
          _
        // Predicated region
        $region61: #{tpu_custom_call.1} parent=11 // pred_check
          %p710 = pneg %p368
        $region62: #{tpu_custom_call.1} parent=11 // pred_check_branch
          %712 = sbr.rel (%p710) target = $region64
        $region63: #{tpu_custom_call.1} parent=11 // pred_region
          %s714 = ssub.s32 1024, 1024
          %715 = vsyncadd [#allocation18], %s714
          %s716 = sshll.u32 [#allocation19], 4
          %s717 = int_to_ptr.vmem [resolvable:$true] %s716
          %722 = dma.hbm_to_vmem [thread:$0]  %s14, 1024, %s717, [#allocation18], 128, 128, 8
        $region64: #{tpu_custom_call.1} parent=11 // pred_fallthru
          _
        // Predicated region
        $region65: #{tpu_custom_call.1} parent=11 // pred_check
          %p723 = pneg %p389
        $region66: #{tpu_custom_call.1} parent=11 // pred_check_branch
          %725 = sbr.rel (%p723) target = $region68
        $region67: #{tpu_custom_call.1} parent=11 // pred_region
          %s727 = ssub.s32 16, 16
          %728 = vsyncadd [#allocation21], %s727
          %s730 = sshll.u32 [#allocation20], 4
          %s731 = int_to_ptr.vmem [resolvable:$true] %s730
          %733 = dma.hbm_to_vmem [thread:$0]  %s15, 16, %s731, [#allocation21]
        $region68: #{tpu_custom_call.1} parent=11 // pred_fallthru
          _
        // Predicated region
        $region69: #{tpu_custom_call.1} parent=11 // pred_check
          %p734 = pneg %p410
        $region70: #{tpu_custom_call.1} parent=11 // pred_check_branch
          %736 = sbr.rel (%p734) target = $region72
        $region71: #{tpu_custom_call.1} parent=11 // pred_region
          _
        $region72: #{tpu_custom_call.1} parent=11 // pred_fallthru
          _
        // Predicated region
        $region73: #{tpu_custom_call.1} parent=11 // pred_check
          %p737 = pneg %p431
        $region74: #{tpu_custom_call.1} parent=11 // pred_check_branch
          %739 = sbr.rel (%p737) target = $region76
        $region75: #{tpu_custom_call.1} parent=11 // pred_region
          %s741 = ssub.s32 16, 16
          %742 = vsyncadd [#allocation21], %s741
          %s744 = sshll.u32 [#allocation22], 4
          %s745 = int_to_ptr.vmem [resolvable:$true] %s744
          %747 = dma.hbm_to_vmem [thread:$0]  %s17, 16, %s745, [#allocation21]
        $region76: #{tpu_custom_call.1} parent=11 // pred_fallthru
          _
        // Predicated region
        $region77: #{tpu_custom_call.1} parent=11 // pred_check
          %p748 = pneg %p452
        $region78: #{tpu_custom_call.1} parent=11 // pred_check_branch
          %750 = sbr.rel (%p748) target = $region80
        $region79: #{tpu_custom_call.1} parent=11 // pred_region
          _
        $region80: #{tpu_custom_call.1} parent=11 // pred_fallthru
          _
        // Predicated region
        $region81: #{tpu_custom_call.1} parent=11 // pred_check
          %p751 = pneg %p473
        $region82: #{tpu_custom_call.1} parent=11 // pred_check_branch
          %753 = sbr.rel (%p751) target = $region84
        $region83: #{tpu_custom_call.1} parent=11 // pred_region
          _
        $region84: #{tpu_custom_call.1} parent=11 // pred_fallthru
          _
        // Predicated region
        $region85: #{tpu_custom_call.1} parent=11 // pred_check
          %p754 = pneg %p494
        $region86: #{tpu_custom_call.1} parent=11 // pred_check_branch
          %756 = sbr.rel (%p754) target = $region88
        $region87: #{tpu_custom_call.1} parent=11 // pred_region
          %s758 = ssub.s32 1024, 1024
          %759 = vsyncadd [#allocation24], %s758
          %s760 = sshll.u32 [#allocation23], 4
          %s761 = int_to_ptr.vmem [resolvable:$true] %s760
          %766 = dma.hbm_to_vmem [thread:$0]  %s20, 1024, %s761, [#allocation24], 128, 128, 8
        $region88: #{tpu_custom_call.1} parent=11 // pred_fallthru
          _
        // Predicated region
        $region89: #{tpu_custom_call.1} parent=11 // pred_check
          %p767 = pneg %p515
        $region90: #{tpu_custom_call.1} parent=11 // pred_check_branch
          %769 = sbr.rel (%p767) target = $region92
        $region91: #{tpu_custom_call.1} parent=11 // pred_region
          _
        $region92: #{tpu_custom_call.1} parent=11 // pred_fallthru
          _
        // Predicated region
        $region93: #{tpu_custom_call.1} parent=11 // pred_check
          %p770 = pneg %p536
        $region94: #{tpu_custom_call.1} parent=11 // pred_check_branch
          %772 = sbr.rel (%p770) target = $region96
        $region95: #{tpu_custom_call.1} parent=11 // pred_region
          _
        $region96: #{tpu_custom_call.1} parent=11 // pred_fallthru
          _
        // Predicated region
        $region97: #{tpu_custom_call.1} parent=11 // pred_check
          %p773 = pneg %p557
        $region98: #{tpu_custom_call.1} parent=11 // pred_check_branch
          %775 = sbr.rel (%p773) target = $region100
        $region99: #{tpu_custom_call.1} parent=11 // pred_region
          _
        $region100: #{tpu_custom_call.1} parent=11 // pred_fallthru
          _
      $region12: #{tpu_custom_call.1} parent=5 // pred_fallthru
        _
      %p776 = scmp.lt.s32.totalorder %s43, 2
      // Predicated region
      $region101: #{tpu_custom_call.1} parent=5 // pred_check
        %p777 = pneg %p776
      $region102: #{tpu_custom_call.1} parent=5 // pred_check_branch
        %779 = sbr.rel (%p777) target = $region104
      $region103: #{tpu_custom_call.1} parent=5 // pred_region
        // Predicated region
        $region105: #{tpu_custom_call.1} parent=103 // pred_check
          %p780 = pneg %p63
        $region106: #{tpu_custom_call.1} parent=103 // pred_check_branch
          %782 = sbr.rel (%p780) target = $region108
        $region107: #{tpu_custom_call.1} parent=103 // pred_region
          %p783 = scmp.lt.s32.totalorder %s43, 1
          %s784 = scalar_select %p783, %s43, 1
          %s785 = smul.addr %s784, 8
          %s786 = smul.addr %s785, 8
          %s787 = scalar_lea.vmem %s0, %s786
        $region108: #{tpu_custom_call.1} parent=103 // pred_fallthru
          _
        // Predicated region
        $region109: #{tpu_custom_call.1} parent=103 // pred_check
          %p788 = pneg %p89
        $region110: #{tpu_custom_call.1} parent=103 // pred_check_branch
          %790 = sbr.rel (%p788) target = $region112
        $region111: #{tpu_custom_call.1} parent=103 // pred_region
          %s791 = sand.u32 %s79, 1
          %s792 = scalar_lea.sflag [#allocation3], %s791
          %s793 = sand.u32 %s79, 1
          %s794 = smul.addr %s793, 8
          %s795 = scalar_lea.vmem [#allocation2], %s794
          %s797 = ssub.s32 128, 128
          %798 = vsyncadd %s792, %s797
          %s799 = smul.addr %s43, 128
          %s800 = scalar_lea.hbm %s1, %s799
          %s802 = sshll.u32 %s795, 4
          %s803 = int_to_ptr.vmem [resolvable:$true] %s802
          %805 = dma.hbm_to_vmem [thread:$0]  %s800, 128, %s803, %s792
        $region112: #{tpu_custom_call.1} parent=103 // pred_fallthru
          _
      $region104: #{tpu_custom_call.1} parent=5 // pred_fallthru
        _
      %p806 = scmp.le.s32.totalorder 1, %s43
      %p807 = scmp.lt.s32.totalorder %s43, 3
      %p808 = pnand %p806, %p807
      %p809 = pneg %p808
      // Predicated region
      $region113: #{tpu_custom_call.1} parent=5 // pred_check
        _
      $region114: #{tpu_custom_call.1} parent=5 // pred_check_branch
        %811 = sbr.rel (%p808) target = $region116
      $region115: #{tpu_custom_call.1} parent=5 // pred_region
        %s812 = ssub.s32 %s43, 1
        %s813 = sand.u32 %s82, 1
        %s814 = scalar_lea.sflag [#allocation3], %s813
        %s815 = sand.u32 %s82, 1
        %s816 = smul.addr %s815, 8
        %s817 = scalar_lea.vmem [#allocation2], %s816
        // Predicated region
        $region117: #{tpu_custom_call.1} parent=115 // pred_check
          %p818 = pneg %p95
        $region118: #{tpu_custom_call.1} parent=115 // pred_check_branch
          %820 = sbr.rel (%p818) target = $region120
        $region119: #{tpu_custom_call.1} parent=115 // pred_region
          %821 = dma.done %s814, 128
        $region120: #{tpu_custom_call.1} parent=115 // pred_fallthru
          _
        // Predicated region
        $region121: #{tpu_custom_call.1} parent=115 // pred_check
          %p822 = pneg %p137
        $region122: #{tpu_custom_call.1} parent=115 // pred_check_branch
          %824 = sbr.rel (%p822) target = $region124
        $region123: #{tpu_custom_call.1} parent=115 // pred_region
          %825 = dma.done [#allocation6], 16
        $region124: #{tpu_custom_call.1} parent=115 // pred_fallthru
          _
        // Predicated region
        $region125: #{tpu_custom_call.1} parent=115 // pred_check
          %p826 = pneg %p158
        $region126: #{tpu_custom_call.1} parent=115 // pred_check_branch
          %828 = sbr.rel (%p826) target = $region128
        $region127: #{tpu_custom_call.1} parent=115 // pred_region
          %829 = dma.done [#allocation6], 16
        $region128: #{tpu_custom_call.1} parent=115 // pred_fallthru
          _
        // Predicated region
        $region129: #{tpu_custom_call.1} parent=115 // pred_check
          %p830 = pneg %p179
        $region130: #{tpu_custom_call.1} parent=115 // pred_check_branch
          %832 = sbr.rel (%p830) target = $region132
        $region131: #{tpu_custom_call.1} parent=115 // pred_region
          %833 = dma.done [#allocation9], 16
        $region132: #{tpu_custom_call.1} parent=115 // pred_fallthru
          _
        // Predicated region
        $region133: #{tpu_custom_call.1} parent=115 // pred_check
          %p834 = pneg %p200
        $region134: #{tpu_custom_call.1} parent=115 // pred_check_branch
          %836 = sbr.rel (%p834) target = $region136
        $region135: #{tpu_custom_call.1} parent=115 // pred_region
          %837 = dma.done [#allocation9], 16
        $region136: #{tpu_custom_call.1} parent=115 // pred_fallthru
          _
        // Predicated region
        $region137: #{tpu_custom_call.1} parent=115 // pred_check
          %p838 = pneg %p221
        $region138: #{tpu_custom_call.1} parent=115 // pred_check_branch
          %840 = sbr.rel (%p838) target = $region140
        $region139: #{tpu_custom_call.1} parent=115 // pred_region
          %841 = dma.done [#allocation12], 16
        $region140: #{tpu_custom_call.1} parent=115 // pred_fallthru
          _
        // Predicated region
        $region141: #{tpu_custom_call.1} parent=115 // pred_check
          %p842 = pneg %p242
        $region142: #{tpu_custom_call.1} parent=115 // pred_check_branch
          %844 = sbr.rel (%p842) target = $region144
        $region143: #{tpu_custom_call.1} parent=115 // pred_region
          %845 = dma.done [#allocation12], 512
        $region144: #{tpu_custom_call.1} parent=115 // pred_fallthru
          _
        // Predicated region
        $region145: #{tpu_custom_call.1} parent=115 // pred_check
          %p846 = pneg %p305
        $region146: #{tpu_custom_call.1} parent=115 // pred_check_branch
          %848 = sbr.rel (%p846) target = $region148
        $region147: #{tpu_custom_call.1} parent=115 // pred_region
          %849 = dma.done [#allocation15], 32
        $region148: #{tpu_custom_call.1} parent=115 // pred_fallthru
          _
        // Predicated region
        $region149: #{tpu_custom_call.1} parent=115 // pred_check
          %p850 = pneg %p326
        $region150: #{tpu_custom_call.1} parent=115 // pred_check_branch
          %852 = sbr.rel (%p850) target = $region152
        $region151: #{tpu_custom_call.1} parent=115 // pred_region
          %853 = dma.done [#allocation15], 1024
        $region152: #{tpu_custom_call.1} parent=115 // pred_fallthru
          _
        // Predicated region
        $region153: #{tpu_custom_call.1} parent=115 // pred_check
          %p854 = pneg %p347
        $region154: #{tpu_custom_call.1} parent=115 // pred_check_branch
          %856 = sbr.rel (%p854) target = $region156
        $region155: #{tpu_custom_call.1} parent=115 // pred_region
          %857 = dma.done [#allocation18], 16
        $region156: #{tpu_custom_call.1} parent=115 // pred_fallthru
          _
        // Predicated region
        $region157: #{tpu_custom_call.1} parent=115 // pred_check
          %p858 = pneg %p368
        $region158: #{tpu_custom_call.1} parent=115 // pred_check_branch
          %860 = sbr.rel (%p858) target = $region160
        $region159: #{tpu_custom_call.1} parent=115 // pred_region
          %861 = dma.done [#allocation18], 1024
        $region160: #{tpu_custom_call.1} parent=115 // pred_fallthru
          _
        // Predicated region
        $region161: #{tpu_custom_call.1} parent=115 // pred_check
          %p862 = pneg %p389
        $region162: #{tpu_custom_call.1} parent=115 // pred_check_branch
          %864 = sbr.rel (%p862) target = $region164
        $region163: #{tpu_custom_call.1} parent=115 // pred_region
          %865 = dma.done [#allocation21], 16
        $region164: #{tpu_custom_call.1} parent=115 // pred_fallthru
          _
        // Predicated region
        $region165: #{tpu_custom_call.1} parent=115 // pred_check
          %p866 = pneg %p431
        $region166: #{tpu_custom_call.1} parent=115 // pred_check_branch
          %868 = sbr.rel (%p866) target = $region168
        $region167: #{tpu_custom_call.1} parent=115 // pred_region
          %869 = dma.done [#allocation21], 16
        $region168: #{tpu_custom_call.1} parent=115 // pred_fallthru
          _
        // Predicated region
        $region169: #{tpu_custom_call.1} parent=115 // pred_check
          %p870 = pneg %p494
        $region170: #{tpu_custom_call.1} parent=115 // pred_check_branch
          %872 = sbr.rel (%p870) target = $region172
        $region171: #{tpu_custom_call.1} parent=115 // pred_region
          %873 = dma.done [#allocation24], 1024
        $region172: #{tpu_custom_call.1} parent=115 // pred_fallthru
          _
        %p874 = scmp.lt.s32.totalorder %s48, 1
        %s875 = scalar_select %p874, %s48, 1
        %s876 = smul.addr %s875, 8
        %s877 = smul.addr %s876, 8
        %s878 = scalar_lea.vmem %s0, %s877
        %p879 = pneg %p69
        %p880 = pneg %p66
        %s881 = sand.u32 %s82, 1
        %s882 = scalar_lea.sflag [#allocation3], %s881
        %s883 = sand.u32 %s82, 1
        %s884 = smul.addr %s883, 8
        %s885 = scalar_lea.vmem [#allocation2], %s884
        %p886 = pneg %p95
        %p887 = pneg %p92
        %p888 = pneg %p116
        %p889 = pneg %p113
        %p890 = pneg %p137
        %p891 = pneg %p134
        %p892 = pneg %p158
        %p893 = pneg %p155
        %p894 = pneg %p179
        %p895 = pneg %p176
        %p896 = pneg %p200
        %p897 = pneg %p197
        %p898 = pneg %p221
        %p899 = pneg %p218
        %p900 = pneg %p242
        %p901 = pneg %p239
        %p902 = pneg %p263
        %p903 = pneg %p260
        %p904 = pneg %p284
        %p905 = pneg %p281
        %p906 = pneg %p305
        %p907 = pneg %p302
        %p908 = pneg %p326
        %p909 = pneg %p323
        %p910 = pneg %p347
        %p911 = pneg %p344
        %p912 = pneg %p368
        %p913 = pneg %p365
        %p914 = pneg %p389
        %p915 = pneg %p386
        %p916 = pneg %p410
        %p917 = pneg %p407
        %p918 = pneg %p431
        %p919 = pneg %p428
        %p920 = pneg %p452
        %p921 = pneg %p449
        %p922 = pneg %p473
        %p923 = pneg %p470
        %p924 = pneg %p494
        %p925 = pneg %p491
        %p926 = pneg %p515
        %p927 = pneg %p512
        %p928 = pneg %p536
        %p929 = pneg %p533
        %p930 = pneg %p557
        %p931 = pneg %p554
        %p932 = pneg %p583
        %p933 = pneg %p580
        %s934 = sand.u32 %s570, 1
        %s935 = scalar_lea.sflag [#allocation4], %s934
        %s936 = sand.u32 %s570, 1
        %s937 = smul.addr %s936, 8
        %s938 = scalar_lea.vmem [#allocation25], %s937
        %p939 = scmp.lt.s32.totalorder %s48, 1
        %s940 = scalar_select %p939, %s48, 1
        %s941 = smul.addr %s940, 8
        %s942 = smul.addr %s941, 8
        %s943 = scalar_lea.vmem %s0, %s942
        %v944 = vld [vmem:[%s2] sm:$0x1]
        %v945 = vld [vmem:[#allocation5] sm:$0x1]
        %v946 = vld [vmem:[#allocation7] sm:$0x1]
        %v947 = vld [vmem:[#allocation8] sm:$0x1]
        %v948 = vld [vmem:[#allocation10] sm:$0x1]
        %v949 = vld [vmem:[#allocation11] sm:$0x1]
        %v950 = vld [vmem:[#allocation13] sm:$0xff]
        %v951 = vld [vmem:[#allocation13 + $0x8] sm:$0xff]
        %v952 = vld [vmem:[#allocation13 + $0x10] sm:$0xff]
        %v953 = vld [vmem:[#allocation13 + $0x18] sm:$0xff]
        %v954 = vld [vmem:[%s9] sm:$0xff]
        %v955 = vld [vmem:[%s9 + $0x8] sm:$0xff]
        %v956 = vld [vmem:[%s9 + $0x10] sm:$0xff]
        %v957 = vld [vmem:[%s9 + $0x18] sm:$0xff]
        %v958 = vld [vmem:[%s9 + $0x20] sm:$0xff]
        %v959 = vld [vmem:[%s9 + $0x28] sm:$0xff]
        %v960 = vld [vmem:[%s9 + $0x30] sm:$0xff]
        %v961 = vld [vmem:[%s9 + $0x38] sm:$0xff]
        %v962 = vld [vmem:[%s10] sm:$0xff]
        %v963 = vld [vmem:[%s10 + $0x8] sm:$0xff]
        %v964 = vld [vmem:[%s10 + $0x10] sm:$0xff]
        %v965 = vld [vmem:[%s10 + $0x18] sm:$0xff]
        %v966 = vld [vmem:[%s10 + $0x20] sm:$0xff]
        %v967 = vld [vmem:[%s10 + $0x28] sm:$0xff]
        %v968 = vld [vmem:[%s10 + $0x30] sm:$0xff]
        %v969 = vld [vmem:[%s10 + $0x38] sm:$0xff]
        %v970 = vld [vmem:[%s10 + $0x40] sm:$0xff]
        %v971 = vld [vmem:[%s10 + $0x48] sm:$0xff]
        %v972 = vld [vmem:[%s10 + $0x50] sm:$0xff]
        %v973 = vld [vmem:[%s10 + $0x58] sm:$0xff]
        %v974 = vld [vmem:[%s10 + $0x60] sm:$0xff]
        %v975 = vld [vmem:[%s10 + $0x68] sm:$0xff]
        %v976 = vld [vmem:[%s10 + $0x70] sm:$0xff]
        %v977 = vld [vmem:[%s10 + $0x78] sm:$0xff]
        %v978 = vld [vmem:[#allocation14] sm:$0x3]
        %v979 = vld [vmem:[#allocation16] sm:$0xff]
        %v980 = vld [vmem:[#allocation16 + $0x8] sm:$0xff]
        %v981 = vld [vmem:[#allocation16 + $0x10] sm:$0xff]
        %v982 = vld [vmem:[#allocation16 + $0x18] sm:$0xff]
        %v983 = vld [vmem:[#allocation16 + $0x20] sm:$0xff]
        %v984 = vld [vmem:[#allocation16 + $0x28] sm:$0xff]
        %v985 = vld [vmem:[#allocation16 + $0x30] sm:$0xff]
        %v986 = vld [vmem:[#allocation16 + $0x38] sm:$0xff]
        %v987 = vld [vmem:[#allocation17] sm:$0x1]
        %v988 = vld [vmem:[#allocation19] sm:$0xff]
        %v989 = vld [vmem:[#allocation19 + $0x8] sm:$0xff]
        %v990 = vld [vmem:[#allocation19 + $0x10] sm:$0xff]
        %v991 = vld [vmem:[#allocation19 + $0x18] sm:$0xff]
        %v992 = vld [vmem:[#allocation19 + $0x20] sm:$0xff]
        %v993 = vld [vmem:[#allocation19 + $0x28] sm:$0xff]
        %v994 = vld [vmem:[#allocation19 + $0x30] sm:$0xff]
        %v995 = vld [vmem:[#allocation19 + $0x38] sm:$0xff]
        %v996 = vld [vmem:[#allocation20] sm:$0x1]
        %v997 = vld [vmem:[%s16] sm:$0xff]
        %v998 = vld [vmem:[%s16 + $0x8] sm:$0xff]
        %v999 = vld [vmem:[%s16 + $0x10] sm:$0xff]
        %v1000 = vld [vmem:[%s16 + $0x18] sm:$0xff]
        %v1001 = vld [vmem:[%s16 + $0x20] sm:$0xff]
        %v1002 = vld [vmem:[%s16 + $0x28] sm:$0xff]
        %v1003 = vld [vmem:[%s16 + $0x30] sm:$0xff]
        %v1004 = vld [vmem:[%s16 + $0x38] sm:$0xff]
        %v1005 = vld [vmem:[%s16 + $0x40] sm:$0xff]
        %v1006 = vld [vmem:[%s16 + $0x48] sm:$0xff]
        %v1007 = vld [vmem:[%s16 + $0x50] sm:$0xff]
        %v1008 = vld [vmem:[%s16 + $0x58] sm:$0xff]
        %v1009 = vld [vmem:[%s16 + $0x60] sm:$0xff]
        %v1010 = vld [vmem:[%s16 + $0x68] sm:$0xff]
        %v1011 = vld [vmem:[%s16 + $0x70] sm:$0xff]
        %v1012 = vld [vmem:[%s16 + $0x78] sm:$0xff]
        %v1013 = vld [vmem:[#allocation22] sm:$0x1]
        %v1014 = vld [vmem:[%s18] sm:$0xff]
        %v1015 = vld [vmem:[%s18 + $0x8] sm:$0xff]
        %v1016 = vld [vmem:[%s18 + $0x10] sm:$0xff]
        %v1017 = vld [vmem:[%s18 + $0x18] sm:$0xff]
        %v1018 = vld [vmem:[%s18 + $0x20] sm:$0xff]
        %v1019 = vld [vmem:[%s18 + $0x28] sm:$0xff]
        %v1020 = vld [vmem:[%s18 + $0x30] sm:$0xff]
        %v1021 = vld [vmem:[%s18 + $0x38] sm:$0xff]
        %v1022 = vld [vmem:[%s18 + $0x40] sm:$0xff]
        %v1023 = vld [vmem:[%s18 + $0x48] sm:$0xff]
        %v1024 = vld [vmem:[%s18 + $0x50] sm:$0xff]
        %v1025 = vld [vmem:[%s18 + $0x58] sm:$0xff]
        %v1026 = vld [vmem:[%s18 + $0x60] sm:$0xff]
        %v1027 = vld [vmem:[%s18 + $0x68] sm:$0xff]
        %v1028 = vld [vmem:[%s18 + $0x70] sm:$0xff]
        %v1029 = vld [vmem:[%s18 + $0x78] sm:$0xff]
        %v1030 = vld [vmem:[%s18 + $0x80] sm:$0xff]
        %v1031 = vld [vmem:[%s18 + $0x88] sm:$0xff]
        %v1032 = vld [vmem:[%s18 + $0x90] sm:$0xff]
        %v1033 = vld [vmem:[%s18 + $0x98] sm:$0xff]
        %v1034 = vld [vmem:[%s18 + $0xa0] sm:$0xff]
        %v1035 = vld [vmem:[%s18 + $0xa8] sm:$0xff]
        %v1036 = vld [vmem:[%s18 + $0xb0] sm:$0xff]
        %v1037 = vld [vmem:[%s18 + $0xb8] sm:$0xff]
        %v1038 = vld [vmem:[%s18 + $0xc0] sm:$0xff]
        %v1039 = vld [vmem:[%s18 + $0xc8] sm:$0xff]
        %v1040 = vld [vmem:[%s18 + $0xd0] sm:$0xff]
        %v1041 = vld [vmem:[%s18 + $0xd8] sm:$0xff]
        %v1042 = vld [vmem:[%s18 + $0xe0] sm:$0xff]
        %v1043 = vld [vmem:[%s18 + $0xe8] sm:$0xff]
        %v1044 = vld [vmem:[%s18 + $0xf0] sm:$0xff]
        %v1045 = vld [vmem:[%s18 + $0xf8] sm:$0xff]
        %v1046 = vld [vmem:[%s18 + $0x100] sm:$0xff]
        %v1047 = vld [vmem:[%s18 + $0x108] sm:$0xff]
        %v1048 = vld [vmem:[%s18 + $0x110] sm:$0xff]
        %v1049 = vld [vmem:[%s18 + $0x118] sm:$0xff]
        %v1050 = vld [vmem:[%s18 + $0x120] sm:$0xff]
        %v1051 = vld [vmem:[%s18 + $0x128] sm:$0xff]
        %v1052 = vld [vmem:[%s18 + $0x130] sm:$0xff]
        %v1053 = vld [vmem:[%s18 + $0x138] sm:$0xff]
        %v1054 = vld [vmem:[%s18 + $0x140] sm:$0xff]
        %v1055 = vld [vmem:[%s18 + $0x148] sm:$0xff]
        %v1056 = vld [vmem:[%s18 + $0x150] sm:$0xff]
        %v1057 = vld [vmem:[%s18 + $0x158] sm:$0xff]
        %v1058 = vld [vmem:[%s18 + $0x160] sm:$0xff]
        %v1059 = vld [vmem:[%s18 + $0x168] sm:$0xff]
        %v1060 = vld [vmem:[%s18 + $0x170] sm:$0xff]
        %v1061 = vld [vmem:[%s18 + $0x178] sm:$0xff]
        %v1062 = vld [vmem:[%s19] sm:$0x7]
        %v1063 = vld [vmem:[#allocation23] sm:$0xff]
        %v1064 = vld [vmem:[#allocation23 + $0x8] sm:$0xff]
        %v1065 = vld [vmem:[#allocation23 + $0x10] sm:$0xff]
        %v1066 = vld [vmem:[#allocation23 + $0x18] sm:$0xff]
        %v1067 = vld [vmem:[#allocation23 + $0x20] sm:$0xff]
        %v1068 = vld [vmem:[#allocation23 + $0x28] sm:$0xff]
        %v1069 = vld [vmem:[#allocation23 + $0x30] sm:$0xff]
        %v1070 = vld [vmem:[#allocation23 + $0x38] sm:$0xff]
        %v1071 = vld [vmem:[%s21] sm:$0x1]
        %v1072 = vld [vmem:[%s22] sm:$0xff]
        %v1073 = vld [vmem:[%s22 + $0x8] sm:$0xff]
        %v1074 = vld [vmem:[%s22 + $0x10] sm:$0xff]
        %v1075 = vld [vmem:[%s22 + $0x18] sm:$0xff]
        %v1076 = vld [vmem:[%s22 + $0x20] sm:$0xff]
        %v1077 = vld [vmem:[%s22 + $0x28] sm:$0xff]
        %v1078 = vld [vmem:[%s22 + $0x30] sm:$0xff]
        %v1079 = vld [vmem:[%s22 + $0x38] sm:$0xff]
        %v1080 = vld [vmem:[%s22 + $0x40] sm:$0xff]
        %v1081 = vld [vmem:[%s22 + $0x48] sm:$0xff]
        %v1082 = vld [vmem:[%s22 + $0x50] sm:$0xff]
        %v1083 = vld [vmem:[%s22 + $0x58] sm:$0xff]
        %v1084 = vld [vmem:[%s22 + $0x60] sm:$0xff]
        %v1085 = vld [vmem:[%s22 + $0x68] sm:$0xff]
        %v1086 = vld [vmem:[%s22 + $0x70] sm:$0xff]
        %v1087 = vld [vmem:[%s22 + $0x78] sm:$0xff]
        %v1088 = vld [vmem:[%s23] sm:$0x1]
        %v1089 = vld [vmem:[%s943] sm:$0xff]
        %v1090 = vld [vmem:[%s943 + $0x8] sm:$0xff]
        %v1091 = vld [vmem:[%s943 + $0x10] sm:$0xff]
        %v1092 = vld [vmem:[%s943 + $0x18] sm:$0xff]
        %v1093 = vld [vmem:[%s943 + $0x20] sm:$0xff]
        %v1094 = vld [vmem:[%s943 + $0x28] sm:$0xff]
        %v1095 = vld [vmem:[%s943 + $0x30] sm:$0xff]
        %v1096 = vld [vmem:[%s943 + $0x38] sm:$0xff]
        %v1097 = vld [vmem:[%s817] sm:$0xff]
        %v1099 = vlaneseq
        %v1100 = vshrl.u32 %v1099, 7
        %v1101 = vsub.s32 0, %v1100
        %v1102 = vrot.slane %v946, %v1101
        %v1105 = vlaneseq
        %v1106 = vshrl.u32 %v1105, 7
        %v1107 = vsub.s32 0, %v1106
        %v1108 = vrot.slane %v947, %v1107
        %v1111 = vlaneseq
        %v1112 = vshrl.u32 %v1111, 7
        %v1113 = vsub.s32 0, %v1112
        %v1114 = vrot.slane %v948, %v1113
        %v1116 = vlaneseq
        %v1117 = vshrl.u32 %v1116, 7
        %v1118 = vsub.s32 0, %v1117
        %v1119 = vrot.slane %v949, %v1118
        %v1121 = vlaneseq
        %v1122 = vshrl.u32 %v1121, 7
        %v1123 = vsub.s32 0, %v1122
        %v1124 = vrot.slane %v1062, %v1123
        %v1125 = vlaneseq
        %v1126 = vshrl.u32 %v1125, 7
        %v1127 = vsub.s32 1, %v1126
        %v1128 = vrot.slane %v1062, %v1127
        %v1129 = vlaneseq
        %v1130 = vshrl.u32 %v1129, 7
        %v1131 = vsub.s32 2, %v1130
        %v1132 = vrot.slane %v1062, %v1131
        %v1137 = vlaneseq
        %v1138 = vshrl.u32 %v1137, 7
        %v1139 = vsub.s32 0, %v1138
        %v1140 = vrot.slane %v1071, %v1139
        %v1143 = vlaneseq
        %v1144 = vshrl.u32 %v1143, 7
        %v1145 = vsub.s32 0, %v1144
        %v1146 = vrot.slane %v1088, %v1145
        %vm1147 = vcmask 261120
        %v1148 = vsel %vm1147, %v1089, 0.0
        %1149 = vadd.xlane.f32.xlu0 %v1148
        %v1150 = vpop.xlane.xlu0 %1149
        %v1151 = vsel %vm1147, %v1090, 0.0
        %1152 = vadd.xlane.f32.xlu0 %v1151
        %v1153 = vpop.xlane.xlu0 %1152
        %v1154 = vsel %vm1147, %v1091, 0.0
        %1155 = vadd.xlane.f32.xlu0 %v1154
        %v1156 = vpop.xlane.xlu0 %1155
        %v1157 = vsel %vm1147, %v1092, 0.0
        %1158 = vadd.xlane.f32.xlu0 %v1157
        %v1159 = vpop.xlane.xlu0 %1158
        %v1160 = vsel %vm1147, %v1093, 0.0
        %1161 = vadd.xlane.f32.xlu0 %v1160
        %v1162 = vpop.xlane.xlu0 %1161
        %v1163 = vsel %vm1147, %v1094, 0.0
        %1164 = vadd.xlane.f32.xlu0 %v1163
        %v1165 = vpop.xlane.xlu0 %1164
        %v1166 = vsel %vm1147, %v1095, 0.0
        %1167 = vadd.xlane.f32.xlu0 %v1166
        %v1168 = vpop.xlane.xlu0 %1167
        %v1169 = vsel %vm1147, %v1096, 0.0
        %1170 = vadd.xlane.f32.xlu0 %v1169
        %v1171 = vpop.xlane.xlu0 %1170
        %v1172 = vrcp.pop 32.0
        %v1173 = vmul.f32 %v1150, %v1172
        %v1174 = vmul.f32 %v1153, %v1172
        %v1175 = vmul.f32 %v1156, %v1172
        %v1176 = vmul.f32 %v1159, %v1172
        %v1177 = vmul.f32 %v1162, %v1172
        %v1178 = vmul.f32 %v1165, %v1172
        %v1179 = vmul.f32 %v1168, %v1172
        %v1180 = vmul.f32 %v1171, %v1172
        %v1181 = vsub.f32 %v1089, %v1173
        %v1182 = vsub.f32 %v1090, %v1174
        %v1183 = vsub.f32 %v1091, %v1175
        %v1184 = vsub.f32 %v1092, %v1176
        %v1185 = vsub.f32 %v1093, %v1177
        %v1186 = vsub.f32 %v1094, %v1178
        %v1187 = vsub.f32 %v1095, %v1179
        %v1188 = vsub.f32 %v1096, %v1180
        %v1189 = vmul.f32 %v1181, %v1181
        %v1190 = vmul.f32 %v1182, %v1182
        %v1191 = vmul.f32 %v1183, %v1183
        %v1192 = vmul.f32 %v1184, %v1184
        %v1193 = vmul.f32 %v1185, %v1185
        %v1194 = vmul.f32 %v1186, %v1186
        %v1195 = vmul.f32 %v1187, %v1187
        %v1196 = vmul.f32 %v1188, %v1188
        %v1197 = vsel %vm1147, %v1189, 0.0
        %1198 = vadd.xlane.f32.xlu0 %v1197
        %v1199 = vpop.xlane.xlu0 %1198
        %v1200 = vsel %vm1147, %v1190, 0.0
        %1201 = vadd.xlane.f32.xlu0 %v1200
        %v1202 = vpop.xlane.xlu0 %1201
        %v1203 = vsel %vm1147, %v1191, 0.0
        %1204 = vadd.xlane.f32.xlu0 %v1203
        %v1205 = vpop.xlane.xlu0 %1204
        %v1206 = vsel %vm1147, %v1192, 0.0
        %1207 = vadd.xlane.f32.xlu0 %v1206
        %v1208 = vpop.xlane.xlu0 %1207
        %v1209 = vsel %vm1147, %v1193, 0.0
        %1210 = vadd.xlane.f32.xlu0 %v1209
        %v1211 = vpop.xlane.xlu0 %1210
        %v1212 = vsel %vm1147, %v1194, 0.0
        %1213 = vadd.xlane.f32.xlu0 %v1212
        %v1214 = vpop.xlane.xlu0 %1213
        %v1215 = vsel %vm1147, %v1195, 0.0
        %1216 = vadd.xlane.f32.xlu0 %v1215
        %v1217 = vpop.xlane.xlu0 %1216
        %v1218 = vsel %vm1147, %v1196, 0.0
        %1219 = vadd.xlane.f32.xlu0 %v1218
        %v1220 = vpop.xlane.xlu0 %1219
        %v1221 = vmul.f32 %v1199, %v1172
        %v1222 = vmul.f32 %v1202, %v1172
        %v1223 = vmul.f32 %v1205, %v1172
        %v1224 = vmul.f32 %v1208, %v1172
        %v1225 = vmul.f32 %v1211, %v1172
        %v1226 = vmul.f32 %v1214, %v1172
        %v1227 = vmul.f32 %v1217, %v1172
        %v1228 = vmul.f32 %v1220, %v1172
        %v1229 = vadd.f32 %v1221, 1e-05
        %v1230 = vadd.f32 %v1222, 1e-05
        %v1231 = vadd.f32 %v1223, 1e-05
        %v1232 = vadd.f32 %v1224, 1e-05
        %v1233 = vadd.f32 %v1225, 1e-05
        %v1234 = vadd.f32 %v1226, 1e-05
        %v1235 = vadd.f32 %v1227, 1e-05
        %v1236 = vadd.f32 %v1228, 1e-05
        %v1237 = vrsqrt.pop %v1229
        %v1238 = vrsqrt.pop %v1230
        %v1239 = vrsqrt.pop %v1231
        %v1240 = vrsqrt.pop %v1232
        %v1241 = vrsqrt.pop %v1233
        %v1242 = vrsqrt.pop %v1234
        %v1243 = vrsqrt.pop %v1235
        %v1244 = vrsqrt.pop %v1236
        %v1245 = vmul.f32 %v1181, %v1237
        %v1246 = vmul.f32 %v1182, %v1238
        %v1247 = vmul.f32 %v1183, %v1239
        %v1248 = vmul.f32 %v1184, %v1240
        %v1249 = vmul.f32 %v1185, %v1241
        %v1250 = vmul.f32 %v1186, %v1242
        %v1251 = vmul.f32 %v1187, %v1243
        %v1252 = vmul.f32 %v1188, %v1244
        %v1254 = vlaneseq
        %v1255 = vshrl.u32 %v1254, 7
        %v1256 = vsub.s32 0, %v1255
        %v1257 = vrot.slane %v944, %v1256
        %v1259 = vmul.f32 %v1245, %v1257
        %v1260 = vmul.f32 %v1246, %v1257
        %v1261 = vmul.f32 %v1247, %v1257
        %v1262 = vmul.f32 %v1248, %v1257
        %v1263 = vmul.f32 %v1249, %v1257
        %v1264 = vmul.f32 %v1250, %v1257
        %v1265 = vmul.f32 %v1251, %v1257
        %v1266 = vmul.f32 %v1252, %v1257
        %v1268 = vlaneseq
        %v1269 = vshrl.u32 %v1268, 7
        %v1270 = vsub.s32 0, %v1269
        %v1271 = vrot.slane %v945, %v1270
        %v1273 = vadd.f32 %v1259, %v1271
        %v1274 = vadd.f32 %v1260, %v1271
        %v1275 = vadd.f32 %v1261, %v1271
        %v1276 = vadd.f32 %v1262, %v1271
        %v1277 = vadd.f32 %v1263, %v1271
        %v1278 = vadd.f32 %v1264, %v1271
        %v1279 = vadd.f32 %v1265, %v1271
        %v1280 = vadd.f32 %v1266, %v1271
        %v1282 = vsel %vm1147, %v1273, 0
        %v1285 = vsel %vm1147, %v1274, 0
        %v1288 = vsel %vm1147, %v1275, 0
        %v1291 = vsel %vm1147, %v1276, 0
        %v1294 = vsel %vm1147, %v1277, 0
        %v1297 = vsel %vm1147, %v1278, 0
        %v1300 = vsel %vm1147, %v1279, 0
        %v1303 = vsel %vm1147, %v1280, 0
        %1305 = vmatprep.subr.mxu0 0.0
        %1306 = vmatpush1.msra.mxu0 %v950
        %1307 = vmatprep.subr.mxu0 0.0
        %1308 = vmatpush1.msra.mxu0 %v951
        %1309 = vmatprep.subr.mxu0 0.0
        %1310 = vmatpush1.msra.mxu0 %v952
        %1311 = vmatprep.subr.mxu0 0.0
        %1312 = vmatpush1.msra.mxu0 %v953
        %1313 = vmatprep.subr.mxu0 0.0
        %1314 = vmatpush1.msra.mxu0 0.0
        %1315 = vmatprep.subr.mxu0 0.0
        %1316 = vmatpush1.msra.mxu0 0.0
        %1317 = vmatprep.subr.mxu0 0.0
        %1318 = vmatpush1.msra.mxu0 0.0
        %1319 = vmatprep.subr.mxu0 0.0
        %1320 = vmatpush1.msra.mxu0 0.0
        %1321 = vmatprep.subr.mxu0 0.0
        %1322 = vmatpush1.msra.mxu0 0.0
        %1323 = vmatprep.subr.mxu0 0.0
        %1324 = vmatpush1.msra.mxu0 0.0
        %1325 = vmatprep.subr.mxu0 0.0
        %1326 = vmatpush1.msra.mxu0 0.0
        %1327 = vmatprep.subr.mxu0 0.0
        %1328 = vmatpush1.msra.mxu0 0.0
        %1329 = vmatprep.subr.mxu0 0.0
        %1330 = vmatpush1.msra.mxu0 0.0
        %1331 = vmatprep.subr.mxu0 0.0
        %1332 = vmatpush1.msra.mxu0 0.0
        %1333 = vmatprep.subr.mxu0 0.0
        %1334 = vmatpush1.msra.mxu0 0.0
        %1335 = vmatprep.subr.mxu0 0.0
        %1336 = vmatpush1.msra.mxu0 0.0
        %1337 = vmatprep.subr.mxu0 0.0
        %1338 = vmatpush1.msra.mxu0 0.0
        %1339 = vmatprep.subr.mxu0 0.0
        %1340 = vmatpush1.msra.mxu0 0.0
        %1341 = vmatprep.subr.mxu0 0.0
        %1342 = vmatpush1.msra.mxu0 0.0
        %1343 = vmatprep.subr.mxu0 0.0
        %1344 = vmatpush1.msra.mxu0 0.0
        %1345 = vmatprep.subr.mxu0 0.0
        %1346 = vmatpush1.msra.mxu0 0.0
        %1347 = vmatprep.subr.mxu0 0.0
        %1348 = vmatpush1.msra.mxu0 0.0
        %1349 = vmatprep.subr.mxu0 0.0
        %1350 = vmatpush1.msra.mxu0 0.0
        %1351 = vmatprep.subr.mxu0 0.0
        %1352 = vmatpush1.msra.mxu0 0.0
        %1353 = vmatprep.subr.mxu0 0.0
        %1354 = vmatpush1.msra.mxu0 0.0
        %1355 = vmatprep.subr.mxu0 0.0
        %1356 = vmatpush1.msra.mxu0 0.0
        %1357 = vmatprep.subr.mxu0 0.0
        %1358 = vmatpush1.msra.mxu0 0.0
        %1359 = vmatprep.subr.mxu0 0.0
        %1360 = vmatpush1.msra.mxu0 0.0
        %1361 = vmatprep.subr.mxu0 0.0
        %1362 = vmatpush1.msra.mxu0 0.0
        %1363 = vmatprep.subr.mxu0 0.0
        %1364 = vmatpush1.msra.mxu0 0.0
        %1365 = vmatprep.subr.mxu0 0.0
        %1366 = vmatpush1.msra.mxu0 0.0
        %1367 = vmatprep.subr.mxu0 0.0
        %1368 = vmatpush1.msra.mxu0 0.0
        %1369 = vmatprep.mubr.f32.mxu0 0.0
        %1370 = vmatmul.mubr.f32.gmra.mrb[0].mxu0 %v1282
        %v1371 = vpop.f32.mrb[0].mxu0
        %v1372 = vadd.f32 0.0, %v1371
        %v1373 = vpop.f32.mrb[0].mxu0
        %1374 = vmatprep.mubr.f32.mxu0 0.0
        %1375 = vmatmul.mubr.f32.gmra.mrb[0].mxu0 %v1285
        %v1376 = vpop.f32.mrb[0].mxu0
        %v1377 = vadd.f32 0.0, %v1376
        %v1378 = vpop.f32.mrb[0].mxu0
        %1379 = vmatprep.mubr.f32.mxu0 0.0
        %1380 = vmatmul.mubr.f32.gmra.mrb[0].mxu0 %v1288
        %v1381 = vpop.f32.mrb[0].mxu0
        %v1382 = vadd.f32 0.0, %v1381
        %v1383 = vpop.f32.mrb[0].mxu0
        %1384 = vmatprep.mubr.f32.mxu0 0.0
        %1385 = vmatmul.mubr.f32.gmra.mrb[0].mxu0 %v1291
        %v1386 = vpop.f32.mrb[0].mxu0
        %v1387 = vadd.f32 0.0, %v1386
        %v1388 = vpop.f32.mrb[0].mxu0
        %1389 = vmatprep.mubr.f32.mxu0 0.0
        %1390 = vmatmul.mubr.f32.gmra.mrb[0].mxu0 %v1294
        %v1391 = vpop.f32.mrb[0].mxu0
        %v1392 = vadd.f32 0.0, %v1391
        %v1393 = vpop.f32.mrb[0].mxu0
        %1394 = vmatprep.mubr.f32.mxu0 0.0
        %1395 = vmatmul.mubr.f32.gmra.mrb[0].mxu0 %v1297
        %v1396 = vpop.f32.mrb[0].mxu0
        %v1397 = vadd.f32 0.0, %v1396
        %v1398 = vpop.f32.mrb[0].mxu0
        %1399 = vmatprep.mubr.f32.mxu0 0.0
        %1400 = vmatmul.mubr.f32.gmra.mrb[0].mxu0 %v1300
        %v1401 = vpop.f32.mrb[0].mxu0
        %v1402 = vadd.f32 0.0, %v1401
        %v1403 = vpop.f32.mrb[0].mxu0
        %1404 = vmatprep.mubr.f32.mxu0 0.0
        %1405 = vmatmul.mubr.f32.gmra.mrb[0].mxu0 %v1303
        %v1406 = vpop.f32.mrb[0].mxu0
        %v1407 = vadd.f32 0.0, %v1406
        %v1408 = vpop.f32.mrb[0].mxu0
        %1409 = vdwg.mxu0
        %vm1410 = vcmask 523264
        %v1411 = vsel %vm1410, %v1097, 0.0
        %1412 = vadd.xlane.f32.xlu0 %v1411
        %v1413 = vpop.xlane.xlu0 %1412
        %v1414 = vrcp.pop 64.0
        %v1415 = vmul.f32 %v1413, %v1414
        %v1416 = vsub.f32 %v1097, %v1415
        %v1417 = vmul.f32 %v1416, %v1416
        %v1418 = vsel %vm1410, %v1417, 0.0
        %1419 = vadd.xlane.f32.xlu0 %v1418
        %v1420 = vpop.xlane.xlu0 %1419
        %v1421 = vmul.f32 %v1420, %v1414
        %v1422 = vadd.f32 %v1421, 1e-05
        %v1423 = vrsqrt.pop %v1422
        %v1424 = vmul.f32 %v1416, %v1423
        %v1425 = vmul.f32 %v1424, %v1102
        %v1426 = vadd.f32 %v1425, %v1108
        %v1428 = vlaneseq
        %v1429 = vshrl.u32 %v1428, 7
        %v1430 = vsub.s32 0, %v1429
        %v1431 = vrot.slane %v978, %v1430
        %v1432 = vlaneseq
        %v1433 = vshrl.u32 %v1432, 7
        %v1434 = vsub.s32 1, %v1433
        %v1435 = vrot.slane %v978, %v1434
        %v1439 = vsel %vm1410, %v1426, 0
        %1441 = vmatprep.subr.mxu0 %v963
        %1442 = vmatpush1.msra.mxu0 %v962
        %1443 = vmatprep.subr.mxu0 %v965
        %1444 = vmatpush1.msra.mxu0 %v964
        %1445 = vmatprep.subr.mxu0 %v967
        %1446 = vmatpush1.msra.mxu0 %v966
        %1447 = vmatprep.subr.mxu0 %v969
        %1448 = vmatpush1.msra.mxu0 %v968
        %1449 = vmatprep.subr.mxu0 %v971
        %1450 = vmatpush1.msra.mxu0 %v970
        %1451 = vmatprep.subr.mxu0 %v973
        %1452 = vmatpush1.msra.mxu0 %v972
        %1453 = vmatprep.subr.mxu0 %v975
        %1454 = vmatpush1.msra.mxu0 %v974
        %1455 = vmatprep.subr.mxu0 %v977
        %1456 = vmatpush1.msra.mxu0 %v976
        %1457 = vmatprep.subr.mxu0 0.0
        %1458 = vmatpush1.msra.mxu0 0.0
        %1459 = vmatprep.subr.mxu0 0.0
        %1460 = vmatpush1.msra.mxu0 0.0
        %1461 = vmatprep.subr.mxu0 0.0
        %1462 = vmatpush1.msra.mxu0 0.0
        %1463 = vmatprep.subr.mxu0 0.0
        %1464 = vmatpush1.msra.mxu0 0.0
        %1465 = vmatprep.subr.mxu0 0.0
        %1466 = vmatpush1.msra.mxu0 0.0
        %1467 = vmatprep.subr.mxu0 0.0
        %1468 = vmatpush1.msra.mxu0 0.0
        %1469 = vmatprep.subr.mxu0 0.0
        %1470 = vmatpush1.msra.mxu0 0.0
        %1471 = vmatprep.subr.mxu0 0.0
        %1472 = vmatpush1.msra.mxu0 0.0
        %1473 = vmatprep.subr.mxu0 0.0
        %1474 = vmatpush1.msra.mxu0 0.0
        %1475 = vmatprep.subr.mxu0 0.0
        %1476 = vmatpush1.msra.mxu0 0.0
        %1477 = vmatprep.subr.mxu0 0.0
        %1478 = vmatpush1.msra.mxu0 0.0
        %1479 = vmatprep.subr.mxu0 0.0
        %1480 = vmatpush1.msra.mxu0 0.0
        %1481 = vmatprep.subr.mxu0 0.0
        %1482 = vmatpush1.msra.mxu0 0.0
        %1483 = vmatprep.subr.mxu0 0.0
        %1484 = vmatpush1.msra.mxu0 0.0
        %1485 = vmatprep.subr.mxu0 0.0
        %1486 = vmatpush1.msra.mxu0 0.0
        %1487 = vmatprep.subr.mxu0 0.0
        %1488 = vmatpush1.msra.mxu0 0.0
        %1489 = vmatprep.subr.mxu0 0.0
        %1490 = vmatpush1.msra.mxu0 0.0
        %1491 = vmatprep.subr.mxu0 0.0
        %1492 = vmatpush1.msra.mxu0 0.0
        %1493 = vmatprep.subr.mxu0 0.0
        %1494 = vmatpush1.msra.mxu0 0.0
        %1495 = vmatprep.subr.mxu0 0.0
        %1496 = vmatpush1.msra.mxu0 0.0
        %1497 = vmatprep.subr.mxu0 0.0
        %1498 = vmatpush1.msra.mxu0 0.0
        %1499 = vmatprep.subr.mxu0 0.0
        %1500 = vmatpush1.msra.mxu0 0.0
        %1501 = vmatprep.subr.mxu0 0.0
        %1502 = vmatpush1.msra.mxu0 0.0
        %1503 = vmatprep.subr.mxu0 0.0
        %1504 = vmatpush1.msra.mxu0 0.0
        %1505 = vmatprep.mubr.f32.mxu0 0.0
        %1506 = vmatmul.mubr.f32.gmra.mrb[0].mxu0 %v1439
        %v1507 = vpop.f32.mrb[0].mxu0
        %v1508 = vadd.f32 %v1431, %v1507
        %v1509 = vpop.f32.mrb[0].mxu0
        %v1510 = vadd.f32 %v1435, %v1509
        %1511 = vdwg.mxu0
        %v1512 = vmul.f32 %v1508, 0.25
        %1514 = vrot.lane.b32.xlu0 %v1508, 64
        %v1515 = vpop.permute.xlu0 %1514
        %vm1516 = vcmask 130048
        %v1518 = vsel %vm1516, %v1512, 0
        %v1520 = vsel %vm1516, %v1515, 0
        %1522 = vmatprep.subr.mxu0 0.0
        %1523 = vmatpush1.xpose.msra.mxu0 %v1520
        %1524 = vmatprep.subr.mxu0 0.0
        %1525 = vmatpush1.xpose.msra.mxu0 0.0
        %1526 = vmatprep.subr.mxu0 0.0
        %1527 = vmatpush1.xpose.msra.mxu0 0.0
        %1528 = vmatprep.subr.mxu0 0.0
        %1529 = vmatpush1.xpose.msra.mxu0 0.0
        %1530 = vmatprep.subr.mxu0 0.0
        %1531 = vmatpush1.xpose.msra.mxu0 0.0
        %1532 = vmatprep.subr.mxu0 0.0
        %1533 = vmatpush1.xpose.msra.mxu0 0.0
        %1534 = vmatprep.subr.mxu0 0.0
        %1535 = vmatpush1.xpose.msra.mxu0 0.0
        %1536 = vmatprep.subr.mxu0 0.0
        %1537 = vmatpush1.xpose.msra.mxu0 0.0
        %1538 = vmatprep.subr.mxu0 0.0
        %1539 = vmatpush1.xpose.msra.mxu0 0.0
        %1540 = vmatprep.subr.mxu0 0.0
        %1541 = vmatpush1.xpose.msra.mxu0 0.0
        %1542 = vmatprep.subr.mxu0 0.0
        %1543 = vmatpush1.xpose.msra.mxu0 0.0
        %1544 = vmatprep.subr.mxu0 0.0
        %1545 = vmatpush1.xpose.msra.mxu0 0.0
        %1546 = vmatprep.subr.mxu0 0.0
        %1547 = vmatpush1.xpose.msra.mxu0 0.0
        %1548 = vmatprep.subr.mxu0 0.0
        %1549 = vmatpush1.xpose.msra.mxu0 0.0
        %1550 = vmatprep.subr.mxu0 0.0
        %1551 = vmatpush1.xpose.msra.mxu0 0.0
        %1552 = vmatprep.subr.mxu0 0.0
        %1553 = vmatpush1.xpose.msra.mxu0 0.0
        %1554 = vmatprep.subr.mxu0 0.0
        %1555 = vmatpush1.xpose.msra.mxu0 0.0
        %1556 = vmatprep.subr.mxu0 0.0
        %1557 = vmatpush1.xpose.msra.mxu0 0.0
        %1558 = vmatprep.subr.mxu0 0.0
        %1559 = vmatpush1.xpose.msra.mxu0 0.0
        %1560 = vmatprep.subr.mxu0 0.0
        %1561 = vmatpush1.xpose.msra.mxu0 0.0
        %1562 = vmatprep.subr.mxu0 0.0
        %1563 = vmatpush1.xpose.msra.mxu0 0.0
        %1564 = vmatprep.subr.mxu0 0.0
        %1565 = vmatpush1.xpose.msra.mxu0 0.0
        %1566 = vmatprep.subr.mxu0 0.0
        %1567 = vmatpush1.xpose.msra.mxu0 0.0
        %1568 = vmatprep.subr.mxu0 0.0
        %1569 = vmatpush1.xpose.msra.mxu0 0.0
        %1570 = vmatprep.subr.mxu0 0.0
        %1571 = vmatpush1.xpose.msra.mxu0 0.0
        %1572 = vmatprep.subr.mxu0 0.0
        %1573 = vmatpush1.xpose.msra.mxu0 0.0
        %1574 = vmatprep.subr.mxu0 0.0
        %1575 = vmatpush1.xpose.msra.mxu0 0.0
        %1576 = vmatprep.subr.mxu0 0.0
        %1577 = vmatpush1.xpose.msra.mxu0 0.0
        %1578 = vmatprep.subr.mxu0 0.0
        %1579 = vmatpush1.xpose.msra.mxu0 0.0
        %1580 = vmatprep.subr.mxu0 0.0
        %1581 = vmatpush1.xpose.msra.mxu0 0.0
        %1582 = vmatprep.subr.mxu0 0.0
        %1583 = vmatpush1.xpose.msra.mxu0 0.0
        %1584 = vmatprep.subr.mxu0 0.0
        %1585 = vmatpush1.xpose.msra.mxu0 0.0
        %1586 = vmatprep.mubr.f32.mxu0 0.0
        %1587 = vmatmul.mubr.f32.gmra.mrb[0].mxu0 %v1518
        %v1588 = vpop.f32.mrb[0].mxu0
        %v1589 = vadd.f32 0.0, %v1588
        %v1590 = vpop.f32.mrb[0].mxu0
        %1591 = vdwg.mxu0
        %vm1592 = vcmask 64512
        %v1593 = vsel %vm1592, %v1589, -inf
        %1594 = vmax.xlane.f32.xlu0 %v1593
        %v1595 = vpop.xlane.xlu0 %1594
        %v1596 = vsub.f32 %v1589, %v1595
        %v1597 = vmul.f32 %v1596, 1.442695
        %v1598 = vpow.pop %v1597
        %v1599 = vsel %vm1592, %v1598, 0.0
        %1600 = vadd.xlane.f32.xlu0 %v1599
        %v1601 = vpop.xlane.xlu0 %1600
        %v1602 = vrcp.pop %v1601
        %v1603 = vmul.f32 %v1598, %v1602
        %v1605 = vsel %vm1592, %v1603, 0
        %1607 = vmatprep.subr.mxu0 0.0
        %1608 = vmatpush1.msra.mxu0 %v1510
        %1609 = vmatprep.subr.mxu0 0.0
        %1610 = vmatpush1.msra.mxu0 0.0
        %1611 = vmatprep.subr.mxu0 0.0
        %1612 = vmatpush1.msra.mxu0 0.0
        %1613 = vmatprep.subr.mxu0 0.0
        %1614 = vmatpush1.msra.mxu0 0.0
        %1615 = vmatprep.subr.mxu0 0.0
        %1616 = vmatpush1.msra.mxu0 0.0
        %1617 = vmatprep.subr.mxu0 0.0
        %1618 = vmatpush1.msra.mxu0 0.0
        %1619 = vmatprep.subr.mxu0 0.0
        %1620 = vmatpush1.msra.mxu0 0.0
        %1621 = vmatprep.subr.mxu0 0.0
        %1622 = vmatpush1.msra.mxu0 0.0
        %1623 = vmatprep.subr.mxu0 0.0
        %1624 = vmatpush1.msra.mxu0 0.0
        %1625 = vmatprep.subr.mxu0 0.0
        %1626 = vmatpush1.msra.mxu0 0.0
        %1627 = vmatprep.subr.mxu0 0.0
        %1628 = vmatpush1.msra.mxu0 0.0
        %1629 = vmatprep.subr.mxu0 0.0
        %1630 = vmatpush1.msra.mxu0 0.0
        %1631 = vmatprep.subr.mxu0 0.0
        %1632 = vmatpush1.msra.mxu0 0.0
        %1633 = vmatprep.subr.mxu0 0.0
        %1634 = vmatpush1.msra.mxu0 0.0
        %1635 = vmatprep.subr.mxu0 0.0
        %1636 = vmatpush1.msra.mxu0 0.0
        %1637 = vmatprep.subr.mxu0 0.0
        %1638 = vmatpush1.msra.mxu0 0.0
        %1639 = vmatprep.subr.mxu0 0.0
        %1640 = vmatpush1.msra.mxu0 0.0
        %1641 = vmatprep.subr.mxu0 0.0
        %1642 = vmatpush1.msra.mxu0 0.0
        %1643 = vmatprep.subr.mxu0 0.0
        %1644 = vmatpush1.msra.mxu0 0.0
        %1645 = vmatprep.subr.mxu0 0.0
        %1646 = vmatpush1.msra.mxu0 0.0
        %1647 = vmatprep.subr.mxu0 0.0
        %1648 = vmatpush1.msra.mxu0 0.0
        %1649 = vmatprep.subr.mxu0 0.0
        %1650 = vmatpush1.msra.mxu0 0.0
        %1651 = vmatprep.subr.mxu0 0.0
        %1652 = vmatpush1.msra.mxu0 0.0
        %1653 = vmatprep.subr.mxu0 0.0
        %1654 = vmatpush1.msra.mxu0 0.0
        %1655 = vmatprep.subr.mxu0 0.0
        %1656 = vmatpush1.msra.mxu0 0.0
        %1657 = vmatprep.subr.mxu0 0.0
        %1658 = vmatpush1.msra.mxu0 0.0
        %1659 = vmatprep.subr.mxu0 0.0
        %1660 = vmatpush1.msra.mxu0 0.0
        %1661 = vmatprep.subr.mxu0 0.0
        %1662 = vmatpush1.msra.mxu0 0.0
        %1663 = vmatprep.subr.mxu0 0.0
        %1664 = vmatpush1.msra.mxu0 0.0
        %1665 = vmatprep.subr.mxu0 0.0
        %1666 = vmatpush1.msra.mxu0 0.0
        %1667 = vmatprep.subr.mxu0 0.0
        %1668 = vmatpush1.msra.mxu0 0.0
        %1669 = vmatprep.subr.mxu0 0.0
        %1670 = vmatpush1.msra.mxu0 0.0
        %1671 = vmatprep.mubr.f32.mxu0 0.0
        %1672 = vmatmul.mubr.f32.gmra.mrb[0].mxu0 %v1605
        %v1673 = vpop.f32.mrb[0].mxu0
        %v1674 = vadd.f32 0.0, %v1673
        %v1675 = vpop.f32.mrb[0].mxu0
        %1676 = vdwg.mxu0
        %1677 = vrot.lane.b32.xlu0 %v1512, 112
        %v1678 = vpop.permute.xlu0 %1677
        %1679 = vrot.lane.b32.xlu0 %v1508, 48
        %v1680 = vpop.permute.xlu0 %1679
        %v1681 = vsel %vm1516, %v1678, 0
        %v1683 = vsel %vm1516, %v1680, 0
        %1685 = vmatprep.subr.mxu0 0.0
        %1686 = vmatpush1.xpose.msra.mxu0 %v1683
        %1687 = vmatprep.subr.mxu0 0.0
        %1688 = vmatpush1.xpose.msra.mxu0 0.0
        %1689 = vmatprep.subr.mxu0 0.0
        %1690 = vmatpush1.xpose.msra.mxu0 0.0
        %1691 = vmatprep.subr.mxu0 0.0
        %1692 = vmatpush1.xpose.msra.mxu0 0.0
        %1693 = vmatprep.subr.mxu0 0.0
        %1694 = vmatpush1.xpose.msra.mxu0 0.0
        %1695 = vmatprep.subr.mxu0 0.0
        %1696 = vmatpush1.xpose.msra.mxu0 0.0
        %1697 = vmatprep.subr.mxu0 0.0
        %1698 = vmatpush1.xpose.msra.mxu0 0.0
        %1699 = vmatprep.subr.mxu0 0.0
        %1700 = vmatpush1.xpose.msra.mxu0 0.0
        %1701 = vmatprep.subr.mxu0 0.0
        %1702 = vmatpush1.xpose.msra.mxu0 0.0
        %1703 = vmatprep.subr.mxu0 0.0
        %1704 = vmatpush1.xpose.msra.mxu0 0.0
        %1705 = vmatprep.subr.mxu0 0.0
        %1706 = vmatpush1.xpose.msra.mxu0 0.0
        %1707 = vmatprep.subr.mxu0 0.0
        %1708 = vmatpush1.xpose.msra.mxu0 0.0
        %1709 = vmatprep.subr.mxu0 0.0
        %1710 = vmatpush1.xpose.msra.mxu0 0.0
        %1711 = vmatprep.subr.mxu0 0.0
        %1712 = vmatpush1.xpose.msra.mxu0 0.0
        %1713 = vmatprep.subr.mxu0 0.0
        %1714 = vmatpush1.xpose.msra.mxu0 0.0
        %1715 = vmatprep.subr.mxu0 0.0
        %1716 = vmatpush1.xpose.msra.mxu0 0.0
        %1717 = vmatprep.subr.mxu0 0.0
        %1718 = vmatpush1.xpose.msra.mxu0 0.0
        %1719 = vmatprep.subr.mxu0 0.0
        %1720 = vmatpush1.xpose.msra.mxu0 0.0
        %1721 = vmatprep.subr.mxu0 0.0
        %1722 = vmatpush1.xpose.msra.mxu0 0.0
        %1723 = vmatprep.subr.mxu0 0.0
        %1724 = vmatpush1.xpose.msra.mxu0 0.0
        %1725 = vmatprep.subr.mxu0 0.0
        %1726 = vmatpush1.xpose.msra.mxu0 0.0
        %1727 = vmatprep.subr.mxu0 0.0
        %1728 = vmatpush1.xpose.msra.mxu0 0.0
        %1729 = vmatprep.subr.mxu0 0.0
        %1730 = vmatpush1.xpose.msra.mxu0 0.0
        %1731 = vmatprep.subr.mxu0 0.0
        %1732 = vmatpush1.xpose.msra.mxu0 0.0
        %1733 = vmatprep.subr.mxu0 0.0
        %1734 = vmatpush1.xpose.msra.mxu0 0.0
        %1735 = vmatprep.subr.mxu0 0.0
        %1736 = vmatpush1.xpose.msra.mxu0 0.0
        %1737 = vmatprep.subr.mxu0 0.0
        %1738 = vmatpush1.xpose.msra.mxu0 0.0
        %1739 = vmatprep.subr.mxu0 0.0
        %1740 = vmatpush1.xpose.msra.mxu0 0.0
        %1741 = vmatprep.subr.mxu0 0.0
        %1742 = vmatpush1.xpose.msra.mxu0 0.0
        %1743 = vmatprep.subr.mxu0 0.0
        %1744 = vmatpush1.xpose.msra.mxu0 0.0
        %1745 = vmatprep.subr.mxu0 0.0
        %1746 = vmatpush1.xpose.msra.mxu0 0.0
        %1747 = vmatprep.subr.mxu0 0.0
        %1748 = vmatpush1.xpose.msra.mxu0 0.0
        %1749 = vmatprep.mubr.f32.mxu0 0.0
        %1750 = vmatmul.mubr.f32.gmra.mrb[0].mxu0 %v1681
        %v1751 = vpop.f32.mrb[0].mxu0
        %v1752 = vadd.f32 0.0, %v1751
        %v1753 = vpop.f32.mrb[0].mxu0
        %1754 = vdwg.mxu0
        %v1755 = vsel %vm1592, %v1752, -inf
        %1756 = vmax.xlane.f32.xlu0 %v1755
        %v1757 = vpop.xlane.xlu0 %1756
        %v1758 = vsub.f32 %v1752, %v1757
        %v1759 = vmul.f32 %v1758, 1.442695
        %v1760 = vpow.pop %v1759
        %v1761 = vsel %vm1592, %v1760, 0.0
        %1762 = vadd.xlane.f32.xlu0 %v1761
        %v1763 = vpop.xlane.xlu0 %1762
        %v1764 = vrcp.pop %v1763
        %v1765 = vmul.f32 %v1760, %v1764
        %1767 = vrot.lane.b32.xlu0 %v1510, 112
        %v1768 = vpop.permute.xlu0 %1767
        %v1771 = vsel %vm1592, %v1765, 0
        %1773 = vmatprep.subr.mxu0 0.0
        %1774 = vmatpush1.msra.mxu0 %v1768
        %1775 = vmatprep.subr.mxu0 0.0
        %1776 = vmatpush1.msra.mxu0 0.0
        %1777 = vmatprep.subr.mxu0 0.0
        %1778 = vmatpush1.msra.mxu0 0.0
        %1779 = vmatprep.subr.mxu0 0.0
        %1780 = vmatpush1.msra.mxu0 0.0
        %1781 = vmatprep.subr.mxu0 0.0
        %1782 = vmatpush1.msra.mxu0 0.0
        %1783 = vmatprep.subr.mxu0 0.0
        %1784 = vmatpush1.msra.mxu0 0.0
        %1785 = vmatprep.subr.mxu0 0.0
        %1786 = vmatpush1.msra.mxu0 0.0
        %1787 = vmatprep.subr.mxu0 0.0
        %1788 = vmatpush1.msra.mxu0 0.0
        %1789 = vmatprep.subr.mxu0 0.0
        %1790 = vmatpush1.msra.mxu0 0.0
        %1791 = vmatprep.subr.mxu0 0.0
        %1792 = vmatpush1.msra.mxu0 0.0
        %1793 = vmatprep.subr.mxu0 0.0
        %1794 = vmatpush1.msra.mxu0 0.0
        %1795 = vmatprep.subr.mxu0 0.0
        %1796 = vmatpush1.msra.mxu0 0.0
        %1797 = vmatprep.subr.mxu0 0.0
        %1798 = vmatpush1.msra.mxu0 0.0
        %1799 = vmatprep.subr.mxu0 0.0
        %1800 = vmatpush1.msra.mxu0 0.0
        %1801 = vmatprep.subr.mxu0 0.0
        %1802 = vmatpush1.msra.mxu0 0.0
        %1803 = vmatprep.subr.mxu0 0.0
        %1804 = vmatpush1.msra.mxu0 0.0
        %1805 = vmatprep.subr.mxu0 0.0
        %1806 = vmatpush1.msra.mxu0 0.0
        %1807 = vmatprep.subr.mxu0 0.0
        %1808 = vmatpush1.msra.mxu0 0.0
        %1809 = vmatprep.subr.mxu0 0.0
        %1810 = vmatpush1.msra.mxu0 0.0
        %1811 = vmatprep.subr.mxu0 0.0
        %1812 = vmatpush1.msra.mxu0 0.0
        %1813 = vmatprep.subr.mxu0 0.0
        %1814 = vmatpush1.msra.mxu0 0.0
        %1815 = vmatprep.subr.mxu0 0.0
        %1816 = vmatpush1.msra.mxu0 0.0
        %1817 = vmatprep.subr.mxu0 0.0
        %1818 = vmatpush1.msra.mxu0 0.0
        %1819 = vmatprep.subr.mxu0 0.0
        %1820 = vmatpush1.msra.mxu0 0.0
        %1821 = vmatprep.subr.mxu0 0.0
        %1822 = vmatpush1.msra.mxu0 0.0
        %1823 = vmatprep.subr.mxu0 0.0
        %1824 = vmatpush1.msra.mxu0 0.0
        %1825 = vmatprep.subr.mxu0 0.0
        %1826 = vmatpush1.msra.mxu0 0.0
        %1827 = vmatprep.subr.mxu0 0.0
        %1828 = vmatpush1.msra.mxu0 0.0
        %1829 = vmatprep.subr.mxu0 0.0
        %1830 = vmatpush1.msra.mxu0 0.0
        %1831 = vmatprep.subr.mxu0 0.0
        %1832 = vmatpush1.msra.mxu0 0.0
        %1833 = vmatprep.subr.mxu0 0.0
        %1834 = vmatpush1.msra.mxu0 0.0
        %1835 = vmatprep.subr.mxu0 0.0
        %1836 = vmatpush1.msra.mxu0 0.0
        %1837 = vmatprep.mubr.f32.mxu0 0.0
        %1838 = vmatmul.mubr.f32.gmra.mrb[0].mxu0 %v1771
        %v1839 = vpop.f32.mrb[0].mxu0
        %v1840 = vadd.f32 0.0, %v1839
        %v1841 = vpop.f32.mrb[0].mxu0
        %1842 = vdwg.mxu0
        %1843 = vrot.lane.b32.xlu0 %v1512, 96
        %v1844 = vpop.permute.xlu0 %1843
        %1845 = vrot.lane.b32.xlu0 %v1508, 32
        %v1846 = vpop.permute.xlu0 %1845
        %v1847 = vsel %vm1516, %v1844, 0
        %v1849 = vsel %vm1516, %v1846, 0
        %1851 = vmatprep.subr.mxu0 0.0
        %1852 = vmatpush1.xpose.msra.mxu0 %v1849
        %1853 = vmatprep.subr.mxu0 0.0
        %1854 = vmatpush1.xpose.msra.mxu0 0.0
        %1855 = vmatprep.subr.mxu0 0.0
        %1856 = vmatpush1.xpose.msra.mxu0 0.0
        %1857 = vmatprep.subr.mxu0 0.0
        %1858 = vmatpush1.xpose.msra.mxu0 0.0
        %1859 = vmatprep.subr.mxu0 0.0
        %1860 = vmatpush1.xpose.msra.mxu0 0.0
        %1861 = vmatprep.subr.mxu0 0.0
        %1862 = vmatpush1.xpose.msra.mxu0 0.0
        %1863 = vmatprep.subr.mxu0 0.0
        %1864 = vmatpush1.xpose.msra.mxu0 0.0
        %1865 = vmatprep.subr.mxu0 0.0
        %1866 = vmatpush1.xpose.msra.mxu0 0.0
        %1867 = vmatprep.subr.mxu0 0.0
        %1868 = vmatpush1.xpose.msra.mxu0 0.0
        %1869 = vmatprep.subr.mxu0 0.0
        %1870 = vmatpush1.xpose.msra.mxu0 0.0
        %1871 = vmatprep.subr.mxu0 0.0
        %1872 = vmatpush1.xpose.msra.mxu0 0.0
        %1873 = vmatprep.subr.mxu0 0.0
        %1874 = vmatpush1.xpose.msra.mxu0 0.0
        %1875 = vmatprep.subr.mxu0 0.0
        %1876 = vmatpush1.xpose.msra.mxu0 0.0
        %1877 = vmatprep.subr.mxu0 0.0
        %1878 = vmatpush1.xpose.msra.mxu0 0.0
        %1879 = vmatprep.subr.mxu0 0.0
        %1880 = vmatpush1.xpose.msra.mxu0 0.0
        %1881 = vmatprep.subr.mxu0 0.0
        %1882 = vmatpush1.xpose.msra.mxu0 0.0
        %1883 = vmatprep.subr.mxu0 0.0
        %1884 = vmatpush1.xpose.msra.mxu0 0.0
        %1885 = vmatprep.subr.mxu0 0.0
        %1886 = vmatpush1.xpose.msra.mxu0 0.0
        %1887 = vmatprep.subr.mxu0 0.0
        %1888 = vmatpush1.xpose.msra.mxu0 0.0
        %1889 = vmatprep.subr.mxu0 0.0
        %1890 = vmatpush1.xpose.msra.mxu0 0.0
        %1891 = vmatprep.subr.mxu0 0.0
        %1892 = vmatpush1.xpose.msra.mxu0 0.0
        %1893 = vmatprep.subr.mxu0 0.0
        %1894 = vmatpush1.xpose.msra.mxu0 0.0
        %1895 = vmatprep.subr.mxu0 0.0
        %1896 = vmatpush1.xpose.msra.mxu0 0.0
        %1897 = vmatprep.subr.mxu0 0.0
        %1898 = vmatpush1.xpose.msra.mxu0 0.0
        %1899 = vmatprep.subr.mxu0 0.0
        %1900 = vmatpush1.xpose.msra.mxu0 0.0
        %1901 = vmatprep.subr.mxu0 0.0
        %1902 = vmatpush1.xpose.msra.mxu0 0.0
        %1903 = vmatprep.subr.mxu0 0.0
        %1904 = vmatpush1.xpose.msra.mxu0 0.0
        %1905 = vmatprep.subr.mxu0 0.0
        %1906 = vmatpush1.xpose.msra.mxu0 0.0
        %1907 = vmatprep.subr.mxu0 0.0
        %1908 = vmatpush1.xpose.msra.mxu0 0.0
        %1909 = vmatprep.subr.mxu0 0.0
        %1910 = vmatpush1.xpose.msra.mxu0 0.0
        %1911 = vmatprep.subr.mxu0 0.0
        %1912 = vmatpush1.xpose.msra.mxu0 0.0
        %1913 = vmatprep.subr.mxu0 0.0
        %1914 = vmatpush1.xpose.msra.mxu0 0.0
        %1915 = vmatprep.mubr.f32.mxu0 0.0
        %1916 = vmatmul.mubr.f32.gmra.mrb[0].mxu0 %v1847
        %v1917 = vpop.f32.mrb[0].mxu0
        %v1918 = vadd.f32 0.0, %v1917
        %v1919 = vpop.f32.mrb[0].mxu0
        %1920 = vdwg.mxu0
        %v1921 = vsel %vm1592, %v1918, -inf
        %1922 = vmax.xlane.f32.xlu0 %v1921
        %v1923 = vpop.xlane.xlu0 %1922
        %v1924 = vsub.f32 %v1918, %v1923
        %v1925 = vmul.f32 %v1924, 1.442695
        %v1926 = vpow.pop %v1925
        %v1927 = vsel %vm1592, %v1926, 0.0
        %1928 = vadd.xlane.f32.xlu0 %v1927
        %v1929 = vpop.xlane.xlu0 %1928
        %v1930 = vrcp.pop %v1929
        %v1931 = vmul.f32 %v1926, %v1930
        %1932 = vrot.lane.b32.xlu0 %v1510, 96
        %v1933 = vpop.permute.xlu0 %1932
        %v1936 = vsel %vm1592, %v1931, 0
        %1938 = vmatprep.subr.mxu0 0.0
        %1939 = vmatpush1.msra.mxu0 %v1933
        %1940 = vmatprep.subr.mxu0 0.0
        %1941 = vmatpush1.msra.mxu0 0.0
        %1942 = vmatprep.subr.mxu0 0.0
        %1943 = vmatpush1.msra.mxu0 0.0
        %1944 = vmatprep.subr.mxu0 0.0
        %1945 = vmatpush1.msra.mxu0 0.0
        %1946 = vmatprep.subr.mxu0 0.0
        %1947 = vmatpush1.msra.mxu0 0.0
        %1948 = vmatprep.subr.mxu0 0.0
        %1949 = vmatpush1.msra.mxu0 0.0
        %1950 = vmatprep.subr.mxu0 0.0
        %1951 = vmatpush1.msra.mxu0 0.0
        %1952 = vmatprep.subr.mxu0 0.0
        %1953 = vmatpush1.msra.mxu0 0.0
        %1954 = vmatprep.subr.mxu0 0.0
        %1955 = vmatpush1.msra.mxu0 0.0
        %1956 = vmatprep.subr.mxu0 0.0
        %1957 = vmatpush1.msra.mxu0 0.0
        %1958 = vmatprep.subr.mxu0 0.0
        %1959 = vmatpush1.msra.mxu0 0.0
        %1960 = vmatprep.subr.mxu0 0.0
        %1961 = vmatpush1.msra.mxu0 0.0
        %1962 = vmatprep.subr.mxu0 0.0
        %1963 = vmatpush1.msra.mxu0 0.0
        %1964 = vmatprep.subr.mxu0 0.0
        %1965 = vmatpush1.msra.mxu0 0.0
        %1966 = vmatprep.subr.mxu0 0.0
        %1967 = vmatpush1.msra.mxu0 0.0
        %1968 = vmatprep.subr.mxu0 0.0
        %1969 = vmatpush1.msra.mxu0 0.0
        %1970 = vmatprep.subr.mxu0 0.0
        %1971 = vmatpush1.msra.mxu0 0.0
        %1972 = vmatprep.subr.mxu0 0.0
        %1973 = vmatpush1.msra.mxu0 0.0
        %1974 = vmatprep.subr.mxu0 0.0
        %1975 = vmatpush1.msra.mxu0 0.0
        %1976 = vmatprep.subr.mxu0 0.0
        %1977 = vmatpush1.msra.mxu0 0.0
        %1978 = vmatprep.subr.mxu0 0.0
        %1979 = vmatpush1.msra.mxu0 0.0
        %1980 = vmatprep.subr.mxu0 0.0
        %1981 = vmatpush1.msra.mxu0 0.0
        %1982 = vmatprep.subr.mxu0 0.0
        %1983 = vmatpush1.msra.mxu0 0.0
        %1984 = vmatprep.subr.mxu0 0.0
        %1985 = vmatpush1.msra.mxu0 0.0
        %1986 = vmatprep.subr.mxu0 0.0
        %1987 = vmatpush1.msra.mxu0 0.0
        %1988 = vmatprep.subr.mxu0 0.0
        %1989 = vmatpush1.msra.mxu0 0.0
        %1990 = vmatprep.subr.mxu0 0.0
        %1991 = vmatpush1.msra.mxu0 0.0
        %1992 = vmatprep.subr.mxu0 0.0
        %1993 = vmatpush1.msra.mxu0 0.0
        %1994 = vmatprep.subr.mxu0 0.0
        %1995 = vmatpush1.msra.mxu0 0.0
        %1996 = vmatprep.subr.mxu0 0.0
        %1997 = vmatpush1.msra.mxu0 0.0
        %1998 = vmatprep.subr.mxu0 0.0
        %1999 = vmatpush1.msra.mxu0 0.0
        %2000 = vmatprep.subr.mxu0 0.0
        %2001 = vmatpush1.msra.mxu0 0.0
        %2002 = vmatprep.mubr.f32.mxu0 0.0
        %2003 = vmatmul.mubr.f32.gmra.mrb[0].mxu0 %v1936
        %v2004 = vpop.f32.mrb[0].mxu0
        %v2005 = vadd.f32 0.0, %v2004
        %v2006 = vpop.f32.mrb[0].mxu0
        %2007 = vdwg.mxu0
        %2008 = vrot.lane.b32.xlu0 %v1512, 80
        %v2009 = vpop.permute.xlu0 %2008
        %2010 = vrot.lane.b32.xlu0 %v1508, 16
        %v2011 = vpop.permute.xlu0 %2010
        %v2012 = vsel %vm1516, %v2009, 0
        %v2014 = vsel %vm1516, %v2011, 0
        %2016 = vmatprep.subr.mxu0 0.0
        %2017 = vmatpush1.xpose.msra.mxu0 %v2014
        %2018 = vmatprep.subr.mxu0 0.0
        %2019 = vmatpush1.xpose.msra.mxu0 0.0
        %2020 = vmatprep.subr.mxu0 0.0
        %2021 = vmatpush1.xpose.msra.mxu0 0.0
        %2022 = vmatprep.subr.mxu0 0.0
        %2023 = vmatpush1.xpose.msra.mxu0 0.0
        %2024 = vmatprep.subr.mxu0 0.0
        %2025 = vmatpush1.xpose.msra.mxu0 0.0
        %2026 = vmatprep.subr.mxu0 0.0
        %2027 = vmatpush1.xpose.msra.mxu0 0.0
        %2028 = vmatprep.subr.mxu0 0.0
        %2029 = vmatpush1.xpose.msra.mxu0 0.0
        %2030 = vmatprep.subr.mxu0 0.0
        %2031 = vmatpush1.xpose.msra.mxu0 0.0
        %2032 = vmatprep.subr.mxu0 0.0
        %2033 = vmatpush1.xpose.msra.mxu0 0.0
        %2034 = vmatprep.subr.mxu0 0.0
        %2035 = vmatpush1.xpose.msra.mxu0 0.0
        %2036 = vmatprep.subr.mxu0 0.0
        %2037 = vmatpush1.xpose.msra.mxu0 0.0
        %2038 = vmatprep.subr.mxu0 0.0
        %2039 = vmatpush1.xpose.msra.mxu0 0.0
        %2040 = vmatprep.subr.mxu0 0.0
        %2041 = vmatpush1.xpose.msra.mxu0 0.0
        %2042 = vmatprep.subr.mxu0 0.0
        %2043 = vmatpush1.xpose.msra.mxu0 0.0
        %2044 = vmatprep.subr.mxu0 0.0
        %2045 = vmatpush1.xpose.msra.mxu0 0.0
        %2046 = vmatprep.subr.mxu0 0.0
        %2047 = vmatpush1.xpose.msra.mxu0 0.0
        %2048 = vmatprep.subr.mxu0 0.0
        %2049 = vmatpush1.xpose.msra.mxu0 0.0
        %2050 = vmatprep.subr.mxu0 0.0
        %2051 = vmatpush1.xpose.msra.mxu0 0.0
        %2052 = vmatprep.subr.mxu0 0.0
        %2053 = vmatpush1.xpose.msra.mxu0 0.0
        %2054 = vmatprep.subr.mxu0 0.0
        %2055 = vmatpush1.xpose.msra.mxu0 0.0
        %2056 = vmatprep.subr.mxu0 0.0
        %2057 = vmatpush1.xpose.msra.mxu0 0.0
        %2058 = vmatprep.subr.mxu0 0.0
        %2059 = vmatpush1.xpose.msra.mxu0 0.0
        %2060 = vmatprep.subr.mxu0 0.0
        %2061 = vmatpush1.xpose.msra.mxu0 0.0
        %2062 = vmatprep.subr.mxu0 0.0
        %2063 = vmatpush1.xpose.msra.mxu0 0.0
        %2064 = vmatprep.subr.mxu0 0.0
        %2065 = vmatpush1.xpose.msra.mxu0 0.0
        %2066 = vmatprep.subr.mxu0 0.0
        %2067 = vmatpush1.xpose.msra.mxu0 0.0
        %2068 = vmatprep.subr.mxu0 0.0
        %2069 = vmatpush1.xpose.msra.mxu0 0.0
        %2070 = vmatprep.subr.mxu0 0.0
        %2071 = vmatpush1.xpose.msra.mxu0 0.0
        %2072 = vmatprep.subr.mxu0 0.0
        %2073 = vmatpush1.xpose.msra.mxu0 0.0
        %2074 = vmatprep.subr.mxu0 0.0
        %2075 = vmatpush1.xpose.msra.mxu0 0.0
        %2076 = vmatprep.subr.mxu0 0.0
        %2077 = vmatpush1.xpose.msra.mxu0 0.0
        %2078 = vmatprep.subr.mxu0 0.0
        %2079 = vmatpush1.xpose.msra.mxu0 0.0
        %2080 = vmatprep.mubr.f32.mxu0 0.0
        %2081 = vmatmul.mubr.f32.gmra.mrb[0].mxu0 %v2012
        %v2082 = vpop.f32.mrb[0].mxu0
        %v2083 = vadd.f32 0.0, %v2082
        %v2084 = vpop.f32.mrb[0].mxu0
        %2085 = vdwg.mxu0
        %v2086 = vsel %vm1592, %v2083, -inf
        %2087 = vmax.xlane.f32.xlu0 %v2086
        %v2088 = vpop.xlane.xlu0 %2087
        %v2089 = vsub.f32 %v2083, %v2088
        %v2090 = vmul.f32 %v2089, 1.442695
        %v2091 = vpow.pop %v2090
        %v2092 = vsel %vm1592, %v2091, 0.0
        %2093 = vadd.xlane.f32.xlu0 %v2092
        %v2094 = vpop.xlane.xlu0 %2093
        %v2095 = vrcp.pop %v2094
        %v2096 = vmul.f32 %v2091, %v2095
        %2097 = vrot.lane.b32.xlu0 %v1510, 80
        %v2098 = vpop.permute.xlu0 %2097
        %v2101 = vsel %vm1592, %v2096, 0
        %2103 = vmatprep.subr.mxu0 0.0
        %2104 = vmatpush1.msra.mxu0 %v2098
        %2105 = vmatprep.subr.mxu0 0.0
        %2106 = vmatpush1.msra.mxu0 0.0
        %2107 = vmatprep.subr.mxu0 0.0
        %2108 = vmatpush1.msra.mxu0 0.0
        %2109 = vmatprep.subr.mxu0 0.0
        %2110 = vmatpush1.msra.mxu0 0.0
        %2111 = vmatprep.subr.mxu0 0.0
        %2112 = vmatpush1.msra.mxu0 0.0
        %2113 = vmatprep.subr.mxu0 0.0
        %2114 = vmatpush1.msra.mxu0 0.0
        %2115 = vmatprep.subr.mxu0 0.0
        %2116 = vmatpush1.msra.mxu0 0.0
        %2117 = vmatprep.subr.mxu0 0.0
        %2118 = vmatpush1.msra.mxu0 0.0
        %2119 = vmatprep.subr.mxu0 0.0
        %2120 = vmatpush1.msra.mxu0 0.0
        %2121 = vmatprep.subr.mxu0 0.0
        %2122 = vmatpush1.msra.mxu0 0.0
        %2123 = vmatprep.subr.mxu0 0.0
        %2124 = vmatpush1.msra.mxu0 0.0
        %2125 = vmatprep.subr.mxu0 0.0
        %2126 = vmatpush1.msra.mxu0 0.0
        %2127 = vmatprep.subr.mxu0 0.0
        %2128 = vmatpush1.msra.mxu0 0.0
        %2129 = vmatprep.subr.mxu0 0.0
        %2130 = vmatpush1.msra.mxu0 0.0
        %2131 = vmatprep.subr.mxu0 0.0
        %2132 = vmatpush1.msra.mxu0 0.0
        %2133 = vmatprep.subr.mxu0 0.0
        %2134 = vmatpush1.msra.mxu0 0.0
        %2135 = vmatprep.subr.mxu0 0.0
        %2136 = vmatpush1.msra.mxu0 0.0
        %2137 = vmatprep.subr.mxu0 0.0
        %2138 = vmatpush1.msra.mxu0 0.0
        %2139 = vmatprep.subr.mxu0 0.0
        %2140 = vmatpush1.msra.mxu0 0.0
        %2141 = vmatprep.subr.mxu0 0.0
        %2142 = vmatpush1.msra.mxu0 0.0
        %2143 = vmatprep.subr.mxu0 0.0
        %2144 = vmatpush1.msra.mxu0 0.0
        %2145 = vmatprep.subr.mxu0 0.0
        %2146 = vmatpush1.msra.mxu0 0.0
        %2147 = vmatprep.subr.mxu0 0.0
        %2148 = vmatpush1.msra.mxu0 0.0
        %2149 = vmatprep.subr.mxu0 0.0
        %2150 = vmatpush1.msra.mxu0 0.0
        %2151 = vmatprep.subr.mxu0 0.0
        %2152 = vmatpush1.msra.mxu0 0.0
        %2153 = vmatprep.subr.mxu0 0.0
        %2154 = vmatpush1.msra.mxu0 0.0
        %2155 = vmatprep.subr.mxu0 0.0
        %2156 = vmatpush1.msra.mxu0 0.0
        %2157 = vmatprep.subr.mxu0 0.0
        %2158 = vmatpush1.msra.mxu0 0.0
        %2159 = vmatprep.subr.mxu0 0.0
        %2160 = vmatpush1.msra.mxu0 0.0
        %2161 = vmatprep.subr.mxu0 0.0
        %2162 = vmatpush1.msra.mxu0 0.0
        %2163 = vmatprep.subr.mxu0 0.0
        %2164 = vmatpush1.msra.mxu0 0.0
        %2165 = vmatprep.subr.mxu0 0.0
        %2166 = vmatpush1.msra.mxu0 0.0
        %2167 = vmatprep.mubr.f32.mxu0 0.0
        %2168 = vmatmul.mubr.f32.gmra.mrb[0].mxu0 %v2101
        %v2169 = vpop.f32.mrb[0].mxu0
        %v2170 = vadd.f32 0.0, %v2169
        %v2171 = vpop.f32.mrb[0].mxu0
        %2172 = vdwg.mxu0
        %2174 = vrot.lane.b32.xlu0 %v1840, 16
        %v2175 = vpop.permute.xlu0 %2174
        %2178 = vrot.lane.b32.xlu0 %v2005, 32
        %v2179 = vpop.permute.xlu0 %2178
        %2182 = vrot.lane.b32.xlu0 %v2170, 48
        %v2183 = vpop.permute.xlu0 %2182
        %v2185 = vsel %vm1516, %v1674, %v2175
        %v2186 = vsel %vm1147, %v2185, %v2179
        %vm2187 = vcmask 392192
        %v2188 = vsel %vm2187, %v2186, %v2183
        %v2190 = vlaneseq
        %v2191 = vshrl.u32 %v2190, 7
        %v2192 = vsub.s32 0, %v2191
        %v2193 = vrot.slane %v987, %v2192
        %v2196 = vsel %vm1410, %v2188, 0
        %2198 = vmatprep.subr.mxu0 0.0
        %2199 = vmatpush1.msra.mxu0 %v979
        %2200 = vmatprep.subr.mxu0 0.0
        %2201 = vmatpush1.msra.mxu0 %v980
        %2202 = vmatprep.subr.mxu0 0.0
        %2203 = vmatpush1.msra.mxu0 %v981
        %2204 = vmatprep.subr.mxu0 0.0
        %2205 = vmatpush1.msra.mxu0 %v982
        %2206 = vmatprep.subr.mxu0 0.0
        %2207 = vmatpush1.msra.mxu0 %v983
        %2208 = vmatprep.subr.mxu0 0.0
        %2209 = vmatpush1.msra.mxu0 %v984
        %2210 = vmatprep.subr.mxu0 0.0
        %2211 = vmatpush1.msra.mxu0 %v985
        %2212 = vmatprep.subr.mxu0 0.0
        %2213 = vmatpush1.msra.mxu0 %v986
        %2214 = vmatprep.subr.mxu0 0.0
        %2215 = vmatpush1.msra.mxu0 0.0
        %2216 = vmatprep.subr.mxu0 0.0
        %2217 = vmatpush1.msra.mxu0 0.0
        %2218 = vmatprep.subr.mxu0 0.0
        %2219 = vmatpush1.msra.mxu0 0.0
        %2220 = vmatprep.subr.mxu0 0.0
        %2221 = vmatpush1.msra.mxu0 0.0
        %2222 = vmatprep.subr.mxu0 0.0
        %2223 = vmatpush1.msra.mxu0 0.0
        %2224 = vmatprep.subr.mxu0 0.0
        %2225 = vmatpush1.msra.mxu0 0.0
        %2226 = vmatprep.subr.mxu0 0.0
        %2227 = vmatpush1.msra.mxu0 0.0
        %2228 = vmatprep.subr.mxu0 0.0
        %2229 = vmatpush1.msra.mxu0 0.0
        %2230 = vmatprep.subr.mxu0 0.0
        %2231 = vmatpush1.msra.mxu0 0.0
        %2232 = vmatprep.subr.mxu0 0.0
        %2233 = vmatpush1.msra.mxu0 0.0
        %2234 = vmatprep.subr.mxu0 0.0
        %2235 = vmatpush1.msra.mxu0 0.0
        %2236 = vmatprep.subr.mxu0 0.0
        %2237 = vmatpush1.msra.mxu0 0.0
        %2238 = vmatprep.subr.mxu0 0.0
        %2239 = vmatpush1.msra.mxu0 0.0
        %2240 = vmatprep.subr.mxu0 0.0
        %2241 = vmatpush1.msra.mxu0 0.0
        %2242 = vmatprep.subr.mxu0 0.0
        %2243 = vmatpush1.msra.mxu0 0.0
        %2244 = vmatprep.subr.mxu0 0.0
        %2245 = vmatpush1.msra.mxu0 0.0
        %2246 = vmatprep.subr.mxu0 0.0
        %2247 = vmatpush1.msra.mxu0 0.0
        %2248 = vmatprep.subr.mxu0 0.0
        %2249 = vmatpush1.msra.mxu0 0.0
        %2250 = vmatprep.subr.mxu0 0.0
        %2251 = vmatpush1.msra.mxu0 0.0
        %2252 = vmatprep.subr.mxu0 0.0
        %2253 = vmatpush1.msra.mxu0 0.0
        %2254 = vmatprep.subr.mxu0 0.0
        %2255 = vmatpush1.msra.mxu0 0.0
        %2256 = vmatprep.subr.mxu0 0.0
        %2257 = vmatpush1.msra.mxu0 0.0
        %2258 = vmatprep.subr.mxu0 0.0
        %2259 = vmatpush1.msra.mxu0 0.0
        %2260 = vmatprep.subr.mxu0 0.0
        %2261 = vmatpush1.msra.mxu0 0.0
        %2262 = vmatprep.mubr.f32.mxu0 0.0
        %2263 = vmatmul.mubr.f32.gmra.mrb[0].mxu0 %v2196
        %v2264 = vpop.f32.mrb[0].mxu0
        %v2265 = vadd.f32 %v2193, %v2264
        %v2266 = vpop.f32.mrb[0].mxu0
        %2267 = vdwg.mxu0
        %v2268 = vadd.f32 %v1426, %v2265
        %v2269 = vsel %vm1410, %v2268, 0.0
        %2270 = vadd.xlane.f32.xlu0 %v2269
        %v2271 = vpop.xlane.xlu0 %2270
        %v2272 = vmul.f32 %v2271, %v1414
        %v2273 = vsub.f32 %v2268, %v2272
        %v2274 = vmul.f32 %v2273, %v2273
        %v2275 = vsel %vm1410, %v2274, 0.0
        %2276 = vadd.xlane.f32.xlu0 %v2275
        %v2277 = vpop.xlane.xlu0 %2276
        %v2278 = vmul.f32 %v2277, %v1414
        %v2279 = vadd.f32 %v2278, 1e-05
        %v2280 = vrsqrt.pop %v2279
        %v2281 = vmul.f32 %v2273, %v2280
        %v2282 = vmul.f32 %v2281, %v1102
        %v2283 = vadd.f32 %v2282, %v1108
        %v2285 = vlaneseq
        %v2286 = vshrl.u32 %v2285, 7
        %v2287 = vsub.s32 0, %v2286
        %v2288 = vrot.slane %v996, %v2287
        %v2291 = vsel %vm1410, %v2283, 0
        %2293 = vmatprep.subr.mxu0 0.0
        %2294 = vmatpush1.msra.mxu0 %v988
        %2295 = vmatprep.subr.mxu0 0.0
        %2296 = vmatpush1.msra.mxu0 %v989
        %2297 = vmatprep.subr.mxu0 0.0
        %2298 = vmatpush1.msra.mxu0 %v990
        %2299 = vmatprep.subr.mxu0 0.0
        %2300 = vmatpush1.msra.mxu0 %v991
        %2301 = vmatprep.subr.mxu0 0.0
        %2302 = vmatpush1.msra.mxu0 %v992
        %2303 = vmatprep.subr.mxu0 0.0
        %2304 = vmatpush1.msra.mxu0 %v993
        %2305 = vmatprep.subr.mxu0 0.0
        %2306 = vmatpush1.msra.mxu0 %v994
        %2307 = vmatprep.subr.mxu0 0.0
        %2308 = vmatpush1.msra.mxu0 %v995
        %2309 = vmatprep.subr.mxu0 0.0
        %2310 = vmatpush1.msra.mxu0 0.0
        %2311 = vmatprep.subr.mxu0 0.0
        %2312 = vmatpush1.msra.mxu0 0.0
        %2313 = vmatprep.subr.mxu0 0.0
        %2314 = vmatpush1.msra.mxu0 0.0
        %2315 = vmatprep.subr.mxu0 0.0
        %2316 = vmatpush1.msra.mxu0 0.0
        %2317 = vmatprep.subr.mxu0 0.0
        %2318 = vmatpush1.msra.mxu0 0.0
        %2319 = vmatprep.subr.mxu0 0.0
        %2320 = vmatpush1.msra.mxu0 0.0
        %2321 = vmatprep.subr.mxu0 0.0
        %2322 = vmatpush1.msra.mxu0 0.0
        %2323 = vmatprep.subr.mxu0 0.0
        %2324 = vmatpush1.msra.mxu0 0.0
        %2325 = vmatprep.subr.mxu0 0.0
        %2326 = vmatpush1.msra.mxu0 0.0
        %2327 = vmatprep.subr.mxu0 0.0
        %2328 = vmatpush1.msra.mxu0 0.0
        %2329 = vmatprep.subr.mxu0 0.0
        %2330 = vmatpush1.msra.mxu0 0.0
        %2331 = vmatprep.subr.mxu0 0.0
        %2332 = vmatpush1.msra.mxu0 0.0
        %2333 = vmatprep.subr.mxu0 0.0
        %2334 = vmatpush1.msra.mxu0 0.0
        %2335 = vmatprep.subr.mxu0 0.0
        %2336 = vmatpush1.msra.mxu0 0.0
        %2337 = vmatprep.subr.mxu0 0.0
        %2338 = vmatpush1.msra.mxu0 0.0
        %2339 = vmatprep.subr.mxu0 0.0
        %2340 = vmatpush1.msra.mxu0 0.0
        %2341 = vmatprep.subr.mxu0 0.0
        %2342 = vmatpush1.msra.mxu0 0.0
        %2343 = vmatprep.subr.mxu0 0.0
        %2344 = vmatpush1.msra.mxu0 0.0
        %2345 = vmatprep.subr.mxu0 0.0
        %2346 = vmatpush1.msra.mxu0 0.0
        %2347 = vmatprep.subr.mxu0 0.0
        %2348 = vmatpush1.msra.mxu0 0.0
        %2349 = vmatprep.subr.mxu0 0.0
        %2350 = vmatpush1.msra.mxu0 0.0
        %2351 = vmatprep.subr.mxu0 0.0
        %2352 = vmatpush1.msra.mxu0 0.0
        %2353 = vmatprep.subr.mxu0 0.0
        %2354 = vmatpush1.msra.mxu0 0.0
        %2355 = vmatprep.subr.mxu0 0.0
        %2356 = vmatpush1.msra.mxu0 0.0
        %2357 = vmatprep.mubr.f32.mxu0 0.0
        %2358 = vmatmul.mubr.f32.gmra.mrb[0].mxu0 %v2291
        %v2359 = vpop.f32.mrb[0].mxu0
        %v2360 = vadd.f32 %v2288, %v2359
        %v2361 = vpop.f32.mrb[0].mxu0
        %2362 = vdwg.mxu0
        %v2363 = vmax.f32 %v2360, 0.0
        %v2365 = vlaneseq
        %v2366 = vshrl.u32 %v2365, 7
        %v2367 = vsub.s32 0, %v2366
        %v2368 = vrot.slane %v1013, %v2367
        %2370 = vmatprep.subr.mxu0 0.0
        %2371 = vmatpush1.msra.mxu0 %v997
        %2372 = vmatprep.subr.mxu0 0.0
        %2373 = vmatpush1.msra.mxu0 %v998
        %2374 = vmatprep.subr.mxu0 0.0
        %2375 = vmatpush1.msra.mxu0 %v999
        %2376 = vmatprep.subr.mxu0 0.0
        %2377 = vmatpush1.msra.mxu0 %v1000
        %2378 = vmatprep.subr.mxu0 0.0
        %2379 = vmatpush1.msra.mxu0 %v1001
        %2380 = vmatprep.subr.mxu0 0.0
        %2381 = vmatpush1.msra.mxu0 %v1002
        %2382 = vmatprep.subr.mxu0 0.0
        %2383 = vmatpush1.msra.mxu0 %v1003
        %2384 = vmatprep.subr.mxu0 0.0
        %2385 = vmatpush1.msra.mxu0 %v1004
        %2386 = vmatprep.subr.mxu0 0.0
        %2387 = vmatpush1.msra.mxu0 %v1005
        %2388 = vmatprep.subr.mxu0 0.0
        %2389 = vmatpush1.msra.mxu0 %v1006
        %2390 = vmatprep.subr.mxu0 0.0
        %2391 = vmatpush1.msra.mxu0 %v1007
        %2392 = vmatprep.subr.mxu0 0.0
        %2393 = vmatpush1.msra.mxu0 %v1008
        %2394 = vmatprep.subr.mxu0 0.0
        %2395 = vmatpush1.msra.mxu0 %v1009
        %2396 = vmatprep.subr.mxu0 0.0
        %2397 = vmatpush1.msra.mxu0 %v1010
        %2398 = vmatprep.subr.mxu0 0.0
        %2399 = vmatpush1.msra.mxu0 %v1011
        %2400 = vmatprep.subr.mxu0 0.0
        %2401 = vmatpush1.msra.mxu0 %v1012
        %2402 = vmatprep.subr.mxu0 0.0
        %2403 = vmatpush1.msra.mxu0 0.0
        %2404 = vmatprep.subr.mxu0 0.0
        %2405 = vmatpush1.msra.mxu0 0.0
        %2406 = vmatprep.subr.mxu0 0.0
        %2407 = vmatpush1.msra.mxu0 0.0
        %2408 = vmatprep.subr.mxu0 0.0
        %2409 = vmatpush1.msra.mxu0 0.0
        %2410 = vmatprep.subr.mxu0 0.0
        %2411 = vmatpush1.msra.mxu0 0.0
        %2412 = vmatprep.subr.mxu0 0.0
        %2413 = vmatpush1.msra.mxu0 0.0
        %2414 = vmatprep.subr.mxu0 0.0
        %2415 = vmatpush1.msra.mxu0 0.0
        %2416 = vmatprep.subr.mxu0 0.0
        %2417 = vmatpush1.msra.mxu0 0.0
        %2418 = vmatprep.subr.mxu0 0.0
        %2419 = vmatpush1.msra.mxu0 0.0
        %2420 = vmatprep.subr.mxu0 0.0
        %2421 = vmatpush1.msra.mxu0 0.0
        %2422 = vmatprep.subr.mxu0 0.0
        %2423 = vmatpush1.msra.mxu0 0.0
        %2424 = vmatprep.subr.mxu0 0.0
        %2425 = vmatpush1.msra.mxu0 0.0
        %2426 = vmatprep.subr.mxu0 0.0
        %2427 = vmatpush1.msra.mxu0 0.0
        %2428 = vmatprep.subr.mxu0 0.0
        %2429 = vmatpush1.msra.mxu0 0.0
        %2430 = vmatprep.subr.mxu0 0.0
        %2431 = vmatpush1.msra.mxu0 0.0
        %2432 = vmatprep.subr.mxu0 0.0
        %2433 = vmatpush1.msra.mxu0 0.0
        %2434 = vmatprep.mubr.f32.mxu0 0.0
        %2435 = vmatmul.mubr.f32.gmra.mrb[0].mxu0 %v2363
        %v2436 = vpop.f32.mrb[0].mxu0
        %v2437 = vadd.f32 %v2368, %v2436
        %v2438 = vpop.f32.mrb[0].mxu0
        %2439 = vdwg.mxu0
        %v2440 = vadd.f32 %v2437, %v2283
        %v2441 = vsel %vm1410, %v2440, 0.0
        %2442 = vadd.xlane.f32.xlu0 %v2441
        %v2443 = vpop.xlane.xlu0 %2442
        %v2444 = vmul.f32 %v2443, %v1414
        %v2445 = vsub.f32 %v2440, %v2444
        %v2446 = vmul.f32 %v2445, %v2445
        %v2447 = vsel %vm1410, %v2446, 0.0
        %2448 = vadd.xlane.f32.xlu0 %v2447
        %v2449 = vpop.xlane.xlu0 %2448
        %v2450 = vmul.f32 %v2449, %v1414
        %v2451 = vadd.f32 %v2450, 1e-05
        %v2452 = vrsqrt.pop %v2451
        %v2453 = vmul.f32 %v2445, %v2452
        %v2454 = vmul.f32 %v2453, %v1102
        %v2455 = vadd.f32 %v2454, %v1108
        %v2457 = vsel %vm1410, %v2455, 0
        %2459 = vmatprep.subr.mxu0 0.0
        %2460 = vmatpush1.msra.mxu0 %v954
        %2461 = vmatprep.subr.mxu0 0.0
        %2462 = vmatpush1.msra.mxu0 %v955
        %2463 = vmatprep.subr.mxu0 0.0
        %2464 = vmatpush1.msra.mxu0 %v956
        %2465 = vmatprep.subr.mxu0 0.0
        %2466 = vmatpush1.msra.mxu0 %v957
        %2467 = vmatprep.subr.mxu0 0.0
        %2468 = vmatpush1.msra.mxu0 %v958
        %2469 = vmatprep.subr.mxu0 0.0
        %2470 = vmatpush1.msra.mxu0 %v959
        %2471 = vmatprep.subr.mxu0 0.0
        %2472 = vmatpush1.msra.mxu0 %v960
        %2473 = vmatprep.subr.mxu0 0.0
        %2474 = vmatpush1.msra.mxu0 %v961
        %2475 = vmatprep.subr.mxu0 0.0
        %2476 = vmatpush1.msra.mxu0 0.0
        %2477 = vmatprep.subr.mxu0 0.0
        %2478 = vmatpush1.msra.mxu0 0.0
        %2479 = vmatprep.subr.mxu0 0.0
        %2480 = vmatpush1.msra.mxu0 0.0
        %2481 = vmatprep.subr.mxu0 0.0
        %2482 = vmatpush1.msra.mxu0 0.0
        %2483 = vmatprep.subr.mxu0 0.0
        %2484 = vmatpush1.msra.mxu0 0.0
        %2485 = vmatprep.subr.mxu0 0.0
        %2486 = vmatpush1.msra.mxu0 0.0
        %2487 = vmatprep.subr.mxu0 0.0
        %2488 = vmatpush1.msra.mxu0 0.0
        %2489 = vmatprep.subr.mxu0 0.0
        %2490 = vmatpush1.msra.mxu0 0.0
        %2491 = vmatprep.subr.mxu0 0.0
        %2492 = vmatpush1.msra.mxu0 0.0
        %2493 = vmatprep.subr.mxu0 0.0
        %2494 = vmatpush1.msra.mxu0 0.0
        %2495 = vmatprep.subr.mxu0 0.0
        %2496 = vmatpush1.msra.mxu0 0.0
        %2497 = vmatprep.subr.mxu0 0.0
        %2498 = vmatpush1.msra.mxu0 0.0
        %2499 = vmatprep.subr.mxu0 0.0
        %2500 = vmatpush1.msra.mxu0 0.0
        %2501 = vmatprep.subr.mxu0 0.0
        %2502 = vmatpush1.msra.mxu0 0.0
        %2503 = vmatprep.subr.mxu0 0.0
        %2504 = vmatpush1.msra.mxu0 0.0
        %2505 = vmatprep.subr.mxu0 0.0
        %2506 = vmatpush1.msra.mxu0 0.0
        %2507 = vmatprep.subr.mxu0 0.0
        %2508 = vmatpush1.msra.mxu0 0.0
        %2509 = vmatprep.subr.mxu0 0.0
        %2510 = vmatpush1.msra.mxu0 0.0
        %2511 = vmatprep.subr.mxu0 0.0
        %2512 = vmatpush1.msra.mxu0 0.0
        %2513 = vmatprep.subr.mxu0 0.0
        %2514 = vmatpush1.msra.mxu0 0.0
        %2515 = vmatprep.subr.mxu0 0.0
        %2516 = vmatpush1.msra.mxu0 0.0
        %2517 = vmatprep.subr.mxu0 0.0
        %2518 = vmatpush1.msra.mxu0 0.0
        %2519 = vmatprep.subr.mxu0 0.0
        %2520 = vmatpush1.msra.mxu0 0.0
        %2521 = vmatprep.subr.mxu0 0.0
        %2522 = vmatpush1.msra.mxu0 0.0
        %2523 = vmatprep.mubr.f32.mxu0 0.0
        %2524 = vmatmul.mubr.f32.gmra.mrb[0].mxu0 %v2457
        %v2525 = vpop.f32.mrb[0].mxu0
        %v2526 = vadd.f32 0.0, %v2525
        %v2527 = vpop.f32.mrb[0].mxu0
        %2528 = vdwg.mxu0
        %v2530 = vsel %vm1410, %v2526, 0
        %v2533 = vsel %vm1410, %v1372, 0
        %v2536 = vsel %vm1410, %v1377, 0
        %v2539 = vsel %vm1410, %v1382, 0
        %v2542 = vsel %vm1410, %v1387, 0
        %v2545 = vsel %vm1410, %v1392, 0
        %v2548 = vsel %vm1410, %v1397, 0
        %v2551 = vsel %vm1410, %v1402, 0
        %v2554 = vsel %vm1410, %v1407, 0
        %2556 = vmatprep.subr.mxu0 0.0
        %2557 = vmatpush1.xpose.msra.mxu0 %v2533
        %2558 = vmatprep.subr.mxu0 0.0
        %2559 = vmatpush1.xpose.msra.mxu0 %v2536
        %2560 = vmatprep.subr.mxu0 0.0
        %2561 = vmatpush1.xpose.msra.mxu0 %v2539
        %2562 = vmatprep.subr.mxu0 0.0
        %2563 = vmatpush1.xpose.msra.mxu0 %v2542
        %2564 = vmatprep.subr.mxu0 0.0
        %2565 = vmatpush1.xpose.msra.mxu0 %v2545
        %2566 = vmatprep.subr.mxu0 0.0
        %2567 = vmatpush1.xpose.msra.mxu0 %v2548
        %2568 = vmatprep.subr.mxu0 0.0
        %2569 = vmatpush1.xpose.msra.mxu0 %v2551
        %2570 = vmatprep.subr.mxu0 0.0
        %2571 = vmatpush1.xpose.msra.mxu0 %v2554
        %2572 = vmatprep.subr.mxu0 0.0
        %2573 = vmatpush1.xpose.msra.mxu0 0.0
        %2574 = vmatprep.subr.mxu0 0.0
        %2575 = vmatpush1.xpose.msra.mxu0 0.0
        %2576 = vmatprep.subr.mxu0 0.0
        %2577 = vmatpush1.xpose.msra.mxu0 0.0
        %2578 = vmatprep.subr.mxu0 0.0
        %2579 = vmatpush1.xpose.msra.mxu0 0.0
        %2580 = vmatprep.subr.mxu0 0.0
        %2581 = vmatpush1.xpose.msra.mxu0 0.0
        %2582 = vmatprep.subr.mxu0 0.0
        %2583 = vmatpush1.xpose.msra.mxu0 0.0
        %2584 = vmatprep.subr.mxu0 0.0
        %2585 = vmatpush1.xpose.msra.mxu0 0.0
        %2586 = vmatprep.subr.mxu0 0.0
        %2587 = vmatpush1.xpose.msra.mxu0 0.0
        %2588 = vmatprep.subr.mxu0 0.0
        %2589 = vmatpush1.xpose.msra.mxu0 0.0
        %2590 = vmatprep.subr.mxu0 0.0
        %2591 = vmatpush1.xpose.msra.mxu0 0.0
        %2592 = vmatprep.subr.mxu0 0.0
        %2593 = vmatpush1.xpose.msra.mxu0 0.0
        %2594 = vmatprep.subr.mxu0 0.0
        %2595 = vmatpush1.xpose.msra.mxu0 0.0
        %2596 = vmatprep.subr.mxu0 0.0
        %2597 = vmatpush1.xpose.msra.mxu0 0.0
        %2598 = vmatprep.subr.mxu0 0.0
        %2599 = vmatpush1.xpose.msra.mxu0 0.0
        %2600 = vmatprep.subr.mxu0 0.0
        %2601 = vmatpush1.xpose.msra.mxu0 0.0
        %2602 = vmatprep.subr.mxu0 0.0
        %2603 = vmatpush1.xpose.msra.mxu0 0.0
        %2604 = vmatprep.subr.mxu0 0.0
        %2605 = vmatpush1.xpose.msra.mxu0 0.0
        %2606 = vmatprep.subr.mxu0 0.0
        %2607 = vmatpush1.xpose.msra.mxu0 0.0
        %2608 = vmatprep.subr.mxu0 0.0
        %2609 = vmatpush1.xpose.msra.mxu0 0.0
        %2610 = vmatprep.subr.mxu0 0.0
        %2611 = vmatpush1.xpose.msra.mxu0 0.0
        %2612 = vmatprep.subr.mxu0 0.0
        %2613 = vmatpush1.xpose.msra.mxu0 0.0
        %2614 = vmatprep.subr.mxu0 0.0
        %2615 = vmatpush1.xpose.msra.mxu0 0.0
        %2616 = vmatprep.subr.mxu0 0.0
        %2617 = vmatpush1.xpose.msra.mxu0 0.0
        %2618 = vmatprep.subr.mxu0 0.0
        %2619 = vmatpush1.xpose.msra.mxu0 0.0
        %2620 = vmatprep.mubr.f32.mxu0 0.0
        %2621 = vmatmul.mubr.f32.gmra.mrb[0].mxu0 %v2530
        %v2622 = vpop.f32.mrb[0].mxu0
        %v2623 = vadd.f32 0.0, %v2622
        %v2624 = vpop.f32.mrb[0].mxu0
        %2625 = vdwg.mxu0
        %v2626 = vmul.f32 %v2623, 0.125
        %v2627 = vsel %vm1410, %v2626, -inf
        %v2628 = vrot.slane %v2627, 4
        %v2629 = vmax.f32 %v2627, %v2628
        %v2630 = vrot.slane %v2629, 2
        %v2631 = vmax.f32 %v2629, %v2630
        %v2632 = vrot.slane %v2631, 1
        %v2633 = vmax.f32 %v2631, %v2632
        %v2634 = vsub.f32 %v2626, %v2633
        %v2635 = vmul.f32 %v2634, 1.442695
        %v2636 = vpow.pop %v2635
        %v2637 = vsel %vm1410, %v2636, 0.0
        %v2638 = vrot.slane %v2637, 4
        %v2639 = vadd.f32 %v2637, %v2638
        %v2640 = vrot.slane %v2639, 2
        %v2641 = vadd.f32 %v2639, %v2640
        %v2642 = vrot.slane %v2641, 1
        %v2643 = vadd.f32 %v2641, %v2642
        %v2644 = vrcp.pop %v2643
        %v2645 = vmul.f32 %v2636, %v2644
        %v2646 = vadd.f32 %v2645, 1e-08
        %v2647 = vsel %vm1410, %v2646, 0.0
        %2648 = vadd.xlane.f32.xlu0 %v2647
        %v2649 = vpop.xlane.xlu0 %2648
        %v2650 = vrcp.pop %v2649
        %v2651 = vmul.f32 %v2646, %v2650
        %2652 = vrot.lane.b32.xlu0 %v1372, 64
        %v2653 = vpop.permute.xlu0 %2652
        %2654 = vrot.lane.b32.xlu0 %v1377, 64
        %v2655 = vpop.permute.xlu0 %2654
        %2656 = vrot.lane.b32.xlu0 %v1382, 64
        %v2657 = vpop.permute.xlu0 %2656
        %2658 = vrot.lane.b32.xlu0 %v1387, 64
        %v2659 = vpop.permute.xlu0 %2658
        %2660 = vrot.lane.b32.xlu0 %v1392, 64
        %v2661 = vpop.permute.xlu0 %2660
        %2662 = vrot.lane.b32.xlu0 %v1397, 64
        %v2663 = vpop.permute.xlu0 %2662
        %2664 = vrot.lane.b32.xlu0 %v1402, 64
        %v2665 = vpop.permute.xlu0 %2664
        %2666 = vrot.lane.b32.xlu0 %v1407, 64
        %v2667 = vpop.permute.xlu0 %2666
        %v2677 = vsel %vm1410, %v2651, 0
        %2679 = vmatprep.subr.mxu0 0.0
        %2680 = vmatpush1.msra.mxu0 %v2653
        %2681 = vmatprep.subr.mxu0 0.0
        %2682 = vmatpush1.msra.mxu0 %v2655
        %2683 = vmatprep.subr.mxu0 0.0
        %2684 = vmatpush1.msra.mxu0 %v2657
        %2685 = vmatprep.subr.mxu0 0.0
        %2686 = vmatpush1.msra.mxu0 %v2659
        %2687 = vmatprep.subr.mxu0 0.0
        %2688 = vmatpush1.msra.mxu0 %v2661
        %2689 = vmatprep.subr.mxu0 0.0
        %2690 = vmatpush1.msra.mxu0 %v2663
        %2691 = vmatprep.subr.mxu0 0.0
        %2692 = vmatpush1.msra.mxu0 %v2665
        %2693 = vmatprep.subr.mxu0 0.0
        %2694 = vmatpush1.msra.mxu0 %v2667
        %2695 = vmatprep.subr.mxu0 0.0
        %2696 = vmatpush1.msra.mxu0 0.0
        %2697 = vmatprep.subr.mxu0 0.0
        %2698 = vmatpush1.msra.mxu0 0.0
        %2699 = vmatprep.subr.mxu0 0.0
        %2700 = vmatpush1.msra.mxu0 0.0
        %2701 = vmatprep.subr.mxu0 0.0
        %2702 = vmatpush1.msra.mxu0 0.0
        %2703 = vmatprep.subr.mxu0 0.0
        %2704 = vmatpush1.msra.mxu0 0.0
        %2705 = vmatprep.subr.mxu0 0.0
        %2706 = vmatpush1.msra.mxu0 0.0
        %2707 = vmatprep.subr.mxu0 0.0
        %2708 = vmatpush1.msra.mxu0 0.0
        %2709 = vmatprep.subr.mxu0 0.0
        %2710 = vmatpush1.msra.mxu0 0.0
        %2711 = vmatprep.subr.mxu0 0.0
        %2712 = vmatpush1.msra.mxu0 0.0
        %2713 = vmatprep.subr.mxu0 0.0
        %2714 = vmatpush1.msra.mxu0 0.0
        %2715 = vmatprep.subr.mxu0 0.0
        %2716 = vmatpush1.msra.mxu0 0.0
        %2717 = vmatprep.subr.mxu0 0.0
        %2718 = vmatpush1.msra.mxu0 0.0
        %2719 = vmatprep.subr.mxu0 0.0
        %2720 = vmatpush1.msra.mxu0 0.0
        %2721 = vmatprep.subr.mxu0 0.0
        %2722 = vmatpush1.msra.mxu0 0.0
        %2723 = vmatprep.subr.mxu0 0.0
        %2724 = vmatpush1.msra.mxu0 0.0
        %2725 = vmatprep.subr.mxu0 0.0
        %2726 = vmatpush1.msra.mxu0 0.0
        %2727 = vmatprep.subr.mxu0 0.0
        %2728 = vmatpush1.msra.mxu0 0.0
        %2729 = vmatprep.subr.mxu0 0.0
        %2730 = vmatpush1.msra.mxu0 0.0
        %2731 = vmatprep.subr.mxu0 0.0
        %2732 = vmatpush1.msra.mxu0 0.0
        %2733 = vmatprep.subr.mxu0 0.0
        %2734 = vmatpush1.msra.mxu0 0.0
        %2735 = vmatprep.subr.mxu0 0.0
        %2736 = vmatpush1.msra.mxu0 0.0
        %2737 = vmatprep.subr.mxu0 0.0
        %2738 = vmatpush1.msra.mxu0 0.0
        %2739 = vmatprep.subr.mxu0 0.0
        %2740 = vmatpush1.msra.mxu0 0.0
        %2741 = vmatprep.subr.mxu0 0.0
        %2742 = vmatpush1.msra.mxu0 0.0
        %2743 = vmatprep.mubr.f32.mxu0 0.0
        %2744 = vmatmul.mubr.f32.gmra.mrb[0].mxu0 %v2677
        %v2745 = vpop.f32.mrb[0].mxu0
        %v2746 = vadd.f32 0.0, %v2745
        %v2747 = vpop.f32.mrb[0].mxu0
        %2748 = vdwg.mxu0
        %2750 = vrot.lane.b32.xlu0 %v2440, 64
        %v2751 = vpop.permute.xlu0 %2750
        %v2753 = vsel %vm1410, %v2746, %v2751
        %2754 = vmatprep.subr.mxu0 %v1015
        %2755 = vmatpush1.msra.mxu0 %v1014
        %2756 = vmatprep.subr.mxu0 %v1018
        %2757 = vmatpush1.msra.mxu0 %v1017
        %2758 = vmatprep.subr.mxu0 %v1021
        %2759 = vmatpush1.msra.mxu0 %v1020
        %2760 = vmatprep.subr.mxu0 %v1024
        %2761 = vmatpush1.msra.mxu0 %v1023
        %2762 = vmatprep.subr.mxu0 %v1027
        %2763 = vmatpush1.msra.mxu0 %v1026
        %2764 = vmatprep.subr.mxu0 %v1030
        %2765 = vmatpush1.msra.mxu0 %v1029
        %2766 = vmatprep.subr.mxu0 %v1033
        %2767 = vmatpush1.msra.mxu0 %v1032
        %2768 = vmatprep.subr.mxu0 %v1036
        %2769 = vmatpush1.msra.mxu0 %v1035
        %2770 = vmatprep.subr.mxu0 %v1039
        %2771 = vmatpush1.msra.mxu0 %v1038
        %2772 = vmatprep.subr.mxu0 %v1042
        %2773 = vmatpush1.msra.mxu0 %v1041
        %2774 = vmatprep.subr.mxu0 %v1045
        %2775 = vmatpush1.msra.mxu0 %v1044
        %2776 = vmatprep.subr.mxu0 %v1048
        %2777 = vmatpush1.msra.mxu0 %v1047
        %2778 = vmatprep.subr.mxu0 %v1051
        %2779 = vmatpush1.msra.mxu0 %v1050
        %2780 = vmatprep.subr.mxu0 %v1054
        %2781 = vmatpush1.msra.mxu0 %v1053
        %2782 = vmatprep.subr.mxu0 %v1057
        %2783 = vmatpush1.msra.mxu0 %v1056
        %2784 = vmatprep.subr.mxu0 %v1060
        %2785 = vmatpush1.msra.mxu0 %v1059
        %2786 = vmatprep.subr.mxu0 0.0
        %2787 = vmatpush1.msra.mxu0 0.0
        %2788 = vmatprep.subr.mxu0 0.0
        %2789 = vmatpush1.msra.mxu0 0.0
        %2790 = vmatprep.subr.mxu0 0.0
        %2791 = vmatpush1.msra.mxu0 0.0
        %2792 = vmatprep.subr.mxu0 0.0
        %2793 = vmatpush1.msra.mxu0 0.0
        %2794 = vmatprep.subr.mxu0 0.0
        %2795 = vmatpush1.msra.mxu0 0.0
        %2796 = vmatprep.subr.mxu0 0.0
        %2797 = vmatpush1.msra.mxu0 0.0
        %2798 = vmatprep.subr.mxu0 0.0
        %2799 = vmatpush1.msra.mxu0 0.0
        %2800 = vmatprep.subr.mxu0 0.0
        %2801 = vmatpush1.msra.mxu0 0.0
        %2802 = vmatprep.subr.mxu0 0.0
        %2803 = vmatpush1.msra.mxu0 0.0
        %2804 = vmatprep.subr.mxu0 0.0
        %2805 = vmatpush1.msra.mxu0 0.0
        %2806 = vmatprep.subr.mxu0 0.0
        %2807 = vmatpush1.msra.mxu0 0.0
        %2808 = vmatprep.subr.mxu0 0.0
        %2809 = vmatpush1.msra.mxu0 0.0
        %2810 = vmatprep.subr.mxu0 0.0
        %2811 = vmatpush1.msra.mxu0 0.0
        %2812 = vmatprep.subr.mxu0 0.0
        %2813 = vmatpush1.msra.mxu0 0.0
        %2814 = vmatprep.subr.mxu0 0.0
        %2815 = vmatpush1.msra.mxu0 0.0
        %2816 = vmatprep.subr.mxu0 0.0
        %2817 = vmatpush1.msra.mxu0 0.0
        %2818 = vmatprep.mubr.f32.mxu0 0.0
        %2819 = vmatmul.mubr.f32.gmra.mrb[0].mxu0 %v2753
        %v2820 = vpop.f32.mrb[0].mxu0
        %v2821 = vadd.f32 %v1124, %v2820
        %v2822 = vpop.f32.mrb[0].mxu0
        %v2823 = vadd.f32 %v1128, %v2822
        %2824 = vdwg.mxu0
        %2825 = vmatprep.subr.mxu0 0.0
        %2826 = vmatpush1.msra.mxu0 %v1016
        %2827 = vmatprep.subr.mxu0 0.0
        %2828 = vmatpush1.msra.mxu0 %v1019
        %2829 = vmatprep.subr.mxu0 0.0
        %2830 = vmatpush1.msra.mxu0 %v1022
        %2831 = vmatprep.subr.mxu0 0.0
        %2832 = vmatpush1.msra.mxu0 %v1025
        %2833 = vmatprep.subr.mxu0 0.0
        %2834 = vmatpush1.msra.mxu0 %v1028
        %2835 = vmatprep.subr.mxu0 0.0
        %2836 = vmatpush1.msra.mxu0 %v1031
        %2837 = vmatprep.subr.mxu0 0.0
        %2838 = vmatpush1.msra.mxu0 %v1034
        %2839 = vmatprep.subr.mxu0 0.0
        %2840 = vmatpush1.msra.mxu0 %v1037
        %2841 = vmatprep.subr.mxu0 0.0
        %2842 = vmatpush1.msra.mxu0 %v1040
        %2843 = vmatprep.subr.mxu0 0.0
        %2844 = vmatpush1.msra.mxu0 %v1043
        %2845 = vmatprep.subr.mxu0 0.0
        %2846 = vmatpush1.msra.mxu0 %v1046
        %2847 = vmatprep.subr.mxu0 0.0
        %2848 = vmatpush1.msra.mxu0 %v1049
        %2849 = vmatprep.subr.mxu0 0.0
        %2850 = vmatpush1.msra.mxu0 %v1052
        %2851 = vmatprep.subr.mxu0 0.0
        %2852 = vmatpush1.msra.mxu0 %v1055
        %2853 = vmatprep.subr.mxu0 0.0
        %2854 = vmatpush1.msra.mxu0 %v1058
        %2855 = vmatprep.subr.mxu0 0.0
        %2856 = vmatpush1.msra.mxu0 %v1061
        %2857 = vmatprep.subr.mxu0 0.0
        %2858 = vmatpush1.msra.mxu0 0.0
        %2859 = vmatprep.subr.mxu0 0.0
        %2860 = vmatpush1.msra.mxu0 0.0
        %2861 = vmatprep.subr.mxu0 0.0
        %2862 = vmatpush1.msra.mxu0 0.0
        %2863 = vmatprep.subr.mxu0 0.0
        %2864 = vmatpush1.msra.mxu0 0.0
        %2865 = vmatprep.subr.mxu0 0.0
        %2866 = vmatpush1.msra.mxu0 0.0
        %2867 = vmatprep.subr.mxu0 0.0
        %2868 = vmatpush1.msra.mxu0 0.0
        %2869 = vmatprep.subr.mxu0 0.0
        %2870 = vmatpush1.msra.mxu0 0.0
        %2871 = vmatprep.subr.mxu0 0.0
        %2872 = vmatpush1.msra.mxu0 0.0
        %2873 = vmatprep.subr.mxu0 0.0
        %2874 = vmatpush1.msra.mxu0 0.0
        %2875 = vmatprep.subr.mxu0 0.0
        %2876 = vmatpush1.msra.mxu0 0.0
        %2877 = vmatprep.subr.mxu0 0.0
        %2878 = vmatpush1.msra.mxu0 0.0
        %2879 = vmatprep.subr.mxu0 0.0
        %2880 = vmatpush1.msra.mxu0 0.0
        %2881 = vmatprep.subr.mxu0 0.0
        %2882 = vmatpush1.msra.mxu0 0.0
        %2883 = vmatprep.subr.mxu0 0.0
        %2884 = vmatpush1.msra.mxu0 0.0
        %2885 = vmatprep.subr.mxu0 0.0
        %2886 = vmatpush1.msra.mxu0 0.0
        %2887 = vmatprep.subr.mxu0 0.0
        %2888 = vmatpush1.msra.mxu0 0.0
        %2889 = vmatprep.mubr.f32.mxu0 0.0
        %2890 = vmatmul.mubr.f32.gmra.mrb[0].mxu0 %v2753
        %v2891 = vpop.f32.mrb[0].mxu0
        %v2892 = vadd.f32 %v1132, %v2891
        %v2893 = vpop.f32.mrb[0].mxu0
        %2894 = vdwg.mxu0
        %2896 = vrot.lane.b32.xlu0 %v2823, 64
        %v2897 = vpop.permute.xlu0 %2896
        %v2899 = vadd.f32 %v2821, %v2897
        %v2900 = vxor.u32 %v2899, 2147483648
        %v2901 = vmul.f32 %v2900, 1.442695
        %v2902 = vpow.pop %v2901
        %v2903 = vadd.f32 %v2902, 1.0
        %v2904 = vrcp.pop %v2903
        %v2905 = vmul.f32 1.0, %v2904
        %2907 = vrot.lane.b32.xlu0 %v2892, 64
        %v2908 = vpop.permute.xlu0 %2907
        %v2910 = vadd.f32 %v2821, %v2908
        %v2911 = vxor.u32 %v2910, 2147483648
        %v2912 = vmul.f32 %v2911, 1.442695
        %v2913 = vpow.pop %v2912
        %v2914 = vadd.f32 %v2913, 1.0
        %v2915 = vrcp.pop %v2914
        %v2916 = vmul.f32 1.0, %v2915
        %v2917 = vmul.f32 %v2905, %v2908
        %v2918 = vadd.f32 %v2823, %v2917
        %v2919 = vtanh.pop %v2918
        %v2920 = vsub.f32 1.0, %v2916
        %2922 = vrot.lane.b32.xlu0 %v2919, 64
        %v2923 = vpop.permute.xlu0 %2922
        %v2925 = vmul.f32 %v2920, %v2923
        %v2926 = vmul.f32 %v2916, %v2751
        %v2927 = vadd.f32 %v2925, %v2926
        %2929 = vrot.lane.b32.xlu0 %v2927, 64
        %v2930 = vpop.permute.xlu0 %2929
        %v2932 = vsel %vm1410, %v2930, 0.0
        %2933 = vadd.xlane.f32.xlu0 %v2932
        %v2934 = vpop.xlane.xlu0 %2933
        %v2935 = vmul.f32 %v2934, %v1414
        %v2936 = vsub.f32 %v2927, %v2935
        %v2937 = vmul.f32 %v2936, %v2936
        %2939 = vrot.lane.b32.xlu0 %v2937, 64
        %v2940 = vpop.permute.xlu0 %2939
        %v2942 = vsel %vm1410, %v2940, 0.0
        %2943 = vadd.xlane.f32.xlu0 %v2942
        %v2944 = vpop.xlane.xlu0 %2943
        %v2945 = vmul.f32 %v2944, %v1414
        %v2946 = vadd.f32 %v2945, 1e-05
        %v2947 = vrsqrt.pop %v2946
        %v2948 = vmul.f32 %v2936, %v2947
        %2949 = vrot.lane.b32.xlu0 %v1114, 64
        %v2950 = vpop.permute.xlu0 %2949
        %v2952 = vmul.f32 %v2948, %v2950
        %2953 = vrot.lane.b32.xlu0 %v1119, 64
        %v2954 = vpop.permute.xlu0 %2953
        %v2956 = vadd.f32 %v2952, %v2954
        %2958 = vrot.lane.b32.xlu0 %v2956, 64
        %v2959 = vpop.permute.xlu0 %2958
        %v2960 = vsel %vm1410, %v2959, 0
        %2962 = vmatprep.subr.mxu0 0.0
        %2963 = vmatpush1.msra.mxu0 %v1063
        %2964 = vmatprep.subr.mxu0 0.0
        %2965 = vmatpush1.msra.mxu0 %v1064
        %2966 = vmatprep.subr.mxu0 0.0
        %2967 = vmatpush1.msra.mxu0 %v1065
        %2968 = vmatprep.subr.mxu0 0.0
        %2969 = vmatpush1.msra.mxu0 %v1066
        %2970 = vmatprep.subr.mxu0 0.0
        %2971 = vmatpush1.msra.mxu0 %v1067
        %2972 = vmatprep.subr.mxu0 0.0
        %2973 = vmatpush1.msra.mxu0 %v1068
        %2974 = vmatprep.subr.mxu0 0.0
        %2975 = vmatpush1.msra.mxu0 %v1069
        %2976 = vmatprep.subr.mxu0 0.0
        %2977 = vmatpush1.msra.mxu0 %v1070
        %2978 = vmatprep.subr.mxu0 0.0
        %2979 = vmatpush1.msra.mxu0 0.0
        %2980 = vmatprep.subr.mxu0 0.0
        %2981 = vmatpush1.msra.mxu0 0.0
        %2982 = vmatprep.subr.mxu0 0.0
        %2983 = vmatpush1.msra.mxu0 0.0
        %2984 = vmatprep.subr.mxu0 0.0
        %2985 = vmatpush1.msra.mxu0 0.0
        %2986 = vmatprep.subr.mxu0 0.0
        %2987 = vmatpush1.msra.mxu0 0.0
        %2988 = vmatprep.subr.mxu0 0.0
        %2989 = vmatpush1.msra.mxu0 0.0
        %2990 = vmatprep.subr.mxu0 0.0
        %2991 = vmatpush1.msra.mxu0 0.0
        %2992 = vmatprep.subr.mxu0 0.0
        %2993 = vmatpush1.msra.mxu0 0.0
        %2994 = vmatprep.subr.mxu0 0.0
        %2995 = vmatpush1.msra.mxu0 0.0
        %2996 = vmatprep.subr.mxu0 0.0
        %2997 = vmatpush1.msra.mxu0 0.0
        %2998 = vmatprep.subr.mxu0 0.0
        %2999 = vmatpush1.msra.mxu0 0.0
        %3000 = vmatprep.subr.mxu0 0.0
        %3001 = vmatpush1.msra.mxu0 0.0
        %3002 = vmatprep.subr.mxu0 0.0
        %3003 = vmatpush1.msra.mxu0 0.0
        %3004 = vmatprep.subr.mxu0 0.0
        %3005 = vmatpush1.msra.mxu0 0.0
        %3006 = vmatprep.subr.mxu0 0.0
        %3007 = vmatpush1.msra.mxu0 0.0
        %3008 = vmatprep.subr.mxu0 0.0
        %3009 = vmatpush1.msra.mxu0 0.0
        %3010 = vmatprep.subr.mxu0 0.0
        %3011 = vmatpush1.msra.mxu0 0.0
        %3012 = vmatprep.subr.mxu0 0.0
        %3013 = vmatpush1.msra.mxu0 0.0
        %3014 = vmatprep.subr.mxu0 0.0
        %3015 = vmatpush1.msra.mxu0 0.0
        %3016 = vmatprep.subr.mxu0 0.0
        %3017 = vmatpush1.msra.mxu0 0.0
        %3018 = vmatprep.subr.mxu0 0.0
        %3019 = vmatpush1.msra.mxu0 0.0
        %3020 = vmatprep.subr.mxu0 0.0
        %3021 = vmatpush1.msra.mxu0 0.0
        %3022 = vmatprep.subr.mxu0 0.0
        %3023 = vmatpush1.msra.mxu0 0.0
        %3024 = vmatprep.subr.mxu0 0.0
        %3025 = vmatpush1.msra.mxu0 0.0
        %3026 = vmatprep.mubr.f32.mxu0 0.0
        %3027 = vmatmul.mubr.f32.gmra.mrb[0].mxu0 %v2960
        %v3028 = vpop.f32.mrb[0].mxu0
        %v3029 = vadd.f32 %v1140, %v3028
        %v3030 = vpop.f32.mrb[0].mxu0
        %3031 = vdwg.mxu0
        %v3032 = vmax.f32 %v3029, 0.0
        %3033 = vmatprep.subr.mxu0 0.0
        %3034 = vmatpush1.msra.mxu0 %v1072
        %3035 = vmatprep.subr.mxu0 0.0
        %3036 = vmatpush1.msra.mxu0 %v1073
        %3037 = vmatprep.subr.mxu0 0.0
        %3038 = vmatpush1.msra.mxu0 %v1074
        %3039 = vmatprep.subr.mxu0 0.0
        %3040 = vmatpush1.msra.mxu0 %v1075
        %3041 = vmatprep.subr.mxu0 0.0
        %3042 = vmatpush1.msra.mxu0 %v1076
        %3043 = vmatprep.subr.mxu0 0.0
        %3044 = vmatpush1.msra.mxu0 %v1077
        %3045 = vmatprep.subr.mxu0 0.0
        %3046 = vmatpush1.msra.mxu0 %v1078
        %3047 = vmatprep.subr.mxu0 0.0
        %3048 = vmatpush1.msra.mxu0 %v1079
        %3049 = vmatprep.subr.mxu0 0.0
        %3050 = vmatpush1.msra.mxu0 %v1080
        %3051 = vmatprep.subr.mxu0 0.0
        %3052 = vmatpush1.msra.mxu0 %v1081
        %3053 = vmatprep.subr.mxu0 0.0
        %3054 = vmatpush1.msra.mxu0 %v1082
        %3055 = vmatprep.subr.mxu0 0.0
        %3056 = vmatpush1.msra.mxu0 %v1083
        %3057 = vmatprep.subr.mxu0 0.0
        %3058 = vmatpush1.msra.mxu0 %v1084
        %3059 = vmatprep.subr.mxu0 0.0
        %3060 = vmatpush1.msra.mxu0 %v1085
        %3061 = vmatprep.subr.mxu0 0.0
        %3062 = vmatpush1.msra.mxu0 %v1086
        %3063 = vmatprep.subr.mxu0 0.0
        %3064 = vmatpush1.msra.mxu0 %v1087
        %3065 = vmatprep.subr.mxu0 0.0
        %3066 = vmatpush1.msra.mxu0 0.0
        %3067 = vmatprep.subr.mxu0 0.0
        %3068 = vmatpush1.msra.mxu0 0.0
        %3069 = vmatprep.subr.mxu0 0.0
        %3070 = vmatpush1.msra.mxu0 0.0
        %3071 = vmatprep.subr.mxu0 0.0
        %3072 = vmatpush1.msra.mxu0 0.0
        %3073 = vmatprep.subr.mxu0 0.0
        %3074 = vmatpush1.msra.mxu0 0.0
        %3075 = vmatprep.subr.mxu0 0.0
        %3076 = vmatpush1.msra.mxu0 0.0
        %3077 = vmatprep.subr.mxu0 0.0
        %3078 = vmatpush1.msra.mxu0 0.0
        %3079 = vmatprep.subr.mxu0 0.0
        %3080 = vmatpush1.msra.mxu0 0.0
        %3081 = vmatprep.subr.mxu0 0.0
        %3082 = vmatpush1.msra.mxu0 0.0
        %3083 = vmatprep.subr.mxu0 0.0
        %3084 = vmatpush1.msra.mxu0 0.0
        %3085 = vmatprep.subr.mxu0 0.0
        %3086 = vmatpush1.msra.mxu0 0.0
        %3087 = vmatprep.subr.mxu0 0.0
        %3088 = vmatpush1.msra.mxu0 0.0
        %3089 = vmatprep.subr.mxu0 0.0
        %3090 = vmatpush1.msra.mxu0 0.0
        %3091 = vmatprep.subr.mxu0 0.0
        %3092 = vmatpush1.msra.mxu0 0.0
        %3093 = vmatprep.subr.mxu0 0.0
        %3094 = vmatpush1.msra.mxu0 0.0
        %3095 = vmatprep.subr.mxu0 0.0
        %3096 = vmatpush1.msra.mxu0 0.0
        %3097 = vmatprep.mubr.f32.mxu0 0.0
        %3098 = vmatmul.mubr.f32.gmra.mrb[0].mxu0 %v3032
        %v3099 = vpop.f32.mrb[0].mxu0
        %v3100 = vadd.f32 0.0, %v3099
        %v3101 = vpop.f32.mrb[0].mxu0
        %3102 = vdwg.mxu0
        %3104 = vrot.lane.b32.xlu0 %v3100, 64
        %v3105 = vpop.permute.xlu0 %3104
        %v3107 = vadd.f32 %v2927, %v3105
        %3108 = vrot.lane.b32.xlu0 %v1146, 64
        %v3109 = vpop.permute.xlu0 %3108
        %v3111 = vadd.f32 %v3107, %v3109
        %3113 = vrot.lane.b32.xlu0 %v3111, 64
        %v3114 = vpop.permute.xlu0 %3113
        %v3116 = vsel %vm1410, %v3114, 0.0
        %3117 = vadd.xlane.f32.xlu0 %v3116
        %v3118 = vpop.xlane.xlu0 %3117
        %v3119 = vmul.f32 %v3118, %v1414
        %v3120 = vsub.f32 %v3111, %v3119
        %v3121 = vmul.f32 %v3120, %v3120
        %3123 = vrot.lane.b32.xlu0 %v3121, 64
        %v3124 = vpop.permute.xlu0 %3123
        %v3126 = vsel %vm1410, %v3124, 0.0
        %3127 = vadd.xlane.f32.xlu0 %v3126
        %v3128 = vpop.xlane.xlu0 %3127
        %v3129 = vmul.f32 %v3128, %v1414
        %v3130 = vadd.f32 %v3129, 1e-05
        %v3131 = vrsqrt.pop %v3130
        %v3132 = vmul.f32 %v3120, %v3131
        %3133 = vrot.lane.b32.xlu0 %v1102, 64
        %v3134 = vpop.permute.xlu0 %3133
        %v3136 = vmul.f32 %v3132, %v3134
        %3137 = vrot.lane.b32.xlu0 %v1108, 64
        %v3138 = vpop.permute.xlu0 %3137
        %v3140 = vadd.f32 %v3136, %v3138
        %3142 = vrot.lane.b32.xlu0 %v3140, 64
        %v3143 = vpop.permute.xlu0 %3142
        %v3144 = vsel %vm1410, %v3143, 0
        %3146 = vmatprep.subr.mxu0 0.0
        %3147 = vmatpush1.msra.mxu0 %v954
        %3148 = vmatprep.subr.mxu0 0.0
        %3149 = vmatpush1.msra.mxu0 %v955
        %3150 = vmatprep.subr.mxu0 0.0
        %3151 = vmatpush1.msra.mxu0 %v956
        %3152 = vmatprep.subr.mxu0 0.0
        %3153 = vmatpush1.msra.mxu0 %v957
        %3154 = vmatprep.subr.mxu0 0.0
        %3155 = vmatpush1.msra.mxu0 %v958
        %3156 = vmatprep.subr.mxu0 0.0
        %3157 = vmatpush1.msra.mxu0 %v959
        %3158 = vmatprep.subr.mxu0 0.0
        %3159 = vmatpush1.msra.mxu0 %v960
        %3160 = vmatprep.subr.mxu0 0.0
        %3161 = vmatpush1.msra.mxu0 %v961
        %3162 = vmatprep.subr.mxu0 0.0
        %3163 = vmatpush1.msra.mxu0 0.0
        %3164 = vmatprep.subr.mxu0 0.0
        %3165 = vmatpush1.msra.mxu0 0.0
        %3166 = vmatprep.subr.mxu0 0.0
        %3167 = vmatpush1.msra.mxu0 0.0
        %3168 = vmatprep.subr.mxu0 0.0
        %3169 = vmatpush1.msra.mxu0 0.0
        %3170 = vmatprep.subr.mxu0 0.0
        %3171 = vmatpush1.msra.mxu0 0.0
        %3172 = vmatprep.subr.mxu0 0.0
        %3173 = vmatpush1.msra.mxu0 0.0
        %3174 = vmatprep.subr.mxu0 0.0
        %3175 = vmatpush1.msra.mxu0 0.0
        %3176 = vmatprep.subr.mxu0 0.0
        %3177 = vmatpush1.msra.mxu0 0.0
        %3178 = vmatprep.subr.mxu0 0.0
        %3179 = vmatpush1.msra.mxu0 0.0
        %3180 = vmatprep.subr.mxu0 0.0
        %3181 = vmatpush1.msra.mxu0 0.0
        %3182 = vmatprep.subr.mxu0 0.0
        %3183 = vmatpush1.msra.mxu0 0.0
        %3184 = vmatprep.subr.mxu0 0.0
        %3185 = vmatpush1.msra.mxu0 0.0
        %3186 = vmatprep.subr.mxu0 0.0
        %3187 = vmatpush1.msra.mxu0 0.0
        %3188 = vmatprep.subr.mxu0 0.0
        %3189 = vmatpush1.msra.mxu0 0.0
        %3190 = vmatprep.subr.mxu0 0.0
        %3191 = vmatpush1.msra.mxu0 0.0
        %3192 = vmatprep.subr.mxu0 0.0
        %3193 = vmatpush1.msra.mxu0 0.0
        %3194 = vmatprep.subr.mxu0 0.0
        %3195 = vmatpush1.msra.mxu0 0.0
        %3196 = vmatprep.subr.mxu0 0.0
        %3197 = vmatpush1.msra.mxu0 0.0
        %3198 = vmatprep.subr.mxu0 0.0
        %3199 = vmatpush1.msra.mxu0 0.0
        %3200 = vmatprep.subr.mxu0 0.0
        %3201 = vmatpush1.msra.mxu0 0.0
        %3202 = vmatprep.subr.mxu0 0.0
        %3203 = vmatpush1.msra.mxu0 0.0
        %3204 = vmatprep.subr.mxu0 0.0
        %3205 = vmatpush1.msra.mxu0 0.0
        %3206 = vmatprep.subr.mxu0 0.0
        %3207 = vmatpush1.msra.mxu0 0.0
        %3208 = vmatprep.subr.mxu0 0.0
        %3209 = vmatpush1.msra.mxu0 0.0
        %3210 = vmatprep.mubr.f32.mxu0 0.0
        %3211 = vmatmul.mubr.f32.gmra.mrb[0].mxu0 %v3144
        %v3212 = vpop.f32.mrb[0].mxu0
        %v3213 = vadd.f32 0.0, %v3212
        %v3214 = vpop.f32.mrb[0].mxu0
        %3215 = vdwg.mxu0
        %v3217 = vsel %vm1410, %v3213, 0
        %3219 = vmatprep.subr.mxu0 0.0
        %3220 = vmatpush1.xpose.msra.mxu0 %v2533
        %3221 = vmatprep.subr.mxu0 0.0
        %3222 = vmatpush1.xpose.msra.mxu0 %v2536
        %3223 = vmatprep.subr.mxu0 0.0
        %3224 = vmatpush1.xpose.msra.mxu0 %v2539
        %3225 = vmatprep.subr.mxu0 0.0
        %3226 = vmatpush1.xpose.msra.mxu0 %v2542
        %3227 = vmatprep.subr.mxu0 0.0
        %3228 = vmatpush1.xpose.msra.mxu0 %v2545
        %3229 = vmatprep.subr.mxu0 0.0
        %3230 = vmatpush1.xpose.msra.mxu0 %v2548
        %3231 = vmatprep.subr.mxu0 0.0
        %3232 = vmatpush1.xpose.msra.mxu0 %v2551
        %3233 = vmatprep.subr.mxu0 0.0
        %3234 = vmatpush1.xpose.msra.mxu0 %v2554
        %3235 = vmatprep.subr.mxu0 0.0
        %3236 = vmatpush1.xpose.msra.mxu0 0.0
        %3237 = vmatprep.subr.mxu0 0.0
        %3238 = vmatpush1.xpose.msra.mxu0 0.0
        %3239 = vmatprep.subr.mxu0 0.0
        %3240 = vmatpush1.xpose.msra.mxu0 0.0
        %3241 = vmatprep.subr.mxu0 0.0
        %3242 = vmatpush1.xpose.msra.mxu0 0.0
        %3243 = vmatprep.subr.mxu0 0.0
        %3244 = vmatpush1.xpose.msra.mxu0 0.0
        %3245 = vmatprep.subr.mxu0 0.0
        %3246 = vmatpush1.xpose.msra.mxu0 0.0
        %3247 = vmatprep.subr.mxu0 0.0
        %3248 = vmatpush1.xpose.msra.mxu0 0.0
        %3249 = vmatprep.subr.mxu0 0.0
        %3250 = vmatpush1.xpose.msra.mxu0 0.0
        %3251 = vmatprep.subr.mxu0 0.0
        %3252 = vmatpush1.xpose.msra.mxu0 0.0
        %3253 = vmatprep.subr.mxu0 0.0
        %3254 = vmatpush1.xpose.msra.mxu0 0.0
        %3255 = vmatprep.subr.mxu0 0.0
        %3256 = vmatpush1.xpose.msra.mxu0 0.0
        %3257 = vmatprep.subr.mxu0 0.0
        %3258 = vmatpush1.xpose.msra.mxu0 0.0
        %3259 = vmatprep.subr.mxu0 0.0
        %3260 = vmatpush1.xpose.msra.mxu0 0.0
        %3261 = vmatprep.subr.mxu0 0.0
        %3262 = vmatpush1.xpose.msra.mxu0 0.0
        %3263 = vmatprep.subr.mxu0 0.0
        %3264 = vmatpush1.xpose.msra.mxu0 0.0
        %3265 = vmatprep.subr.mxu0 0.0
        %3266 = vmatpush1.xpose.msra.mxu0 0.0
        %3267 = vmatprep.subr.mxu0 0.0
        %3268 = vmatpush1.xpose.msra.mxu0 0.0
        %3269 = vmatprep.subr.mxu0 0.0
        %3270 = vmatpush1.xpose.msra.mxu0 0.0
        %3271 = vmatprep.subr.mxu0 0.0
        %3272 = vmatpush1.xpose.msra.mxu0 0.0
        %3273 = vmatprep.subr.mxu0 0.0
        %3274 = vmatpush1.xpose.msra.mxu0 0.0
        %3275 = vmatprep.subr.mxu0 0.0
        %3276 = vmatpush1.xpose.msra.mxu0 0.0
        %3277 = vmatprep.subr.mxu0 0.0
        %3278 = vmatpush1.xpose.msra.mxu0 0.0
        %3279 = vmatprep.subr.mxu0 0.0
        %3280 = vmatpush1.xpose.msra.mxu0 0.0
        %3281 = vmatprep.subr.mxu0 0.0
        %3282 = vmatpush1.xpose.msra.mxu0 0.0
        %3283 = vmatprep.mubr.f32.mxu0 0.0
        %3284 = vmatmul.mubr.f32.gmra.mrb[0].mxu0 %v3217
        %v3285 = vpop.f32.mrb[0].mxu0
        %v3286 = vadd.f32 0.0, %v3285
        %v3287 = vpop.f32.mrb[0].mxu0
        %3288 = vdwg.mxu0
        %v3289 = vmul.f32 %v3286, 0.125
        %v3290 = vsel %vm1410, %v3289, -inf
        %v3291 = vrot.slane %v3290, 4
        %v3292 = vmax.f32 %v3290, %v3291
        %v3293 = vrot.slane %v3292, 2
        %v3294 = vmax.f32 %v3292, %v3293
        %v3295 = vrot.slane %v3294, 1
        %v3296 = vmax.f32 %v3294, %v3295
        %v3297 = vsub.f32 %v3289, %v3296
        %v3298 = vmul.f32 %v3297, 1.442695
        %v3299 = vpow.pop %v3298
        %v3300 = vsel %vm1410, %v3299, 0.0
        %v3301 = vrot.slane %v3300, 4
        %v3302 = vadd.f32 %v3300, %v3301
        %v3303 = vrot.slane %v3302, 2
        %v3304 = vadd.f32 %v3302, %v3303
        %v3305 = vrot.slane %v3304, 1
        %v3306 = vadd.f32 %v3304, %v3305
        %v3307 = vrcp.pop %v3306
        %v3308 = vmul.f32 %v3299, %v3307
        %v3309 = vadd.f32 %v3308, 1e-08
        %v3310 = vsel %vm1410, %v3309, 0.0
        %3311 = vadd.xlane.f32.xlu0 %v3310
        %v3312 = vpop.xlane.xlu0 %3311
        %v3313 = vrcp.pop %v3312
        %v3314 = vmul.f32 %v3309, %v3313
        %v3316 = vsel %vm1410, %v3314, 0
        %3318 = vmatprep.subr.mxu0 0.0
        %3319 = vmatpush1.msra.mxu0 %v2653
        %3320 = vmatprep.subr.mxu0 0.0
        %3321 = vmatpush1.msra.mxu0 %v2655
        %3322 = vmatprep.subr.mxu0 0.0
        %3323 = vmatpush1.msra.mxu0 %v2657
        %3324 = vmatprep.subr.mxu0 0.0
        %3325 = vmatpush1.msra.mxu0 %v2659
        %3326 = vmatprep.subr.mxu0 0.0
        %3327 = vmatpush1.msra.mxu0 %v2661
        %3328 = vmatprep.subr.mxu0 0.0
        %3329 = vmatpush1.msra.mxu0 %v2663
        %3330 = vmatprep.subr.mxu0 0.0
        %3331 = vmatpush1.msra.mxu0 %v2665
        %3332 = vmatprep.subr.mxu0 0.0
        %3333 = vmatpush1.msra.mxu0 %v2667
        %3334 = vmatprep.subr.mxu0 0.0
        %3335 = vmatpush1.msra.mxu0 0.0
        %3336 = vmatprep.subr.mxu0 0.0
        %3337 = vmatpush1.msra.mxu0 0.0
        %3338 = vmatprep.subr.mxu0 0.0
        %3339 = vmatpush1.msra.mxu0 0.0
        %3340 = vmatprep.subr.mxu0 0.0
        %3341 = vmatpush1.msra.mxu0 0.0
        %3342 = vmatprep.subr.mxu0 0.0
        %3343 = vmatpush1.msra.mxu0 0.0
        %3344 = vmatprep.subr.mxu0 0.0
        %3345 = vmatpush1.msra.mxu0 0.0
        %3346 = vmatprep.subr.mxu0 0.0
        %3347 = vmatpush1.msra.mxu0 0.0
        %3348 = vmatprep.subr.mxu0 0.0
        %3349 = vmatpush1.msra.mxu0 0.0
        %3350 = vmatprep.subr.mxu0 0.0
        %3351 = vmatpush1.msra.mxu0 0.0
        %3352 = vmatprep.subr.mxu0 0.0
        %3353 = vmatpush1.msra.mxu0 0.0
        %3354 = vmatprep.subr.mxu0 0.0
        %3355 = vmatpush1.msra.mxu0 0.0
        %3356 = vmatprep.subr.mxu0 0.0
        %3357 = vmatpush1.msra.mxu0 0.0
        %3358 = vmatprep.subr.mxu0 0.0
        %3359 = vmatpush1.msra.mxu0 0.0
        %3360 = vmatprep.subr.mxu0 0.0
        %3361 = vmatpush1.msra.mxu0 0.0
        %3362 = vmatprep.subr.mxu0 0.0
        %3363 = vmatpush1.msra.mxu0 0.0
        %3364 = vmatprep.subr.mxu0 0.0
        %3365 = vmatpush1.msra.mxu0 0.0
        %3366 = vmatprep.subr.mxu0 0.0
        %3367 = vmatpush1.msra.mxu0 0.0
        %3368 = vmatprep.subr.mxu0 0.0
        %3369 = vmatpush1.msra.mxu0 0.0
        %3370 = vmatprep.subr.mxu0 0.0
        %3371 = vmatpush1.msra.mxu0 0.0
        %3372 = vmatprep.subr.mxu0 0.0
        %3373 = vmatpush1.msra.mxu0 0.0
        %3374 = vmatprep.subr.mxu0 0.0
        %3375 = vmatpush1.msra.mxu0 0.0
        %3376 = vmatprep.subr.mxu0 0.0
        %3377 = vmatpush1.msra.mxu0 0.0
        %3378 = vmatprep.subr.mxu0 0.0
        %3379 = vmatpush1.msra.mxu0 0.0
        %3380 = vmatprep.subr.mxu0 0.0
        %3381 = vmatpush1.msra.mxu0 0.0
        %3382 = vmatprep.mubr.f32.mxu0 0.0
        %3383 = vmatmul.mubr.f32.gmra.mrb[0].mxu0 %v3316
        %v3384 = vpop.f32.mrb[0].mxu0
        %v3385 = vadd.f32 0.0, %v3384
        %v3386 = vpop.f32.mrb[0].mxu0
        %3387 = vdwg.mxu0
        %v3388 = vsel %vm1410, %v3385, %v3111
        %3389 = vmatprep.subr.mxu0 %v1015
        %3390 = vmatpush1.msra.mxu0 %v1014
        %3391 = vmatprep.subr.mxu0 %v1018
        %3392 = vmatpush1.msra.mxu0 %v1017
        %3393 = vmatprep.subr.mxu0 %v1021
        %3394 = vmatpush1.msra.mxu0 %v1020
        %3395 = vmatprep.subr.mxu0 %v1024
        %3396 = vmatpush1.msra.mxu0 %v1023
        %3397 = vmatprep.subr.mxu0 %v1027
        %3398 = vmatpush1.msra.mxu0 %v1026
        %3399 = vmatprep.subr.mxu0 %v1030
        %3400 = vmatpush1.msra.mxu0 %v1029
        %3401 = vmatprep.subr.mxu0 %v1033
        %3402 = vmatpush1.msra.mxu0 %v1032
        %3403 = vmatprep.subr.mxu0 %v1036
        %3404 = vmatpush1.msra.mxu0 %v1035
        %3405 = vmatprep.subr.mxu0 %v1039
        %3406 = vmatpush1.msra.mxu0 %v1038
        %3407 = vmatprep.subr.mxu0 %v1042
        %3408 = vmatpush1.msra.mxu0 %v1041
        %3409 = vmatprep.subr.mxu0 %v1045
        %3410 = vmatpush1.msra.mxu0 %v1044
        %3411 = vmatprep.subr.mxu0 %v1048
        %3412 = vmatpush1.msra.mxu0 %v1047
        %3413 = vmatprep.subr.mxu0 %v1051
        %3414 = vmatpush1.msra.mxu0 %v1050
        %3415 = vmatprep.subr.mxu0 %v1054
        %3416 = vmatpush1.msra.mxu0 %v1053
        %3417 = vmatprep.subr.mxu0 %v1057
        %3418 = vmatpush1.msra.mxu0 %v1056
        %3419 = vmatprep.subr.mxu0 %v1060
        %3420 = vmatpush1.msra.mxu0 %v1059
        %3421 = vmatprep.subr.mxu0 0.0
        %3422 = vmatpush1.msra.mxu0 0.0
        %3423 = vmatprep.subr.mxu0 0.0
        %3424 = vmatpush1.msra.mxu0 0.0
        %3425 = vmatprep.subr.mxu0 0.0
        %3426 = vmatpush1.msra.mxu0 0.0
        %3427 = vmatprep.subr.mxu0 0.0
        %3428 = vmatpush1.msra.mxu0 0.0
        %3429 = vmatprep.subr.mxu0 0.0
        %3430 = vmatpush1.msra.mxu0 0.0
        %3431 = vmatprep.subr.mxu0 0.0
        %3432 = vmatpush1.msra.mxu0 0.0
        %3433 = vmatprep.subr.mxu0 0.0
        %3434 = vmatpush1.msra.mxu0 0.0
        %3435 = vmatprep.subr.mxu0 0.0
        %3436 = vmatpush1.msra.mxu0 0.0
        %3437 = vmatprep.subr.mxu0 0.0
        %3438 = vmatpush1.msra.mxu0 0.0
        %3439 = vmatprep.subr.mxu0 0.0
        %3440 = vmatpush1.msra.mxu0 0.0
        %3441 = vmatprep.subr.mxu0 0.0
        %3442 = vmatpush1.msra.mxu0 0.0
        %3443 = vmatprep.subr.mxu0 0.0
        %3444 = vmatpush1.msra.mxu0 0.0
        %3445 = vmatprep.subr.mxu0 0.0
        %3446 = vmatpush1.msra.mxu0 0.0
        %3447 = vmatprep.subr.mxu0 0.0
        %3448 = vmatpush1.msra.mxu0 0.0
        %3449 = vmatprep.subr.mxu0 0.0
        %3450 = vmatpush1.msra.mxu0 0.0
        %3451 = vmatprep.subr.mxu0 0.0
        %3452 = vmatpush1.msra.mxu0 0.0
        %3453 = vmatprep.mubr.f32.mxu0 0.0
        %3454 = vmatmul.mubr.f32.gmra.mrb[0].mxu0 %v3388
        %v3455 = vpop.f32.mrb[0].mxu0
        %v3456 = vadd.f32 %v1124, %v3455
        %v3457 = vpop.f32.mrb[0].mxu0
        %v3458 = vadd.f32 %v1128, %v3457
        %3459 = vdwg.mxu0
        %3460 = vmatprep.subr.mxu0 0.0
        %3461 = vmatpush1.msra.mxu0 %v1016
        %3462 = vmatprep.subr.mxu0 0.0
        %3463 = vmatpush1.msra.mxu0 %v1019
        %3464 = vmatprep.subr.mxu0 0.0
        %3465 = vmatpush1.msra.mxu0 %v1022
        %3466 = vmatprep.subr.mxu0 0.0
        %3467 = vmatpush1.msra.mxu0 %v1025
        %3468 = vmatprep.subr.mxu0 0.0
        %3469 = vmatpush1.msra.mxu0 %v1028
        %3470 = vmatprep.subr.mxu0 0.0
        %3471 = vmatpush1.msra.mxu0 %v1031
        %3472 = vmatprep.subr.mxu0 0.0
        %3473 = vmatpush1.msra.mxu0 %v1034
        %3474 = vmatprep.subr.mxu0 0.0
        %3475 = vmatpush1.msra.mxu0 %v1037
        %3476 = vmatprep.subr.mxu0 0.0
        %3477 = vmatpush1.msra.mxu0 %v1040
        %3478 = vmatprep.subr.mxu0 0.0
        %3479 = vmatpush1.msra.mxu0 %v1043
        %3480 = vmatprep.subr.mxu0 0.0
        %3481 = vmatpush1.msra.mxu0 %v1046
        %3482 = vmatprep.subr.mxu0 0.0
        %3483 = vmatpush1.msra.mxu0 %v1049
        %3484 = vmatprep.subr.mxu0 0.0
        %3485 = vmatpush1.msra.mxu0 %v1052
        %3486 = vmatprep.subr.mxu0 0.0
        %3487 = vmatpush1.msra.mxu0 %v1055
        %3488 = vmatprep.subr.mxu0 0.0
        %3489 = vmatpush1.msra.mxu0 %v1058
        %3490 = vmatprep.subr.mxu0 0.0
        %3491 = vmatpush1.msra.mxu0 %v1061
        %3492 = vmatprep.subr.mxu0 0.0
        %3493 = vmatpush1.msra.mxu0 0.0
        %3494 = vmatprep.subr.mxu0 0.0
        %3495 = vmatpush1.msra.mxu0 0.0
        %3496 = vmatprep.subr.mxu0 0.0
        %3497 = vmatpush1.msra.mxu0 0.0
        %3498 = vmatprep.subr.mxu0 0.0
        %3499 = vmatpush1.msra.mxu0 0.0
        %3500 = vmatprep.subr.mxu0 0.0
        %3501 = vmatpush1.msra.mxu0 0.0
        %3502 = vmatprep.subr.mxu0 0.0
        %3503 = vmatpush1.msra.mxu0 0.0
        %3504 = vmatprep.subr.mxu0 0.0
        %3505 = vmatpush1.msra.mxu0 0.0
        %3506 = vmatprep.subr.mxu0 0.0
        %3507 = vmatpush1.msra.mxu0 0.0
        %3508 = vmatprep.subr.mxu0 0.0
        %3509 = vmatpush1.msra.mxu0 0.0
        %3510 = vmatprep.subr.mxu0 0.0
        %3511 = vmatpush1.msra.mxu0 0.0
        %3512 = vmatprep.subr.mxu0 0.0
        %3513 = vmatpush1.msra.mxu0 0.0
        %3514 = vmatprep.subr.mxu0 0.0
        %3515 = vmatpush1.msra.mxu0 0.0
        %3516 = vmatprep.subr.mxu0 0.0
        %3517 = vmatpush1.msra.mxu0 0.0
        %3518 = vmatprep.subr.mxu0 0.0
        %3519 = vmatpush1.msra.mxu0 0.0
        %3520 = vmatprep.subr.mxu0 0.0
        %3521 = vmatpush1.msra.mxu0 0.0
        %3522 = vmatprep.subr.mxu0 0.0
        %3523 = vmatpush1.msra.mxu0 0.0
        %3524 = vmatprep.mubr.f32.mxu0 0.0
        %3525 = vmatmul.mubr.f32.gmra.mrb[0].mxu0 %v3388
        %v3526 = vpop.f32.mrb[0].mxu0
        %v3527 = vadd.f32 %v1132, %v3526
        %v3528 = vpop.f32.mrb[0].mxu0
        %3529 = vdwg.mxu0
        %3531 = vrot.lane.b32.xlu0 %v3458, 64
        %v3532 = vpop.permute.xlu0 %3531
        %v3534 = vadd.f32 %v3456, %v3532
        %v3535 = vxor.u32 %v3534, 2147483648
        %v3536 = vmul.f32 %v3535, 1.442695
        %v3537 = vpow.pop %v3536
        %v3538 = vadd.f32 %v3537, 1.0
        %v3539 = vrcp.pop %v3538
        %v3540 = vmul.f32 1.0, %v3539
        %3542 = vrot.lane.b32.xlu0 %v3527, 64
        %v3543 = vpop.permute.xlu0 %3542
        %v3545 = vadd.f32 %v3456, %v3543
        %v3546 = vxor.u32 %v3545, 2147483648
        %v3547 = vmul.f32 %v3546, 1.442695
        %v3548 = vpow.pop %v3547
        %v3549 = vadd.f32 %v3548, 1.0
        %v3550 = vrcp.pop %v3549
        %v3551 = vmul.f32 1.0, %v3550
        %v3552 = vmul.f32 %v3540, %v3543
        %v3553 = vadd.f32 %v3458, %v3552
        %v3554 = vtanh.pop %v3553
        %v3555 = vsub.f32 1.0, %v3551
        %3557 = vrot.lane.b32.xlu0 %v3554, 64
        %v3558 = vpop.permute.xlu0 %3557
        %v3560 = vmul.f32 %v3555, %v3558
        %v3561 = vmul.f32 %v3551, %v3111
        %v3562 = vadd.f32 %v3560, %v3561
        %3564 = vrot.lane.b32.xlu0 %v3562, 64
        %v3565 = vpop.permute.xlu0 %3564
        %v3567 = vsel %vm1410, %v3565, 0.0
        %3568 = vadd.xlane.f32.xlu0 %v3567
        %v3569 = vpop.xlane.xlu0 %3568
        %v3570 = vmul.f32 %v3569, %v1414
        %v3571 = vsub.f32 %v3562, %v3570
        %v3572 = vmul.f32 %v3571, %v3571
        %3574 = vrot.lane.b32.xlu0 %v3572, 64
        %v3575 = vpop.permute.xlu0 %3574
        %v3577 = vsel %vm1410, %v3575, 0.0
        %3578 = vadd.xlane.f32.xlu0 %v3577
        %v3579 = vpop.xlane.xlu0 %3578
        %v3580 = vmul.f32 %v3579, %v1414
        %v3581 = vadd.f32 %v3580, 1e-05
        %v3582 = vrsqrt.pop %v3581
        %v3583 = vmul.f32 %v3571, %v3582
        %v3584 = vmul.f32 %v3583, %v2950
        %v3585 = vadd.f32 %v3584, %v2954
        %3587 = vrot.lane.b32.xlu0 %v3585, 64
        %v3588 = vpop.permute.xlu0 %3587
        %v3589 = vsel %vm1410, %v3588, 0
        %3591 = vmatprep.subr.mxu0 0.0
        %3592 = vmatpush1.msra.mxu0 %v1063
        %3593 = vmatprep.subr.mxu0 0.0
        %3594 = vmatpush1.msra.mxu0 %v1064
        %3595 = vmatprep.subr.mxu0 0.0
        %3596 = vmatpush1.msra.mxu0 %v1065
        %3597 = vmatprep.subr.mxu0 0.0
        %3598 = vmatpush1.msra.mxu0 %v1066
        %3599 = vmatprep.subr.mxu0 0.0
        %3600 = vmatpush1.msra.mxu0 %v1067
        %3601 = vmatprep.subr.mxu0 0.0
        %3602 = vmatpush1.msra.mxu0 %v1068
        %3603 = vmatprep.subr.mxu0 0.0
        %3604 = vmatpush1.msra.mxu0 %v1069
        %3605 = vmatprep.subr.mxu0 0.0
        %3606 = vmatpush1.msra.mxu0 %v1070
        %3607 = vmatprep.subr.mxu0 0.0
        %3608 = vmatpush1.msra.mxu0 0.0
        %3609 = vmatprep.subr.mxu0 0.0
        %3610 = vmatpush1.msra.mxu0 0.0
        %3611 = vmatprep.subr.mxu0 0.0
        %3612 = vmatpush1.msra.mxu0 0.0
        %3613 = vmatprep.subr.mxu0 0.0
        %3614 = vmatpush1.msra.mxu0 0.0
        %3615 = vmatprep.subr.mxu0 0.0
        %3616 = vmatpush1.msra.mxu0 0.0
        %3617 = vmatprep.subr.mxu0 0.0
        %3618 = vmatpush1.msra.mxu0 0.0
        %3619 = vmatprep.subr.mxu0 0.0
        %3620 = vmatpush1.msra.mxu0 0.0
        %3621 = vmatprep.subr.mxu0 0.0
        %3622 = vmatpush1.msra.mxu0 0.0
        %3623 = vmatprep.subr.mxu0 0.0
        %3624 = vmatpush1.msra.mxu0 0.0
        %3625 = vmatprep.subr.mxu0 0.0
        %3626 = vmatpush1.msra.mxu0 0.0
        %3627 = vmatprep.subr.mxu0 0.0
        %3628 = vmatpush1.msra.mxu0 0.0
        %3629 = vmatprep.subr.mxu0 0.0
        %3630 = vmatpush1.msra.mxu0 0.0
        %3631 = vmatprep.subr.mxu0 0.0
        %3632 = vmatpush1.msra.mxu0 0.0
        %3633 = vmatprep.subr.mxu0 0.0
        %3634 = vmatpush1.msra.mxu0 0.0
        %3635 = vmatprep.subr.mxu0 0.0
        %3636 = vmatpush1.msra.mxu0 0.0
        %3637 = vmatprep.subr.mxu0 0.0
        %3638 = vmatpush1.msra.mxu0 0.0
        %3639 = vmatprep.subr.mxu0 0.0
        %3640 = vmatpush1.msra.mxu0 0.0
        %3641 = vmatprep.subr.mxu0 0.0
        %3642 = vmatpush1.msra.mxu0 0.0
        %3643 = vmatprep.subr.mxu0 0.0
        %3644 = vmatpush1.msra.mxu0 0.0
        %3645 = vmatprep.subr.mxu0 0.0
        %3646 = vmatpush1.msra.mxu0 0.0
        %3647 = vmatprep.subr.mxu0 0.0
        %3648 = vmatpush1.msra.mxu0 0.0
        %3649 = vmatprep.subr.mxu0 0.0
        %3650 = vmatpush1.msra.mxu0 0.0
        %3651 = vmatprep.subr.mxu0 0.0
        %3652 = vmatpush1.msra.mxu0 0.0
        %3653 = vmatprep.subr.mxu0 0.0
        %3654 = vmatpush1.msra.mxu0 0.0
        %3655 = vmatprep.mubr.f32.mxu0 0.0
        %3656 = vmatmul.mubr.f32.gmra.mrb[0].mxu0 %v3589
        %v3657 = vpop.f32.mrb[0].mxu0
        %v3658 = vadd.f32 %v1140, %v3657
        %v3659 = vpop.f32.mrb[0].mxu0
        %3660 = vdwg.mxu0
        %v3661 = vmax.f32 %v3658, 0.0
        %3662 = vmatprep.subr.mxu0 0.0
        %3663 = vmatpush1.msra.mxu0 %v1072
        %3664 = vmatprep.subr.mxu0 0.0
        %3665 = vmatpush1.msra.mxu0 %v1073
        %3666 = vmatprep.subr.mxu0 0.0
        %3667 = vmatpush1.msra.mxu0 %v1074
        %3668 = vmatprep.subr.mxu0 0.0
        %3669 = vmatpush1.msra.mxu0 %v1075
        %3670 = vmatprep.subr.mxu0 0.0
        %3671 = vmatpush1.msra.mxu0 %v1076
        %3672 = vmatprep.subr.mxu0 0.0
        %3673 = vmatpush1.msra.mxu0 %v1077
        %3674 = vmatprep.subr.mxu0 0.0
        %3675 = vmatpush1.msra.mxu0 %v1078
        %3676 = vmatprep.subr.mxu0 0.0
        %3677 = vmatpush1.msra.mxu0 %v1079
        %3678 = vmatprep.subr.mxu0 0.0
        %3679 = vmatpush1.msra.mxu0 %v1080
        %3680 = vmatprep.subr.mxu0 0.0
        %3681 = vmatpush1.msra.mxu0 %v1081
        %3682 = vmatprep.subr.mxu0 0.0
        %3683 = vmatpush1.msra.mxu0 %v1082
        %3684 = vmatprep.subr.mxu0 0.0
        %3685 = vmatpush1.msra.mxu0 %v1083
        %3686 = vmatprep.subr.mxu0 0.0
        %3687 = vmatpush1.msra.mxu0 %v1084
        %3688 = vmatprep.subr.mxu0 0.0
        %3689 = vmatpush1.msra.mxu0 %v1085
        %3690 = vmatprep.subr.mxu0 0.0
        %3691 = vmatpush1.msra.mxu0 %v1086
        %3692 = vmatprep.subr.mxu0 0.0
        %3693 = vmatpush1.msra.mxu0 %v1087
        %3694 = vmatprep.subr.mxu0 0.0
        %3695 = vmatpush1.msra.mxu0 0.0
        %3696 = vmatprep.subr.mxu0 0.0
        %3697 = vmatpush1.msra.mxu0 0.0
        %3698 = vmatprep.subr.mxu0 0.0
        %3699 = vmatpush1.msra.mxu0 0.0
        %3700 = vmatprep.subr.mxu0 0.0
        %3701 = vmatpush1.msra.mxu0 0.0
        %3702 = vmatprep.subr.mxu0 0.0
        %3703 = vmatpush1.msra.mxu0 0.0
        %3704 = vmatprep.subr.mxu0 0.0
        %3705 = vmatpush1.msra.mxu0 0.0
        %3706 = vmatprep.subr.mxu0 0.0
        %3707 = vmatpush1.msra.mxu0 0.0
        %3708 = vmatprep.subr.mxu0 0.0
        %3709 = vmatpush1.msra.mxu0 0.0
        %3710 = vmatprep.subr.mxu0 0.0
        %3711 = vmatpush1.msra.mxu0 0.0
        %3712 = vmatprep.subr.mxu0 0.0
        %3713 = vmatpush1.msra.mxu0 0.0
        %3714 = vmatprep.subr.mxu0 0.0
        %3715 = vmatpush1.msra.mxu0 0.0
        %3716 = vmatprep.subr.mxu0 0.0
        %3717 = vmatpush1.msra.mxu0 0.0
        %3718 = vmatprep.subr.mxu0 0.0
        %3719 = vmatpush1.msra.mxu0 0.0
        %3720 = vmatprep.subr.mxu0 0.0
        %3721 = vmatpush1.msra.mxu0 0.0
        %3722 = vmatprep.subr.mxu0 0.0
        %3723 = vmatpush1.msra.mxu0 0.0
        %3724 = vmatprep.subr.mxu0 0.0
        %3725 = vmatpush1.msra.mxu0 0.0
        %3726 = vmatprep.mubr.f32.mxu0 0.0
        %3727 = vmatmul.mubr.f32.gmra.mrb[0].mxu0 %v3661
        %v3728 = vpop.f32.mrb[0].mxu0
        %v3729 = vadd.f32 0.0, %v3728
        %v3730 = vpop.f32.mrb[0].mxu0
        %3731 = vdwg.mxu0
        %3733 = vrot.lane.b32.xlu0 %v3729, 64
        %v3734 = vpop.permute.xlu0 %3733
        %v3736 = vadd.f32 %v3562, %v3734
        %v3737 = vadd.f32 %v3736, %v3109
        %3739 = vrot.lane.b32.xlu0 %v3737, 64
        %v3740 = vpop.permute.xlu0 %3739
        %3742 = vst.msk [vmem:[%s938] sm:$0xff] %vm1410, %v3740
        %s3743 = sand.u32 %s570, 1
        %s3744 = scalar_lea.sflag [#allocation4], %s3743
        %s3745 = sand.u32 %s570, 1
        %s3746 = smul.addr %s3745, 8
        %s3747 = scalar_lea.vmem [#allocation25], %s3746
        // Predicated region
        $region173: #{tpu_custom_call.1} parent=115 // pred_check
          %p3748 = pneg %p580
        $region174: #{tpu_custom_call.1} parent=115 // pred_check_branch
          %3750 = sbr.rel (%p3748) target = $region176
        $region175: #{tpu_custom_call.1} parent=115 // pred_region
          %s3752 = ssub.s32 128, 128
          %3753 = vsyncadd %s3744, %s3752
          %s3754 = smul.addr %s48, 128
          %s3755 = scalar_lea.hbm %s24, %s3754
          %s3757 = sshll.u32 %s3747, 4
          %s3758 = int_to_ptr.vmem [resolvable:$true] %s3757
          %3760 = dma.vmem_to_hbm [thread:$0]  %s3758, 128, %s3755, %s3744
        $region176: #{tpu_custom_call.1} parent=115 // pred_fallthru
          _
      $region116: #{tpu_custom_call.1} parent=5 // pred_fallthru
        _
      %p3761 = scmp.le.s32.totalorder 2, %s43
      // Predicated region
      $region177: #{tpu_custom_call.1} parent=5 // pred_check
        %p3762 = pneg %p3761
      $region178: #{tpu_custom_call.1} parent=5 // pred_check_branch
        %3764 = sbr.rel (%p3762) target = $region180
      $region179: #{tpu_custom_call.1} parent=5 // pred_region
        %s3765 = ssub.s32 %s43, 2
        // Predicated region
        $region181: #{tpu_custom_call.1} parent=179 // pred_check
          %p3766 = pneg %p586
        $region182: #{tpu_custom_call.1} parent=179 // pred_check_branch
          %3768 = sbr.rel (%p3766) target = $region184
        $region183: #{tpu_custom_call.1} parent=179 // pred_region
          %s3769 = sand.u32 %s571, 1
          %s3770 = scalar_lea.sflag [#allocation4], %s3769
          %s3771 = sand.u32 %s571, 1
          %s3772 = smul.addr %s3771, 8
          %s3773 = scalar_lea.vmem [#allocation25], %s3772
          %3774 = dma.done %s3770, 128
        $region184: #{tpu_custom_call.1} parent=179 // pred_fallthru
          _
      $region180: #{tpu_custom_call.1} parent=5 // pred_fallthru
        _
    $region6: #{tpu_custom_call.1} parent=1 // loop_footer
      %s47 = sadd.s32 1, %s43
    $region7: #{tpu_custom_call.1} parent=1 // loop_footer_branch
      %42 = sbr.rel target = $region3
    $region8: #{tpu_custom_call.1} parent=1 // loop_exit
      _
    %3775 = vsyncpa [#allocation3], 1
    %s3776 = scalar_lea.sflag [#allocation3], 1
    %3777 = vsyncpa %s3776, 1
    %3778 = vsyncpa [#allocation6], 1
    %3779 = vsyncpa [#allocation9], 1
    %3780 = vsyncpa [#allocation12], 1
    %3781 = vsyncpa [#allocation15], 1
    %3782 = vsyncpa [#allocation18], 1
    %3783 = vsyncpa [#allocation21], 1
    %3784 = vsyncpa [#allocation24], 1
    %3785 = vsyncpa [#allocation4], 1
    %s3786 = scalar_lea.sflag [#allocation4], 1
    %3787 = vsyncpa %s3786, 1

</llo_original>
